<compile_context>
chip_gen: v7x
topology: tpu7x:2x2x1
jax: 0.10.0
libtpu: 0.0.40
codegen_flags: <defaults>
</compile_context>

<pallas_src>
import functools

import jax
import jax.numpy as jnp
from jax.experimental import pallas as pl
from jax.experimental.pallas import tpu as pltpu


# ------------------------------------------------------------------ weight preparation

def _toeplitz_weights(w, stride, G, Cs, Wq, Wo):
    """Torch-layout (Cout, Cin, 3, 3, 3) -> per-(dd, dh) block-Toeplitz matmul weights
    of shape (G*G, Wq*Cs, Wo*Cout).

    For stride 2 the weights are first re-expressed in the space-to-depth quotient
    space (Cs = 8*Cin, G = 2); the W-axis taps are then folded into a banded
    (Wq*Cs, Wo*Cout) matrix so the whole W-convolution is a single MXU matmul."""
    Cout, Cin = w.shape[0], w.shape[1]
    s = int(stride)
    wt = jnp.transpose(w, (2, 3, 4, 1, 0)).astype(jnp.float32)          # (3,3,3,Cin,Cout)
    if s == 1:
        wq = wt                                                          # (G,G,G,Cs,Cout)
    else:
        wq = jnp.zeros((G, G, G, s, s, s, Cin, Cout), jnp.float32)
        for kd in range(3):
            for kh in range(3):
                for kw in range(3):
                    wq = wq.at[kd // s, kh // s, kw // s,
                               kd % s, kh % s, kw % s].set(wt[kd, kh, kw])
        wq = wq.reshape(G, G, G, Cs, Cout)

    # out[.., wo, co] += win[.., wo + dw, :] @ wq[dd, dh, dw]   (banded Toeplitz blocks)
    T = jnp.zeros((G, G, Wq, Cs, Wo, Cout), jnp.float32)
    for dw in range(G):
        for wo in range(Wo):
            T = T.at[:, :, wo + dw, :, wo, :].set(wq[:, :, dw])
    return T.reshape(G * G, Wq * Cs, Wo * Cout).astype(jnp.bfloat16)


# ------------------------------------------------------------------ fused conv kernel

def _fused_conv_in_relu_kernel(x_ref, w_ref, g_ref, b_ref, o_ref, *scratch,
                               G, Do, Ho, Wo, Cs, Cout, eps, pad_in_kernel):
    """One sample: 3x3x3 conv (as G^2 fat Toeplitz matmuls) + InstanceNorm + ReLU.

    x_ref : (1, Dq, Hq, Wq*Cs) bf16   padded input   (pad_in_kernel=False, stride-2 s2d)
            (1, Do, Ho, Wo*Cs) bf16   unpadded input (pad_in_kernel=True,  stride 1)
    w_ref : (G*G, Wq*Cs, Wo*Cout) bf16   resident block-Toeplitz weights
    g_ref : (1, Cout) f32   gamma        b_ref : (1, Cout) f32   beta
    o_ref : (1, Do, Ho, Wo*Cout)         lane-dense fused output
    """
    Wq = Wo + G - 1

    if pad_in_kernel:
        # Zero-bordered window built in VMEM: replaces an HBM-materialized jnp.pad of
        # the conv input (only the 1-voxel border actually needs the zeroing).
        win_ref = scratch[0]
        win_ref[...] = jnp.zeros_like(win_ref)
        win_ref[1:1 + Do, 1:1 + Ho, Cs:Cs + Wo * Cs] = x_ref[0]

        def lhs(dd, dh):
            return win_ref[dd:dd + Do, dh:dh + Ho, :]
    else:
        def lhs(dd, dh):
            return x_ref[0, dd:dd + Do, dh:dh + Ho, :]

    # Conv: G^2 matmuls with K = Wq*Cs, N = Wo*Cout (f32 accumulation on the MXU).
    M2 = Do * Ho
    acc = jnp.zeros((M2, Wo * Cout), jnp.float32)
    for dd in range(G):
        for dh in range(G):
            acc = acc + jnp.dot(lhs(dd, dh).reshape(M2, Wq * Cs),
                                w_ref[dd * G + dh],
                                preferred_element_type=jnp.float32)

    # InstanceNorm over all (d, h, w) per channel, on the f32 accumulator.
    # Channels are interleaved as (w*Cout + c) in the minor dim; fold / broadcast with
    # static lane slices and concatenation only.
    n = float(Do * Ho * Wo)

    def fold_w(row):                               # (1, Wo*Cout) -> (1, Cout)
        out = row[:, 0:Cout]
        for wo in range(1, Wo):
            out = out + row[:, wo * Cout:(wo + 1) * Cout]
        return out

    def tile_w(row):                               # (1, Cout) -> (1, Wo*Cout)
        return jnp.concatenate([row] * Wo, axis=1)

    mean_c = fold_w(jnp.sum(acc, axis=0, keepdims=True)) / n            # (1, Cout)
    cent = acc - tile_w(mean_c)
    var_c = fold_w(jnp.sum(cent * cent, axis=0, keepdims=True)) / n     # biased, as torch
    scale_c = g_ref[...] * jax.lax.rsqrt(var_c + eps)

    out = jnp.maximum(cent * tile_w(scale_c) + tile_w(b_ref[...]), 0.0)
    o_ref[...] = out.reshape(1, Do, Ho, Wo * Cout).astype(o_ref.dtype)


# ------------------------------------------------------------------ stage wrapper

def conv3_instnorm_relu(x_flat, W_in, C_in, w, gamma, beta, *, stride, eps=1e-5,
                        out_dtype=jnp.bfloat16):
    """Fused Conv3d(k=3, pad=1, bias=False, stride in {1,2}) + InstanceNorm3d + ReLU.

    x_flat: (B, D, H, W_in*C_in) channel-last, lane-dense.
    Returns (out (B, Do, Ho, Wo*Cout), (Do, Ho, Wo))."""
    B, Din, Hin = x_flat.shape[0], x_flat.shape[1], x_flat.shape[2]
    assert x_flat.shape[3] == W_in * C_in
    Cout = w.shape[0]
    s = int(stride)
    assert s in (1, 2) and w.shape[1] == C_in and w.shape[2:] == (3, 3, 3)

    Do = (Din + 2 - 3) // s + 1
    Ho = (Hin + 2 - 3) // s + 1
    Wo = (W_in + 2 - 3) // s + 1
    G = 3 if s == 1 else 2            # taps per spatial dim (quotient space for s=2)
    Cs = (s ** 3) * C_in              # contraction channels per spatial position
    Wq = Wo + G - 1

    if s == 1:
        # Zero border handled inside the kernel -> no padded copy of the input in HBM.
        xq = x_flat.astype(jnp.bfloat16)
        pad_in_kernel = True
        in_block = (1, Din, Hin, W_in * C_in)
        scratch_shapes = [pltpu.VMEM((Do + 2, Ho + 2, Wq * Cs), jnp.bfloat16)]
    else:
        # stride 2: space-to-depth of the zero-padded volume -> stride-1 quotient conv.
        # The pad rides along with the (mandatory) s2d transpose copy in XLA.
        assert (Din + 2) % 2 == 0 and (Hin + 2) % 2 == 0 and (W_in + 2) % 2 == 0, \
            "stride-2 path expects even padded extents"
        x5 = x_flat.reshape(B, Din, Hin, W_in, C_in)
        xp = jnp.pad(x5, ((0, 0), (1, 1), (1, 1), (1, 1), (0, 0)))
        Dp, Hp, Wp = Din + 2, Hin + 2, W_in + 2
        xq = xp.reshape(B, Dp // 2, 2, Hp // 2, 2, Wp // 2, 2, C_in)
        xq = xq.transpose(0, 1, 3, 5, 2, 4, 6, 7)
        xq = xq.reshape(B, Dp // 2, Hp // 2, (Wp // 2) * Cs).astype(jnp.bfloat16)
        pad_in_kernel = False
        in_block = (1, Dp // 2, Hp // 2, (Wp // 2) * Cs)
        scratch_shapes = []
        assert (Dp // 2, Hp // 2, Wp // 2) == (Do + G - 1, Ho + G - 1, Wq)

    wt = _toeplitz_weights(w, s, G, Cs, Wq, Wo)                  # (G*G, Wq*Cs, Wo*Cout)
    g2 = gamma.reshape(1, Cout).astype(jnp.float32)
    b2 = beta.reshape(1, Cout).astype(jnp.float32)

    kernel = functools.partial(
        _fused_conv_in_relu_kernel, G=G, Do=Do, Ho=Ho, Wo=Wo, Cs=Cs, Cout=Cout,
        eps=eps, pad_in_kernel=pad_in_kernel)

    out = pl.pallas_call(
        kernel,
        grid=(B,),
        in_specs=[
            pl.BlockSpec(in_block, lambda b: (b, 0, 0, 0)),
            # constant block index -> weights fetched once, stay resident in VMEM
            pl.BlockSpec(wt.shape, lambda b: (0, 0, 0)),
            pl.BlockSpec((1, Cout), lambda b: (0, 0)),
            pl.BlockSpec((1, Cout), lambda b: (0, 0)),
        ],
        out_specs=pl.BlockSpec((1, Do, Ho, Wo * Cout), lambda b: (b, 0, 0, 0)),
        out_shape=jax.ShapeDtypeStruct((B, Do, Ho, Wo * Cout), out_dtype),
        scratch_shapes=scratch_shapes,
        compiler_params=pltpu.CompilerParams(
            dimension_semantics=("parallel",),      # batch across TensorCores
            vmem_limit_bytes=32 * 1024 * 1024,      # <= 50% of v7x's 64 MiB physical VMEM
        ),
    )(xq, wt, g2, b2)
    return out, (Do, Ho, Wo)


# ------------------------------------------------------------------ module forward

def encoder_cnn_block_apply(params, x_ncdhw, *, stride, eps=1e-5):
    """Forward pass of EncoderCnnBlock.  x_ncdhw: (B, Cin, D, H, W) float32 (NCDHW)."""
    B, Cin, D, H, W = x_ncdhw.shape
    Cout = params['w1'].shape[0]
    # Boundary NCDHW -> channel-last + bf16 cast + (W, C) flatten: one fused XLA copy.
    x = jnp.transpose(x_ncdhw, (0, 2, 3, 4, 1)).astype(jnp.bfloat16)
    x = x.reshape(B, D, H, W * Cin)

    a1, (D1, H1, W1) = conv3_instnorm_relu(
        x, W, Cin, params['w1'], params['g1'], params['b1'],
        stride=stride, eps=eps, out_dtype=jnp.bfloat16)
    a2, _ = conv3_instnorm_relu(
        a1, W1, Cout, params['w2'], params['g2'], params['b2'],
        stride=1, eps=eps, out_dtype=jnp.float32)

    a2 = a2.reshape(B, D1, H1, W1, Cout)
    return jnp.transpose(a2, (0, 4, 1, 2, 3))                    # back to NCDHW (f32)


# ------------------------------------------------------------------ reference

def reference_forward(params, x_ncdhw, *, stride, eps=1e-5, match_bf16=True):
    """Pure-JAX/XLA reference.  match_bf16=True mirrors the kernel's bf16 operands."""
    op_dtype = jnp.bfloat16 if match_bf16 else jnp.float32

    def conv(x, w, s):
        return jax.lax.conv_general_dilated(
            x.astype(op_dtype),
            jnp.transpose(w, (2, 3, 4, 1, 0)).astype(op_dtype),
            window_strides=(s, s, s), padding=[(1, 1)] * 3,
            dimension_numbers=('NDHWC', 'DHWIO', 'NDHWC'),
            preferred_element_type=jnp.float32)

    def inorm_relu(y, g, b):
        m = jnp.mean(y, axis=(1, 2, 3), keepdims=True)
        v = jnp.mean(jnp.square(y - m), axis=(1, 2, 3), keepdims=True)
        return jnp.maximum((y - m) * jax.lax.rsqrt(v + eps) * g + b, 0.0)

    x = jnp.transpose(x_ncdhw, (0, 2, 3, 4, 1)).astype(jnp.float32)
    a1 = inorm_relu(conv(x, params['w1'], stride), params['g1'], params['b1'])
    a2 = inorm_relu(conv(a1, params['w2'], 1), params['g2'], params['b2'])
    return jnp.transpose(a2, (0, 4, 1, 2, 3))


# ------------------------------------------------------------------ main

if __name__ == "__main__":
    key = jax.random.PRNGKey(0)
    B, Cin, Cout = 2, 4, 16
    D = H = W = 16
    stride = 2                        # first conv stride (second conv stride is 1)

    kx, kw1, kw2, kg1, kb1, kg2, kb2 = jax.random.split(key, 7)
    x = jax.random.normal(kx, (B, Cin, D, H, W), jnp.float32)
    params = dict(
        w1=0.1 * jax.random.normal(kw1, (Cout, Cin, 3, 3, 3), jnp.float32),
        w2=0.1 * jax.random.normal(kw2, (Cout, Cout, 3, 3, 3), jnp.float32),
        g1=1.0 + 0.1 * jax.random.normal(kg1, (Cout,), jnp.float32),
        b1=0.1 * jax.random.normal(kb1, (Cout,), jnp.float32),
        g2=1.0 + 0.1 * jax.random.normal(kg2, (Cout,), jnp.float32),
        b2=0.1 * jax.random.normal(kb2, (Cout,), jnp.float32),
    )

    fwd = jax.jit(functools.partial(encoder_cnn_block_apply, stride=stride))
    out = jax.block_until_ready(fwd(params, x))

    assert out.shape == (B, Cout, D // stride, H // stride, W // stride)
    assert bool(jnp.all(jnp.isfinite(out)))

    # Correctness: compare against an XLA reference with the same bf16 operands
    # (differences are summation order / bf16 rounding of the intermediate activation)
    # plus a loose sanity bound against the pure-f32 reference.
    ref_bf16 = jax.block_until_ready(
        reference_forward(params, x, stride=stride, match_bf16=True))
    ref_f32 = jax.block_until_ready(
        reference_forward(params, x, stride=stride, match_bf16=False))
    err_bf16 = float(jnp.max(jnp.abs(out - ref_bf16)))
    err_f32 = float(jnp.max(jnp.abs(out - ref_f32)))
    assert err_bf16 < 1e-1, f"mismatch vs bf16-matched reference: {err_bf16}"
    assert err_f32 < 5e-1, f"mismatch vs f32 reference: {err_f32}"

    print("KERNEL_OK")
</pallas_src>

<mosaic_0001>
module attributes {stable_mosaic.version = 11 : i64} {
  func.func @_fused_conv_in_relu_kernel(%arg0: i32, %arg1: memref<1x9x9x288xbf16, #tpu.memory_space<vmem>>, %arg2: memref<4x288x128xbf16, #tpu.memory_space<vmem>>, %arg3: memref<1x16xf32, #tpu.memory_space<vmem>>, %arg4: memref<1x16xf32, #tpu.memory_space<vmem>>, %arg5: memref<1x8x8x128xbf16, #tpu.memory_space<vmem>>) attributes {dimension_semantics = [#tpu.dimension_semantics<parallel>], iteration_bounds = array<i64: 2>, scalar_prefetch = 0 : i64, scratch_operands = 0 : i64, tpu.core_type = #tpu.core_type<tc>, window_params = [{transform_indices = @transform_0, window_bounds = array<i64: 1, 9, 9, 288>}, {pipeline_mode = #tpu.pipeline_mode<synchronous>, transform_indices = @transform_1, window_bounds = array<i64: 4, 288, 128>}, {pipeline_mode = #tpu.pipeline_mode<synchronous>, transform_indices = @transform_2, window_bounds = array<i64: 1, 16>}, {pipeline_mode = #tpu.pipeline_mode<synchronous>, transform_indices = @transform_3, window_bounds = array<i64: 1, 16>}, {transform_indices = @transform_4, window_bounds = array<i64: 1, 8, 8, 128>}]} {
    %cst = arith.constant 0.000000e+00 : f32
    %0 = vector.broadcast %cst : f32 to vector<64x128xf32>
    %c0 = arith.constant 0 : index
    %c0_0 = arith.constant 0 : index
    %c0_1 = arith.constant 0 : index
    %c0_2 = arith.constant 0 : index
    %1 = vector.load %arg1[%c0, %c0_0, %c0_1, %c0_2] : memref<1x9x9x288xbf16, #tpu.memory_space<vmem>>, vector<1x8x8x288xbf16>
    %2 = vector.shape_cast %1 : vector<1x8x8x288xbf16> to vector<8x8x288xbf16>
    %3 = vector.shape_cast %2 : vector<8x8x288xbf16> to vector<64x288xbf16>
    %c0_3 = arith.constant 0 : index
    %c0_4 = arith.constant 0 : index
    %c0_5 = arith.constant 0 : index
    %4 = vector.load %arg2[%c0_3, %c0_4, %c0_5] : memref<4x288x128xbf16, #tpu.memory_space<vmem>>, vector<1x288x128xbf16>
    %5 = vector.shape_cast %4 : vector<1x288x128xbf16> to vector<288x128xbf16>
    %cst_6 = arith.constant dense<0.000000e+00> : vector<64x128xf32>
    %6 = tpu.matmul %3, %5, %cst_6 {dimension_numbers = #tpu.dot_dimension_numbers<[1], [0], [0], [1], [0, 0, 1, 1], [], []>} : vector<64x288xbf16>, vector<288x128xbf16>, vector<64x128xf32> -> vector<64x128xf32>
    %7 = arith.addf %0, %6 : vector<64x128xf32>
    %c0_7 = arith.constant 0 : index
    %c0_8 = arith.constant 0 : index
    %c1 = arith.constant 1 : index
    %c0_9 = arith.constant 0 : index
    %8 = vector.load %arg1[%c0_7, %c0_8, %c1, %c0_9] : memref<1x9x9x288xbf16, #tpu.memory_space<vmem>>, vector<1x8x8x288xbf16>
    %9 = vector.shape_cast %8 : vector<1x8x8x288xbf16> to vector<8x8x288xbf16>
    %10 = vector.shape_cast %9 : vector<8x8x288xbf16> to vector<64x288xbf16>
    %c1_10 = arith.constant 1 : index
    %c0_11 = arith.constant 0 : index
    %c0_12 = arith.constant 0 : index
    %11 = vector.load %arg2[%c1_10, %c0_11, %c0_12] : memref<4x288x128xbf16, #tpu.memory_space<vmem>>, vector<1x288x128xbf16>
    %12 = vector.shape_cast %11 : vector<1x288x128xbf16> to vector<288x128xbf16>
    %cst_13 = arith.constant dense<0.000000e+00> : vector<64x128xf32>
    %13 = tpu.matmul %10, %12, %cst_13 {dimension_numbers = #tpu.dot_dimension_numbers<[1], [0], [0], [1], [0, 0, 1, 1], [], []>} : vector<64x288xbf16>, vector<288x128xbf16>, vector<64x128xf32> -> vector<64x128xf32>
    %14 = arith.addf %7, %13 : vector<64x128xf32>
    %c0_14 = arith.constant 0 : index
    %c1_15 = arith.constant 1 : index
    %c0_16 = arith.constant 0 : index
    %c0_17 = arith.constant 0 : index
    %15 = vector.load %arg1[%c0_14, %c1_15, %c0_16, %c0_17] : memref<1x9x9x288xbf16, #tpu.memory_space<vmem>>, vector<1x8x8x288xbf16>
    %16 = vector.shape_cast %15 : vector<1x8x8x288xbf16> to vector<8x8x288xbf16>
    %17 = vector.shape_cast %16 : vector<8x8x288xbf16> to vector<64x288xbf16>
    %c2 = arith.constant 2 : index
    %c0_18 = arith.constant 0 : index
    %c0_19 = arith.constant 0 : index
    %18 = vector.load %arg2[%c2, %c0_18, %c0_19] : memref<4x288x128xbf16, #tpu.memory_space<vmem>>, vector<1x288x128xbf16>
    %19 = vector.shape_cast %18 : vector<1x288x128xbf16> to vector<288x128xbf16>
    %cst_20 = arith.constant dense<0.000000e+00> : vector<64x128xf32>
    %20 = tpu.matmul %17, %19, %cst_20 {dimension_numbers = #tpu.dot_dimension_numbers<[1], [0], [0], [1], [0, 0, 1, 1], [], []>} : vector<64x288xbf16>, vector<288x128xbf16>, vector<64x128xf32> -> vector<64x128xf32>
    %21 = arith.addf %14, %20 : vector<64x128xf32>
    %c0_21 = arith.constant 0 : index
    %c1_22 = arith.constant 1 : index
    %c1_23 = arith.constant 1 : index
    %c0_24 = arith.constant 0 : index
    %22 = vector.load %arg1[%c0_21, %c1_22, %c1_23, %c0_24] : memref<1x9x9x288xbf16, #tpu.memory_space<vmem>>, vector<1x8x8x288xbf16>
    %23 = vector.shape_cast %22 : vector<1x8x8x288xbf16> to vector<8x8x288xbf16>
    %24 = vector.shape_cast %23 : vector<8x8x288xbf16> to vector<64x288xbf16>
    %c3 = arith.constant 3 : index
    %c0_25 = arith.constant 0 : index
    %c0_26 = arith.constant 0 : index
    %25 = vector.load %arg2[%c3, %c0_25, %c0_26] : memref<4x288x128xbf16, #tpu.memory_space<vmem>>, vector<1x288x128xbf16>
    %26 = vector.shape_cast %25 : vector<1x288x128xbf16> to vector<288x128xbf16>
    %cst_27 = arith.constant dense<0.000000e+00> : vector<64x128xf32>
    %27 = tpu.matmul %24, %26, %cst_27 {dimension_numbers = #tpu.dot_dimension_numbers<[1], [0], [0], [1], [0, 0, 1, 1], [], []>} : vector<64x288xbf16>, vector<288x128xbf16>, vector<64x128xf32> -> vector<64x128xf32>
    %28 = arith.addf %21, %27 : vector<64x128xf32>
    %cst_28 = arith.constant dense<0.000000e+00> : vector<128xf32>
    %29 = vector.multi_reduction <add>, %28, %cst_28 [0] : vector<64x128xf32> to vector<128xf32>
    %30 = vector.shape_cast %29 : vector<128xf32> to vector<1x128xf32>
    %31 = vector.extract_strided_slice %30 {offsets = [0, 0], sizes = [1, 16], strides = [1, 1]} : vector<1x128xf32> to vector<1x16xf32>
    %32 = vector.extract_strided_slice %30 {offsets = [0, 16], sizes = [1, 16], strides = [1, 1]} : vector<1x128xf32> to vector<1x16xf32>
    %33 = arith.addf %31, %32 : vector<1x16xf32>
    %34 = vector.extract_strided_slice %30 {offsets = [0, 32], sizes = [1, 16], strides = [1, 1]} : vector<1x128xf32> to vector<1x16xf32>
    %35 = arith.addf %33, %34 : vector<1x16xf32>
    %36 = vector.extract_strided_slice %30 {offsets = [0, 48], sizes = [1, 16], strides = [1, 1]} : vector<1x128xf32> to vector<1x16xf32>
    %37 = arith.addf %35, %36 : vector<1x16xf32>
    %38 = vector.extract_strided_slice %30 {offsets = [0, 64], sizes = [1, 16], strides = [1, 1]} : vector<1x128xf32> to vector<1x16xf32>
    %39 = arith.addf %37, %38 : vector<1x16xf32>
    %40 = vector.extract_strided_slice %30 {offsets = [0, 80], sizes = [1, 16], strides = [1, 1]} : vector<1x128xf32> to vector<1x16xf32>
    %41 = arith.addf %39, %40 : vector<1x16xf32>
    %42 = vector.extract_strided_slice %30 {offsets = [0, 96], sizes = [1, 16], strides = [1, 1]} : vector<1x128xf32> to vector<1x16xf32>
    %43 = arith.addf %41, %42 : vector<1x16xf32>
    %44 = vector.extract_strided_slice %30 {offsets = [0, 112], sizes = [1, 16], strides = [1, 1]} : vector<1x128xf32> to vector<1x16xf32>
    %45 = arith.addf %43, %44 : vector<1x16xf32>
    %cst_29 = arith.constant 5.120000e+02 : f32
    %46 = vector.broadcast %cst_29 : f32 to vector<1x16xf32>
    %47 = arith.divf %45, %46 : vector<1x16xf32>
    %48 = tpu.concatenate %47, %47, %47, %47, %47, %47, %47, %47 in 1 : vector<1x16xf32>, vector<1x16xf32>, vector<1x16xf32>, vector<1x16xf32>, vector<1x16xf32>, vector<1x16xf32>, vector<1x16xf32>, vector<1x16xf32> -> vector<1x128xf32>
    %49 = vector.broadcast %48 : vector<1x128xf32> to vector<64x128xf32>
    %50 = arith.subf %28, %49 : vector<64x128xf32>
    %51 = arith.mulf %50, %50 : vector<64x128xf32>
    %cst_30 = arith.constant dense<0.000000e+00> : vector<128xf32>
    %52 = vector.multi_reduction <add>, %51, %cst_30 [0] : vector<64x128xf32> to vector<128xf32>
    %53 = vector.shape_cast %52 : vector<128xf32> to vector<1x128xf32>
    %54 = vector.extract_strided_slice %53 {offsets = [0, 0], sizes = [1, 16], strides = [1, 1]} : vector<1x128xf32> to vector<1x16xf32>
    %55 = vector.extract_strided_slice %53 {offsets = [0, 16], sizes = [1, 16], strides = [1, 1]} : vector<1x128xf32> to vector<1x16xf32>
    %56 = arith.addf %54, %55 : vector<1x16xf32>
    %57 = vector.extract_strided_slice %53 {offsets = [0, 32], sizes = [1, 16], strides = [1, 1]} : vector<1x128xf32> to vector<1x16xf32>
    %58 = arith.addf %56, %57 : vector<1x16xf32>
    %59 = vector.extract_strided_slice %53 {offsets = [0, 48], sizes = [1, 16], strides = [1, 1]} : vector<1x128xf32> to vector<1x16xf32>
    %60 = arith.addf %58, %59 : vector<1x16xf32>
    %61 = vector.extract_strided_slice %53 {offsets = [0, 64], sizes = [1, 16], strides = [1, 1]} : vector<1x128xf32> to vector<1x16xf32>
    %62 = arith.addf %60, %61 : vector<1x16xf32>
    %63 = vector.extract_strided_slice %53 {offsets = [0, 80], sizes = [1, 16], strides = [1, 1]} : vector<1x128xf32> to vector<1x16xf32>
    %64 = arith.addf %62, %63 : vector<1x16xf32>
    %65 = vector.extract_strided_slice %53 {offsets = [0, 96], sizes = [1, 16], strides = [1, 1]} : vector<1x128xf32> to vector<1x16xf32>
    %66 = arith.addf %64, %65 : vector<1x16xf32>
    %67 = vector.extract_strided_slice %53 {offsets = [0, 112], sizes = [1, 16], strides = [1, 1]} : vector<1x128xf32> to vector<1x16xf32>
    %68 = arith.addf %66, %67 : vector<1x16xf32>
    %cst_31 = arith.constant 5.120000e+02 : f32
    %69 = vector.broadcast %cst_31 : f32 to vector<1x16xf32>
    %70 = arith.divf %68, %69 : vector<1x16xf32>
    %c0_32 = arith.constant 0 : index
    %c0_33 = arith.constant 0 : index
    %71 = vector.load %arg3[%c0_32, %c0_33] : memref<1x16xf32, #tpu.memory_space<vmem>>, vector<1x16xf32>
    %cst_34 = arith.constant 9.99999974E-6 : f32
    %72 = vector.broadcast %cst_34 : f32 to vector<1x16xf32>
    %73 = arith.addf %70, %72 : vector<1x16xf32>
    %74 = math.rsqrt %73 : vector<1x16xf32>
    %75 = arith.mulf %71, %74 : vector<1x16xf32>
    %76 = tpu.concatenate %75, %75, %75, %75, %75, %75, %75, %75 in 1 : vector<1x16xf32>, vector<1x16xf32>, vector<1x16xf32>, vector<1x16xf32>, vector<1x16xf32>, vector<1x16xf32>, vector<1x16xf32>, vector<1x16xf32> -> vector<1x128xf32>
    %77 = vector.broadcast %76 : vector<1x128xf32> to vector<64x128xf32>
    %78 = arith.mulf %50, %77 : vector<64x128xf32>
    %c0_35 = arith.constant 0 : index
    %c0_36 = arith.constant 0 : index
    %79 = vector.load %arg4[%c0_35, %c0_36] : memref<1x16xf32, #tpu.memory_space<vmem>>, vector<1x16xf32>
    %80 = tpu.concatenate %79, %79, %79, %79, %79, %79, %79, %79 in 1 : vector<1x16xf32>, vector<1x16xf32>, vector<1x16xf32>, vector<1x16xf32>, vector<1x16xf32>, vector<1x16xf32>, vector<1x16xf32>, vector<1x16xf32> -> vector<1x128xf32>
    %81 = vector.broadcast %80 : vector<1x128xf32> to vector<64x128xf32>
    %82 = arith.addf %78, %81 : vector<64x128xf32>
    %cst_37 = arith.constant 0.000000e+00 : f32
    %83 = vector.broadcast %cst_37 : f32 to vector<64x128xf32>
    %84 = arith.maximumf %82, %83 : vector<64x128xf32>
    %85 = vector.shape_cast %84 : vector<64x128xf32> to vector<1x8x8x128xf32>
    %86 = arith.truncf %85 : vector<1x8x8x128xf32> to vector<1x8x8x128xbf16>
    %c0_38 = arith.constant 0 : index
    %c0_39 = arith.constant 0 : index
    %c0_40 = arith.constant 0 : index
    %c0_41 = arith.constant 0 : index
    %87 = vector.load %arg5[%c0_38, %c0_39, %c0_40, %c0_41] : memref<1x8x8x128xbf16, #tpu.memory_space<vmem>>, vector<1x8x8x128xbf16>
    tpu.vector_store %arg5[%c0_38, %c0_39, %c0_40, %c0_41], %86 {strides = array<i32>} : memref<1x8x8x128xbf16, #tpu.memory_space<vmem>>, vector<1x8x8x128xbf16>,
    return
  }
  func.func @transform_0(%arg0: i32) -> (i32, i32, i32, i32) {
    %c0_i32 = arith.constant 0 : i32
    %c0_i32_0 = arith.constant 0 : i32
    %c0_i32_1 = arith.constant 0 : i32
    %c0_i32_2 = arith.constant 0 : i32
    return %arg0, %c0_i32, %c0_i32_0, %c0_i32_1 : i32, i32, i32, i32
  }
  func.func @transform_1(%arg0: i32) -> (i32, i32, i32) {
    %c0_i32 = arith.constant 0 : i32
    %c0_i32_0 = arith.constant 0 : i32
    %c0_i32_1 = arith.constant 0 : i32
    %c0_i32_2 = arith.constant 0 : i32
    return %c0_i32, %c0_i32_0, %c0_i32_1 : i32, i32, i32
  }
  func.func @transform_2(%arg0: i32) -> (i32, i32) {
    %c0_i32 = arith.constant 0 : i32
    %c0_i32_0 = arith.constant 0 : i32
    %c0_i32_1 = arith.constant 0 : i32
    return %c0_i32, %c0_i32_0 : i32, i32
  }
  func.func @transform_3(%arg0: i32) -> (i32, i32) {
    %c0_i32 = arith.constant 0 : i32
    %c0_i32_0 = arith.constant 0 : i32
    %c0_i32_1 = arith.constant 0 : i32
    return %c0_i32, %c0_i32_0 : i32, i32
  }
  func.func @transform_4(%arg0: i32) -> (i32, i32, i32, i32) {
    %c0_i32 = arith.constant 0 : i32
    %c0_i32_0 = arith.constant 0 : i32
    %c0_i32_1 = arith.constant 0 : i32
    %c0_i32_2 = arith.constant 0 : i32
    return %arg0, %c0_i32, %c0_i32_0, %c0_i32_1 : i32, i32, i32, i32
  }
}

module attributes {stable_mosaic.version = 11 : i64} {
  func.func @_fused_conv_in_relu_kernel(%arg0: i32, %arg1: memref<1x8x8x128xbf16, #tpu.memory_space<vmem>>, %arg2: memref<9x160x128xbf16, #tpu.memory_space<vmem>>, %arg3: memref<1x16xf32, #tpu.memory_space<vmem>>, %arg4: memref<1x16xf32, #tpu.memory_space<vmem>>, %arg5: memref<1x8x8x128xf32, #tpu.memory_space<vmem>>, %arg6: memref<10x10x160xbf16, #tpu.memory_space<vmem>>) attributes {dimension_semantics = [#tpu.dimension_semantics<parallel>], iteration_bounds = array<i64: 2>, scalar_prefetch = 0 : i64, scratch_operands = 1 : i64, tpu.core_type = #tpu.core_type<tc>, window_params = [{transform_indices = @transform_0, window_bounds = array<i64: 1, 8, 8, 128>}, {pipeline_mode = #tpu.pipeline_mode<synchronous>, transform_indices = @transform_1, window_bounds = array<i64: 9, 160, 128>}, {pipeline_mode = #tpu.pipeline_mode<synchronous>, transform_indices = @transform_2, window_bounds = array<i64: 1, 16>}, {pipeline_mode = #tpu.pipeline_mode<synchronous>, transform_indices = @transform_3, window_bounds = array<i64: 1, 16>}, {transform_indices = @transform_4, window_bounds = array<i64: 1, 8, 8, 128>}]} {
    %cst = arith.constant 0.000000e+00 : bf16
    %0 = vector.broadcast %cst : bf16 to vector<10x10x160xbf16>
    %c0 = arith.constant 0 : index
    %c0_0 = arith.constant 0 : index
    %c0_1 = arith.constant 0 : index
    %1 = vector.load %arg6[%c0, %c0_0, %c0_1] : memref<10x10x160xbf16, #tpu.memory_space<vmem>>, vector<10x10x160xbf16>
    tpu.vector_store %arg6[%c0, %c0_0, %c0_1], %0 {strides = array<i32>} : memref<10x10x160xbf16, #tpu.memory_space<vmem>>, vector<10x10x160xbf16>,
    %c0_2 = arith.constant 0 : index
    %c0_3 = arith.constant 0 : index
    %c0_4 = arith.constant 0 : index
    %c0_5 = arith.constant 0 : index
    %2 = vector.load %arg1[%c0_2, %c0_3, %c0_4, %c0_5] : memref<1x8x8x128xbf16, #tpu.memory_space<vmem>>, vector<1x8x8x128xbf16>
    %3 = vector.shape_cast %2 : vector<1x8x8x128xbf16> to vector<8x8x128xbf16>
    %c1 = arith.constant 1 : index
    %c1_6 = arith.constant 1 : index
    %c16 = arith.constant 16 : index
    %4 = vector.load %arg6[%c1, %c1_6, %c16] : memref<10x10x160xbf16, #tpu.memory_space<vmem>>, vector<8x8x128xbf16>
    tpu.vector_store %arg6[%c1, %c1_6, %c16], %3 {strides = array<i32>} : memref<10x10x160xbf16, #tpu.memory_space<vmem>>, vector<8x8x128xbf16>,
    %cst_7 = arith.constant 0.000000e+00 : f32
    %5 = vector.broadcast %cst_7 : f32 to vector<64x128xf32>
    %c0_8 = arith.constant 0 : index
    %c0_9 = arith.constant 0 : index
    %c0_10 = arith.constant 0 : index
    %6 = vector.load %arg6[%c0_8, %c0_9, %c0_10] : memref<10x10x160xbf16, #tpu.memory_space<vmem>>, vector<8x8x160xbf16>
    %7 = vector.shape_cast %6 : vector<8x8x160xbf16> to vector<64x160xbf16>
    %c0_11 = arith.constant 0 : index
    %c0_12 = arith.constant 0 : index
    %c0_13 = arith.constant 0 : index
    %8 = vector.load %arg2[%c0_11, %c0_12, %c0_13] : memref<9x160x128xbf16, #tpu.memory_space<vmem>>, vector<1x160x128xbf16>
    %9 = vector.shape_cast %8 : vector<1x160x128xbf16> to vector<160x128xbf16>
    %cst_14 = arith.constant dense<0.000000e+00> : vector<64x128xf32>
    %10 = tpu.matmul %7, %9, %cst_14 {dimension_numbers = #tpu.dot_dimension_numbers<[1], [0], [0], [1], [0, 0, 1, 1], [], []>} : vector<64x160xbf16>, vector<160x128xbf16>, vector<64x128xf32> -> vector<64x128xf32>
    %11 = arith.addf %5, %10 : vector<64x128xf32>
    %c0_15 = arith.constant 0 : index
    %c1_16 = arith.constant 1 : index
    %c0_17 = arith.constant 0 : index
    %12 = vector.load %arg6[%c0_15, %c1_16, %c0_17] : memref<10x10x160xbf16, #tpu.memory_space<vmem>>, vector<8x8x160xbf16>
    %13 = vector.shape_cast %12 : vector<8x8x160xbf16> to vector<64x160xbf16>
    %c1_18 = arith.constant 1 : index
    %c0_19 = arith.constant 0 : index
    %c0_20 = arith.constant 0 : index
    %14 = vector.load %arg2[%c1_18, %c0_19, %c0_20] : memref<9x160x128xbf16, #tpu.memory_space<vmem>>, vector<1x160x128xbf16>
    %15 = vector.shape_cast %14 : vector<1x160x128xbf16> to vector<160x128xbf16>
    %cst_21 = arith.constant dense<0.000000e+00> : vector<64x128xf32>
    %16 = tpu.matmul %13, %15, %cst_21 {dimension_numbers = #tpu.dot_dimension_numbers<[1], [0], [0], [1], [0, 0, 1, 1], [], []>} : vector<64x160xbf16>, vector<160x128xbf16>, vector<64x128xf32> -> vector<64x128xf32>
    %17 = arith.addf %11, %16 : vector<64x128xf32>
    %c0_22 = arith.constant 0 : index
    %c2 = arith.constant 2 : index
    %c0_23 = arith.constant 0 : index
    %18 = vector.load %arg6[%c0_22, %c2, %c0_23] : memref<10x10x160xbf16, #tpu.memory_space<vmem>>, vector<8x8x160xbf16>
    %19 = vector.shape_cast %18 : vector<8x8x160xbf16> to vector<64x160xbf16>
    %c2_24 = arith.constant 2 : index
    %c0_25 = arith.constant 0 : index
    %c0_26 = arith.constant 0 : index
    %20 = vector.load %arg2[%c2_24, %c0_25, %c0_26] : memref<9x160x128xbf16, #tpu.memory_space<vmem>>, vector<1x160x128xbf16>
    %21 = vector.shape_cast %20 : vector<1x160x128xbf16> to vector<160x128xbf16>
    %cst_27 = arith.constant dense<0.000000e+00> : vector<64x128xf32>
    %22 = tpu.matmul %19, %21, %cst_27 {dimension_numbers = #tpu.dot_dimension_numbers<[1], [0], [0], [1], [0, 0, 1, 1], [], []>} : vector<64x160xbf16>, vector<160x128xbf16>, vector<64x128xf32> -> vector<64x128xf32>
    %23 = arith.addf %17, %22 : vector<64x128xf32>
    %c1_28 = arith.constant 1 : index
    %c0_29 = arith.constant 0 : index
    %c0_30 = arith.constant 0 : index
    %24 = vector.load %arg6[%c1_28, %c0_29, %c0_30] : memref<10x10x160xbf16, #tpu.memory_space<vmem>>, vector<8x8x160xbf16>
    %25 = vector.shape_cast %24 : vector<8x8x160xbf16> to vector<64x160xbf16>
    %c3 = arith.constant 3 : index
    %c0_31 = arith.constant 0 : index
    %c0_32 = arith.constant 0 : index
    %26 = vector.load %arg2[%c3, %c0_31, %c0_32] : memref<9x160x128xbf16, #tpu.memory_space<vmem>>, vector<1x160x128xbf16>
    %27 = vector.shape_cast %26 : vector<1x160x128xbf16> to vector<160x128xbf16>
    %cst_33 = arith.constant dense<0.000000e+00> : vector<64x128xf32>
    %28 = tpu.matmul %25, %27, %cst_33 {dimension_numbers = #tpu.dot_dimension_numbers<[1], [0], [0], [1], [0, 0, 1, 1], [], []>} : vector<64x160xbf16>, vector<160x128xbf16>, vector<64x128xf32> -> vector<64x128xf32>
    %29 = arith.addf %23, %28 : vector<64x128xf32>
    %c1_34 = arith.constant 1 : index
    %c1_35 = arith.constant 1 : index
    %c0_36 = arith.constant 0 : index
    %30 = vector.load %arg6[%c1_34, %c1_35, %c0_36] : memref<10x10x160xbf16, #tpu.memory_space<vmem>>, vector<8x8x160xbf16>
    %31 = vector.shape_cast %30 : vector<8x8x160xbf16> to vector<64x160xbf16>
    %c4 = arith.constant 4 : index
    %c0_37 = arith.constant 0 : index
    %c0_38 = arith.constant 0 : index
    %32 = vector.load %arg2[%c4, %c0_37, %c0_38] : memref<9x160x128xbf16, #tpu.memory_space<vmem>>, vector<1x160x128xbf16>
    %33 = vector.shape_cast %32 : vector<1x160x128xbf16> to vector<160x128xbf16>
    %cst_39 = arith.constant dense<0.000000e+00> : vector<64x128xf32>
    %34 = tpu.matmul %31, %33, %cst_39 {dimension_numbers = #tpu.dot_dimension_numbers<[1], [0], [0], [1], [0, 0, 1, 1], [], []>} : vector<64x160xbf16>, vector<160x128xbf16>, vector<64x128xf32> -> vector<64x128xf32>
    %35 = arith.addf %29, %34 : vector<64x128xf32>
    %c1_40 = arith.constant 1 : index
    %c2_41 = arith.constant 2 : index
    %c0_42 = arith.constant 0 : index
    %36 = vector.load %arg6[%c1_40, %c2_41, %c0_42] : memref<10x10x160xbf16, #tpu.memory_space<vmem>>, vector<8x8x160xbf16>
    %37 = vector.shape_cast %36 : vector<8x8x160xbf16> to vector<64x160xbf16>
    %c5 = arith.constant 5 : index
    %c0_43 = arith.constant 0 : index
    %c0_44 = arith.constant 0 : index
    %38 = vector.load %arg2[%c5, %c0_43, %c0_44] : memref<9x160x128xbf16, #tpu.memory_space<vmem>>, vector<1x160x128xbf16>
    %39 = vector.shape_cast %38 : vector<1x160x128xbf16> to vector<160x128xbf16>
    %cst_45 = arith.constant dense<0.000000e+00> : vector<64x128xf32>
    %40 = tpu.matmul %37, %39, %cst_45 {dimension_numbers = #tpu.dot_dimension_numbers<[1], [0], [0], [1], [0, 0, 1, 1], [], []>} : vector<64x160xbf16>, vector<160x128xbf16>, vector<64x128xf32> -> vector<64x128xf32>
    %41 = arith.addf %35, %40 : vector<64x128xf32>
    %c2_46 = arith.constant 2 : index
    %c0_47 = arith.constant 0 : index
    %c0_48 = arith.constant 0 : index
    %42 = vector.load %arg6[%c2_46, %c0_47, %c0_48] : memref<10x10x160xbf16, #tpu.memory_space<vmem>>, vector<8x8x160xbf16>
    %43 = vector.shape_cast %42 : vector<8x8x160xbf16> to vector<64x160xbf16>
    %c6 = arith.constant 6 : index
    %c0_49 = arith.constant 0 : index
    %c0_50 = arith.constant 0 : index
    %44 = vector.load %arg2[%c6, %c0_49, %c0_50] : memref<9x160x128xbf16, #tpu.memory_space<vmem>>, vector<1x160x128xbf16>
    %45 = vector.shape_cast %44 : vector<1x160x128xbf16> to vector<160x128xbf16>
    %cst_51 = arith.constant dense<0.000000e+00> : vector<64x128xf32>
    %46 = tpu.matmul %43, %45, %cst_51 {dimension_numbers = #tpu.dot_dimension_numbers<[1], [0], [0], [1], [0, 0, 1, 1], [], []>} : vector<64x160xbf16>, vector<160x128xbf16>, vector<64x128xf32> -> vector<64x128xf32>
    %47 = arith.addf %41, %46 : vector<64x128xf32>
    %c2_52 = arith.constant 2 : index
    %c1_53 = arith.constant 1 : index
    %c0_54 = arith.constant 0 : index
    %48 = vector.load %arg6[%c2_52, %c1_53, %c0_54] : memref<10x10x160xbf16, #tpu.memory_space<vmem>>, vector<8x8x160xbf16>
    %49 = vector.shape_cast %48 : vector<8x8x160xbf16> to vector<64x160xbf16>
    %c7 = arith.constant 7 : index
    %c0_55 = arith.constant 0 : index
    %c0_56 = arith.constant 0 : index
    %50 = vector.load %arg2[%c7, %c0_55, %c0_56] : memref<9x160x128xbf16, #tpu.memory_space<vmem>>, vector<1x160x128xbf16>
    %51 = vector.shape_cast %50 : vector<1x160x128xbf16> to vector<160x128xbf16>
    %cst_57 = arith.constant dense<0.000000e+00> : vector<64x128xf32>
    %52 = tpu.matmul %49, %51, %cst_57 {dimension_numbers = #tpu.dot_dimension_numbers<[1], [0], [0], [1], [0, 0, 1, 1], [], []>} : vector<64x160xbf16>, vector<160x128xbf16>, vector<64x128xf32> -> vector<64x128xf32>
    %53 = arith.addf %47, %52 : vector<64x128xf32>
    %c2_58 = arith.constant 2 : index
    %c2_59 = arith.constant 2 : index
    %c0_60 = arith.constant 0 : index
    %54 = vector.load %arg6[%c2_58, %c2_59, %c0_60] : memref<10x10x160xbf16, #tpu.memory_space<vmem>>, vector<8x8x160xbf16>
    %55 = vector.shape_cast %54 : vector<8x8x160xbf16> to vector<64x160xbf16>
    %c8 = arith.constant 8 : index
    %c0_61 = arith.constant 0 : index
    %c0_62 = arith.constant 0 : index
    %56 = vector.load %arg2[%c8, %c0_61, %c0_62] : memref<9x160x128xbf16, #tpu.memory_space<vmem>>, vector<1x160x128xbf16>
    %57 = vector.shape_cast %56 : vector<1x160x128xbf16> to vector<160x128xbf16>
    %cst_63 = arith.constant dense<0.000000e+00> : vector<64x128xf32>
    %58 = tpu.matmul %55, %57, %cst_63 {dimension_numbers = #tpu.dot_dimension_numbers<[1], [0], [0], [1], [0, 0, 1, 1], [], []>} : vector<64x160xbf16>, vector<160x128xbf16>, vector<64x128xf32> -> vector<64x128xf32>
    %59 = arith.addf %53, %58 : vector<64x128xf32>
    %cst_64 = arith.constant dense<0.000000e+00> : vector<128xf32>
    %60 = vector.multi_reduction <add>, %59, %cst_64 [0] : vector<64x128xf32> to vector<128xf32>
    %61 = vector.shape_cast %60 : vector<128xf32> to vector<1x128xf32>
    %62 = vector.extract_strided_slice %61 {offsets = [0, 0], sizes = [1, 16], strides = [1, 1]} : vector<1x128xf32> to vector<1x16xf32>
    %63 = vector.extract_strided_slice %61 {offsets = [0, 16], sizes = [1, 16], strides = [1, 1]} : vector<1x128xf32> to vector<1x16xf32>
    %64 = arith.addf %62, %63 : vector<1x16xf32>
    %65 = vector.extract_strided_slice %61 {offsets = [0, 32], sizes = [1, 16], strides = [1, 1]} : vector<1x128xf32> to vector<1x16xf32>
    %66 = arith.addf %64, %65 : vector<1x16xf32>
    %67 = vector.extract_strided_slice %61 {offsets = [0, 48], sizes = [1, 16], strides = [1, 1]} : vector<1x128xf32> to vector<1x16xf32>
    %68 = arith.addf %66, %67 : vector<1x16xf32>
    %69 = vector.extract_strided_slice %61 {offsets = [0, 64], sizes = [1, 16], strides = [1, 1]} : vector<1x128xf32> to vector<1x16xf32>
    %70 = arith.addf %68, %69 : vector<1x16xf32>
    %71 = vector.extract_strided_slice %61 {offsets = [0, 80], sizes = [1, 16], strides = [1, 1]} : vector<1x128xf32> to vector<1x16xf32>
    %72 = arith.addf %70, %71 : vector<1x16xf32>
    %73 = vector.extract_strided_slice %61 {offsets = [0, 96], sizes = [1, 16], strides = [1, 1]} : vector<1x128xf32> to vector<1x16xf32>
    %74 = arith.addf %72, %73 : vector<1x16xf32>
    %75 = vector.extract_strided_slice %61 {offsets = [0, 112], sizes = [1, 16], strides = [1, 1]} : vector<1x128xf32> to vector<1x16xf32>
    %76 = arith.addf %74, %75 : vector<1x16xf32>
    %cst_65 = arith.constant 5.120000e+02 : f32
    %77 = vector.broadcast %cst_65 : f32 to vector<1x16xf32>
    %78 = arith.divf %76, %77 : vector<1x16xf32>
    %79 = tpu.concatenate %78, %78, %78, %78, %78, %78, %78, %78 in 1 : vector<1x16xf32>, vector<1x16xf32>, vector<1x16xf32>, vector<1x16xf32>, vector<1x16xf32>, vector<1x16xf32>, vector<1x16xf32>, vector<1x16xf32> -> vector<1x128xf32>
    %80 = vector.broadcast %79 : vector<1x128xf32> to vector<64x128xf32>
    %81 = arith.subf %59, %80 : vector<64x128xf32>
    %82 = arith.mulf %81, %81 : vector<64x128xf32>
    %cst_66 = arith.constant dense<0.000000e+00> : vector<128xf32>
    %83 = vector.multi_reduction <add>, %82, %cst_66 [0] : vector<64x128xf32> to vector<128xf32>
    %84 = vector.shape_cast %83 : vector<128xf32> to vector<1x128xf32>
    %85 = vector.extract_strided_slice %84 {offsets = [0, 0], sizes = [1, 16], strides = [1, 1]} : vector<1x128xf32> to vector<1x16xf32>
    %86 = vector.extract_strided_slice %84 {offsets = [0, 16], sizes = [1, 16], strides = [1, 1]} : vector<1x128xf32> to vector<1x16xf32>
    %87 = arith.addf %85, %86 : vector<1x16xf32>
    %88 = vector.extract_strided_slice %84 {offsets = [0, 32], sizes = [1, 16], strides = [1, 1]} : vector<1x128xf32> to vector<1x16xf32>
    %89 = arith.addf %87, %88 : vector<1x16xf32>
    %90 = vector.extract_strided_slice %84 {offsets = [0, 48], sizes = [1, 16], strides = [1, 1]} : vector<1x128xf32> to vector<1x16xf32>
    %91 = arith.addf %89, %90 : vector<1x16xf32>
    %92 = vector.extract_strided_slice %84 {offsets = [0, 64], sizes = [1, 16], strides = [1, 1]} : vector<1x128xf32> to vector<1x16xf32>
    %93 = arith.addf %91, %92 : vector<1x16xf32>
    %94 = vector.extract_strided_slice %84 {offsets = [0, 80], sizes = [1, 16], strides = [1, 1]} : vector<1x128xf32> to vector<1x16xf32>
    %95 = arith.addf %93, %94 : vector<1x16xf32>
    %96 = vector.extract_strided_slice %84 {offsets = [0, 96], sizes = [1, 16], strides = [1, 1]} : vector<1x128xf32> to vector<1x16xf32>
    %97 = arith.addf %95, %96 : vector<1x16xf32>
    %98 = vector.extract_strided_slice %84 {offsets = [0, 112], sizes = [1, 16], strides = [1, 1]} : vector<1x128xf32> to vector<1x16xf32>
    %99 = arith.addf %97, %98 : vector<1x16xf32>
    %cst_67 = arith.constant 5.120000e+02 : f32
    %100 = vector.broadcast %cst_67 : f32 to vector<1x16xf32>
    %101 = arith.divf %99, %100 : vector<1x16xf32>
    %c0_68 = arith.constant 0 : index
    %c0_69 = arith.constant 0 : index
    %102 = vector.load %arg3[%c0_68, %c0_69] : memref<1x16xf32, #tpu.memory_space<vmem>>, vector<1x16xf32>
    %cst_70 = arith.constant 9.99999974E-6 : f32
    %103 = vector.broadcast %cst_70 : f32 to vector<1x16xf32>
    %104 = arith.addf %101, %103 : vector<1x16xf32>
    %105 = math.rsqrt %104 : vector<1x16xf32>
    %106 = arith.mulf %102, %105 : vector<1x16xf32>
    %107 = tpu.concatenate %106, %106, %106, %106, %106, %106, %106, %106 in 1 : vector<1x16xf32>, vector<1x16xf32>, vector<1x16xf32>, vector<1x16xf32>, vector<1x16xf32>, vector<1x16xf32>, vector<1x16xf32>, vector<1x16xf32> -> vector<1x128xf32>
    %108 = vector.broadcast %107 : vector<1x128xf32> to vector<64x128xf32>
    %109 = arith.mulf %81, %108 : vector<64x128xf32>
    %c0_71 = arith.constant 0 : index
    %c0_72 = arith.constant 0 : index
    %110 = vector.load %arg4[%c0_71, %c0_72] : memref<1x16xf32, #tpu.memory_space<vmem>>, vector<1x16xf32>
    %111 = tpu.concatenate %110, %110, %110, %110, %110, %110, %110, %110 in 1 : vector<1x16xf32>, vector<1x16xf32>, vector<1x16xf32>, vector<1x16xf32>, vector<1x16xf32>, vector<1x16xf32>, vector<1x16xf32>, vector<1x16xf32> -> vector<1x128xf32>
    %112 = vector.broadcast %111 : vector<1x128xf32> to vector<64x128xf32>
    %113 = arith.addf %109, %112 : vector<64x128xf32>
    %cst_73 = arith.constant 0.000000e+00 : f32
    %114 = vector.broadcast %cst_73 : f32 to vector<64x128xf32>
    %115 = arith.maximumf %113, %114 : vector<64x128xf32>
    %116 = vector.shape_cast %115 : vector<64x128xf32> to vector<1x8x8x128xf32>
    %c0_74 = arith.constant 0 : index
    %c0_75 = arith.constant 0 : index
    %c0_76 = arith.constant 0 : index
    %c0_77 = arith.constant 0 : index
    %117 = vector.load %arg5[%c0_74, %c0_75, %c0_76, %c0_77] : memref<1x8x8x128xf32, #tpu.memory_space<vmem>>, vector<1x8x8x128xf32>
    tpu.vector_store %arg5[%c0_74, %c0_75, %c0_76, %c0_77], %116 {strides = array<i32>} : memref<1x8x8x128xf32, #tpu.memory_space<vmem>>, vector<1x8x8x128xf32>,
    return
  }
  func.func @transform_0(%arg0: i32) -> (i32, i32, i32, i32) {
    %c0_i32 = arith.constant 0 : i32
    %c0_i32_0 = arith.constant 0 : i32
    %c0_i32_1 = arith.constant 0 : i32
    %c0_i32_2 = arith.constant 0 : i32
    return %arg0, %c0_i32, %c0_i32_0, %c0_i32_1 : i32, i32, i32, i32
  }
  func.func @transform_1(%arg0: i32) -> (i32, i32, i32) {
    %c0_i32 = arith.constant 0 : i32
    %c0_i32_0 = arith.constant 0 : i32
    %c0_i32_1 = arith.constant 0 : i32
    %c0_i32_2 = arith.constant 0 : i32
    return %c0_i32, %c0_i32_0, %c0_i32_1 : i32, i32, i32
  }
  func.func @transform_2(%arg0: i32) -> (i32, i32) {
    %c0_i32 = arith.constant 0 : i32
    %c0_i32_0 = arith.constant 0 : i32
    %c0_i32_1 = arith.constant 0 : i32
    return %c0_i32, %c0_i32_0 : i32, i32
  }
  func.func @transform_3(%arg0: i32) -> (i32, i32) {
    %c0_i32 = arith.constant 0 : i32
    %c0_i32_0 = arith.constant 0 : i32
    %c0_i32_1 = arith.constant 0 : i32
    return %c0_i32, %c0_i32_0 : i32, i32
  }
  func.func @transform_4(%arg0: i32) -> (i32, i32, i32, i32) {
    %c0_i32 = arith.constant 0 : i32
    %c0_i32_0 = arith.constant 0 : i32
    %c0_i32_1 = arith.constant 0 : i32
    %c0_i32_2 = arith.constant 0 : i32
    return %arg0, %c0_i32, %c0_i32_0, %c0_i32_1 : i32, i32, i32, i32
  }
}

</mosaic_0001>

<llo_original>
// kernel: encoder_cnn_block_apply.2
$region0: #{encoder_cnn_block_apply.2}
  #allocation0 [shape = 'u32[]', space=smem, size = 0x4, offset = 0x4, fixed_abs, tag = 'smem constant byte address 0x4 - core index']
  #allocation1 [shape = 'u32[144,128]{1,0:T(1,128)}', space=vmem, size = 0x12000, scoped, tag = 'internal scratch']
  %s0 = inlined_call_operand.vmem [shape: bf16[2,9,9,288], index: 0, kind: input, shape index: {}]
  %s1 = inlined_call_operand.vmem [shape: bf16[4,288,128], index: 1, kind: input, shape index: {}]
  %s2 = inlined_call_operand.vmem [shape: f32[1,16], index: 2, kind: input, shape index: {}]
  %s3 = inlined_call_operand.vmem [shape: f32[1,16], index: 3, kind: input, shape index: {}]
  %s4 = inlined_call_operand.vmem [shape: bf16[2,8,8,128], index: 4, kind: output, shape index: {}]
  %s5 = sld [smem:[#allocation0]]
  $region49: #{encoder_cnn_block_apply.2} parent=0
    _
  %s7 = ssub.s32 1, %s5
  %s8 = scalar_select 0, %s7, %s5
  loop: start=0, step=1, limit=4
  $region2: #{encoder_cnn_block_apply.2} parent=0 // loop_pre_header
    _
  $region3: #{encoder_cnn_block_apply.2} parent=0 // loop_header
    %s10 = sphi 0, %s14
    %p11 = scmp.ge.s32.totalorder %s10, 4
    %s20 = sphi 0, %s22
    %s23 = sphi 0, %s20
    %s24 = sphi 0, %s23
    %s40 = sphi 0, %s24
    %s44 = sphi 0, %s44
    %s46 = sphi 0, %s44
    %s47 = sphi 0, %s46
    %s61 = sphi 0, %s47
    %s65 = sphi 0, %s65
    %s67 = sphi 0, %s65
    %s68 = sphi 0, %s67
    %s82 = sphi 0, %s68
    %s86 = sphi 0, %s86
    %s88 = sphi 0, %s86
    %s89 = sphi 0, %s88
    %s103 = sphi 0, %s89
    %s109 = sphi 0, %s111
    %s112 = sphi 0, %s109
    %s113 = sphi 0, %s112
    %s129 = sphi 0, %s113
  $region4: #{encoder_cnn_block_apply.2} parent=0 // loop_header_branch
    %13 = sbr.rel (%p11) target = $region8
  $region5: #{encoder_cnn_block_apply.2} parent=0 // loop_body
    %s15 = ssub.s32 %s10, 1
    %s16 = ssub.s32 %s10, 2
    %s17 = sadd.s32 %s10, 1
    %s18 = ssub.s32 %s10, %s17
    %p19 = scmp.eq.s32.totalorder %s18, 0
    %s21 = sadd.s32 %s20, 1
    %s22 = scalar_select %p19, %s20, %s21
    %p25 = pneg %p19
    %p26 = scmp.eq.s32.totalorder %s10, 1
    %p27 = por %p25, %p26
    %p28 = scmp.ne.s32.totalorder %s20, %s23
    %p29 = scmp.eq.s32.totalorder %s10, 0
    %p30 = por %p28, %p29
    %p31 = scmp.ne.s32.totalorder %s20, %s23
    %p32 = scmp.eq.s32.totalorder %s15, 1
    %p33 = por %p31, %p32
    %p34 = scmp.ne.s32.totalorder %s23, %s24
    %p35 = scmp.eq.s32.totalorder %s15, 0
    %p36 = por %p34, %p35
    %p37 = scmp.ne.s32.totalorder %s23, %s24
    %p38 = scmp.eq.s32.totalorder %s16, 1
    %p39 = por %p37, %p38
    %p41 = scmp.ne.s32.totalorder %s24, %s40
    %p42 = scmp.eq.s32.totalorder %s16, 0
    %p43 = por %p41, %p42
    %s45 = sadd.s32 %s44, 1
    %p48 = scmp.eq.s32.totalorder %s10, 1
    %p49 = scmp.ne.s32.totalorder %s44, %s46
    %p50 = scmp.eq.s32.totalorder %s10, 0
    %p51 = por %p49, %p50
    %p52 = scmp.ne.s32.totalorder %s44, %s46
    %p53 = scmp.eq.s32.totalorder %s15, 1
    %p54 = por %p52, %p53
    %p55 = scmp.ne.s32.totalorder %s46, %s47
    %p56 = scmp.eq.s32.totalorder %s15, 0
    %p57 = por %p55, %p56
    %p58 = scmp.ne.s32.totalorder %s46, %s47
    %p59 = scmp.eq.s32.totalorder %s16, 1
    %p60 = por %p58, %p59
    %p62 = scmp.ne.s32.totalorder %s47, %s61
    %p63 = scmp.eq.s32.totalorder %s16, 0
    %p64 = por %p62, %p63
    %s66 = sadd.s32 %s65, 1
    %p69 = scmp.eq.s32.totalorder %s10, 1
    %p70 = scmp.ne.s32.totalorder %s65, %s67
    %p71 = scmp.eq.s32.totalorder %s10, 0
    %p72 = por %p70, %p71
    %p73 = scmp.ne.s32.totalorder %s65, %s67
    %p74 = scmp.eq.s32.totalorder %s15, 1
    %p75 = por %p73, %p74
    %p76 = scmp.ne.s32.totalorder %s67, %s68
    %p77 = scmp.eq.s32.totalorder %s15, 0
    %p78 = por %p76, %p77
    %p79 = scmp.ne.s32.totalorder %s67, %s68
    %p80 = scmp.eq.s32.totalorder %s16, 1
    %p81 = por %p79, %p80
    %p83 = scmp.ne.s32.totalorder %s68, %s82
    %p84 = scmp.eq.s32.totalorder %s16, 0
    %p85 = por %p83, %p84
    %s87 = sadd.s32 %s86, 1
    %p90 = scmp.eq.s32.totalorder %s10, 1
    %p91 = scmp.ne.s32.totalorder %s86, %s88
    %p92 = scmp.eq.s32.totalorder %s10, 0
    %p93 = por %p91, %p92
    %p94 = scmp.ne.s32.totalorder %s86, %s88
    %p95 = scmp.eq.s32.totalorder %s15, 1
    %p96 = por %p94, %p95
    %p97 = scmp.ne.s32.totalorder %s88, %s89
    %p98 = scmp.eq.s32.totalorder %s15, 0
    %p99 = por %p97, %p98
    %p100 = scmp.ne.s32.totalorder %s88, %s89
    %p101 = scmp.eq.s32.totalorder %s16, 1
    %p102 = por %p100, %p101
    %p104 = scmp.ne.s32.totalorder %s89, %s103
    %p105 = scmp.eq.s32.totalorder %s16, 0
    %p106 = por %p104, %p105
    %s107 = ssub.s32 %s10, %s17
    %p108 = scmp.eq.s32.totalorder %s107, 0
    %s110 = sadd.s32 %s109, 1
    %s111 = scalar_select %p108, %s109, %s110
    %p114 = pneg %p108
    %p115 = scmp.eq.s32.totalorder %s10, 1
    %p116 = por %p114, %p115
    %p117 = scmp.ne.s32.totalorder %s109, %s112
    %p118 = scmp.eq.s32.totalorder %s10, 0
    %p119 = por %p117, %p118
    %p120 = scmp.ne.s32.totalorder %s109, %s112
    %p121 = scmp.eq.s32.totalorder %s15, 1
    %p122 = por %p120, %p121
    %p123 = scmp.ne.s32.totalorder %s112, %s113
    %p124 = scmp.eq.s32.totalorder %s15, 0
    %p125 = por %p123, %p124
    %p126 = scmp.ne.s32.totalorder %s112, %s113
    %p127 = scmp.eq.s32.totalorder %s16, 1
    %p128 = por %p126, %p127
    %p130 = scmp.ne.s32.totalorder %s113, %s129
    %p131 = scmp.eq.s32.totalorder %s16, 0
    %p132 = por %p130, %p131
    %p133 = scmp.le.s32.totalorder 1, %s10
    %p134 = scmp.lt.s32.totalorder %s10, 3
    %p135 = pnand %p133, %p134
    %p136 = pneg %p135
    // Predicated region
    $region9: #{encoder_cnn_block_apply.2} parent=5 // pred_check
      _
    $region10: #{encoder_cnn_block_apply.2} parent=5 // pred_check_branch
      %138 = sbr.rel (%p135) target = $region12
    $region11: #{encoder_cnn_block_apply.2} parent=5 // pred_region
      %s139 = ssub.s32 %s10, 1
      // Predicated region
      $region13: #{encoder_cnn_block_apply.2} parent=11 // pred_check
        %p140 = pneg %p57
      $region14: #{encoder_cnn_block_apply.2} parent=11 // pred_check_branch
        %142 = sbr.rel (%p140) target = $region16
      $region15: #{encoder_cnn_block_apply.2} parent=11 // pred_region
        _
      $region16: #{encoder_cnn_block_apply.2} parent=11 // pred_fallthru
        _
      // Predicated region
      $region17: #{encoder_cnn_block_apply.2} parent=11 // pred_check
        %p143 = pneg %p78
      $region18: #{encoder_cnn_block_apply.2} parent=11 // pred_check_branch
        %145 = sbr.rel (%p143) target = $region20
      $region19: #{encoder_cnn_block_apply.2} parent=11 // pred_region
        _
      $region20: #{encoder_cnn_block_apply.2} parent=11 // pred_fallthru
        _
      // Predicated region
      $region21: #{encoder_cnn_block_apply.2} parent=11 // pred_check
        %p146 = pneg %p99
      $region22: #{encoder_cnn_block_apply.2} parent=11 // pred_check_branch
        %148 = sbr.rel (%p146) target = $region24
      $region23: #{encoder_cnn_block_apply.2} parent=11 // pred_region
        _
      $region24: #{encoder_cnn_block_apply.2} parent=11 // pred_fallthru
        _
    $region12: #{encoder_cnn_block_apply.2} parent=5 // pred_fallthru
      _
    %p149 = scmp.lt.s32.totalorder %s10, 2
    // Predicated region
    $region25: #{encoder_cnn_block_apply.2} parent=5 // pred_check
      %p150 = pneg %p149
    $region26: #{encoder_cnn_block_apply.2} parent=5 // pred_check_branch
      %152 = sbr.rel (%p150) target = $region28
    $region27: #{encoder_cnn_block_apply.2} parent=5 // pred_region
      // Predicated region
      $region29: #{encoder_cnn_block_apply.2} parent=27 // pred_check
        %p153 = pneg %p30
      $region30: #{encoder_cnn_block_apply.2} parent=27 // pred_check_branch
        %155 = sbr.rel (%p153) target = $region32
      $region31: #{encoder_cnn_block_apply.2} parent=27 // pred_region
        %p156 = scmp.lt.s32.totalorder %s10, 1
        %s157 = scalar_select %p156, %s10, 1
        %s158 = smul.addr %s157, 54
        %s159 = smul.addr %s158, 4
        %s160 = scalar_lea.vmem %s0, %s159
      $region32: #{encoder_cnn_block_apply.2} parent=27 // pred_fallthru
        _
    $region28: #{encoder_cnn_block_apply.2} parent=5 // pred_fallthru
      _
    %p161 = scmp.le.s32.totalorder 1, %s10
    %p162 = scmp.lt.s32.totalorder %s10, 3
    %p163 = pnand %p161, %p162
    %p164 = pneg %p163
    // Predicated region
    $region33: #{encoder_cnn_block_apply.2} parent=5 // pred_check
      _
    $region34: #{encoder_cnn_block_apply.2} parent=5 // pred_check_branch
      %166 = sbr.rel (%p163) target = $region36
    $region35: #{encoder_cnn_block_apply.2} parent=5 // pred_region
      %s167 = ssub.s32 %s10, 1
      %p168 = scmp.lt.s32.totalorder %s15, 1
      %s169 = scalar_select %p168, %s15, 1
      %s170 = smul.addr %s169, 54
      %s171 = smul.addr %s170, 4
      %s172 = scalar_lea.vmem %s0, %s171
      %p173 = pneg %p36
      %p174 = pneg %p33
      %p175 = pneg %p57
      %p176 = pneg %p54
      %p177 = pneg %p78
      %p178 = pneg %p75
      %p179 = pneg %p99
      %p180 = pneg %p96
      %p181 = pneg %p125
      %p182 = pneg %p122
      %p183 = scmp.lt.s32.totalorder %s15, 1
      %s184 = scalar_select %p183, %s15, 1
      %s185 = smul.addr %s184, 8
      %s186 = smul.addr %s185, 4
      %s187 = scalar_lea.vmem %s4, %s186
      %p188 = scmp.lt.s32.totalorder %s15, 1
      %s189 = scalar_select %p188, %s15, 1
      %s190 = smul.addr %s189, 54
      %s191 = smul.addr %s190, 4
      %s192 = scalar_lea.vmem %s0, %s191
      %p193 = scmp.lt.s32.totalorder %s15, 1
      %s194 = scalar_select %p193, %s15, 1
      %s195 = smul.addr %s194, 8
      %s196 = smul.addr %s195, 4
      %s197 = scalar_lea.vmem %s4, %s196
      %v199 = vld [vmem:[%s192] sm:$0xff]
      %v200 = vld [vmem:[%s192 + $0x8] sm:$0xf]
      %v201 = vld [vmem:[%s192 + $0x18] sm:$0xff]
      %v202 = vld [vmem:[%s192 + $0x20] sm:$0xf]
      %v203 = vld [vmem:[%s192 + $0x30] sm:$0xff]
      %v204 = vld [vmem:[%s192 + $0x38] sm:$0xf]
      %v205 = vld [vmem:[%s192 + $0x48] sm:$0xff]
      %v206 = vld [vmem:[%s192 + $0x50] sm:$0xf]
      %v207 = vld [vmem:[%s192 + $0x60] sm:$0xff]
      %v208 = vld [vmem:[%s192 + $0x68] sm:$0xf]
      %v209 = vld [vmem:[%s192 + $0x78] sm:$0xff]
      %v210 = vld [vmem:[%s192 + $0x80] sm:$0xf]
      %v211 = vld [vmem:[%s192 + $0x90] sm:$0xff]
      %v212 = vld [vmem:[%s192 + $0x98] sm:$0xf]
      %v213 = vld [vmem:[%s192 + $0xa8] sm:$0xff]
      %v214 = vld [vmem:[%s192 + $0xb0] sm:$0xf]
      %v215 = vld [vmem:[%s1] sm:$0xf]
      %v216 = vld [vmem:[%s1 + $0x4] sm:$0xf]
      %v217 = vld [vmem:[%s1 + $0x8] sm:$0xf]
      %v218 = vld [vmem:[%s1 + $0xc] sm:$0xf]
      %v219 = vld [vmem:[%s1 + $0x10] sm:$0xf]
      %v220 = vld [vmem:[%s1 + $0x14] sm:$0xf]
      %v221 = vld [vmem:[%s1 + $0x18] sm:$0xf]
      %v222 = vld [vmem:[%s1 + $0x1c] sm:$0xf]
      %v223 = vld [vmem:[%s1 + $0x20] sm:$0xf]
      %v224 = vld [vmem:[%s1 + $0x24] sm:$0xf]
      %v225 = vld [vmem:[%s1 + $0x28] sm:$0xf]
      %v226 = vld [vmem:[%s1 + $0x2c] sm:$0xf]
      %v227 = vld [vmem:[%s1 + $0x30] sm:$0xf]
      %v228 = vld [vmem:[%s1 + $0x34] sm:$0xf]
      %v229 = vld [vmem:[%s1 + $0x38] sm:$0xf]
      %v230 = vld [vmem:[%s1 + $0x3c] sm:$0xf]
      %v231 = vld [vmem:[%s1 + $0x40] sm:$0xf]
      %v232 = vld [vmem:[%s1 + $0x44] sm:$0xf]
      %v233 = vld [vmem:[%s1 + $0x48] sm:$0xf]
      %v234 = vld [vmem:[%s1 + $0x4c] sm:$0xf]
      %v235 = vld [vmem:[%s1 + $0x50] sm:$0xf]
      %v236 = vld [vmem:[%s1 + $0x54] sm:$0xf]
      %v237 = vld [vmem:[%s1 + $0x58] sm:$0xf]
      %v238 = vld [vmem:[%s1 + $0x5c] sm:$0xf]
      %v239 = vld [vmem:[%s1 + $0x60] sm:$0xf]
      %v240 = vld [vmem:[%s1 + $0x64] sm:$0xf]
      %v241 = vld [vmem:[%s1 + $0x68] sm:$0xf]
      %v242 = vld [vmem:[%s1 + $0x6c] sm:$0xf]
      %v243 = vld [vmem:[%s1 + $0x70] sm:$0xf]
      %v244 = vld [vmem:[%s1 + $0x74] sm:$0xf]
      %v245 = vld [vmem:[%s1 + $0x78] sm:$0xf]
      %v246 = vld [vmem:[%s1 + $0x7c] sm:$0xf]
      %v247 = vld [vmem:[%s1 + $0x80] sm:$0xf]
      %v248 = vld [vmem:[%s1 + $0x84] sm:$0xf]
      %v249 = vld [vmem:[%s1 + $0x88] sm:$0xf]
      %v250 = vld [vmem:[%s1 + $0x8c] sm:$0xf]
      %v251 = vld [vmem:[%s192 + $0xc] sm:$0x11]
      %v252 = vld [vmem:[%s192 + $0x14] sm:$0x1]
      %v253 = vld [vmem:[%s192 + $0x24] sm:$0x11]
      %v254 = vld [vmem:[%s192 + $0x2c] sm:$0x1]
      %v255 = vld [vmem:[%s192 + $0x3c] sm:$0x11]
      %v256 = vld [vmem:[%s192 + $0x44] sm:$0x1]
      %v257 = vld [vmem:[%s192 + $0x54] sm:$0x11]
      %v258 = vld [vmem:[%s192 + $0x5c] sm:$0x1]
      %v259 = vld [vmem:[%s192 + $0x6c] sm:$0x11]
      %v260 = vld [vmem:[%s192 + $0x74] sm:$0x1]
      %v261 = vld [vmem:[%s192 + $0x84] sm:$0x11]
      %v262 = vld [vmem:[%s192 + $0x8c] sm:$0x1]
      %v263 = vld [vmem:[%s192 + $0x9c] sm:$0x11]
      %v264 = vld [vmem:[%s192 + $0xa4] sm:$0x1]
      %v265 = vld [vmem:[%s192 + $0xb4] sm:$0x11]
      %v266 = vld [vmem:[%s192 + $0xbc] sm:$0x1]
      %vm267 = vsmask.f32 3328
      %vm268 = vsmask.f32 7440
      %vm269 = vmor %vm267, %vm268
      %v271 = vshrl.u32 %v199, 16
      %v273 = vrot.slane %v271, 4
      %v274 = vshll.u32 %v199, 16
      %v276 = vrot.slane %v274, 5
      %v277 = vor.u32 %v273, %v276
      %v278 = vrot.slane %v277, 4
      %v280 = vshll.u32 %v251, 16
      %v282 = vrot.slane %v280, 5
      %v283 = vsel %vm269, %v278, %v282
      %v285 = vshrl.u32 %v200, 16
      %v287 = vrot.slane %v285, 4
      %v288 = vshll.u32 %v200, 16
      %v290 = vrot.slane %v288, 5
      %v291 = vor.u32 %v287, %v290
      %v292 = vrot.slane %v291, 4
      %v294 = vshll.u32 %v252, 16
      %v296 = vrot.slane %v294, 5
      %v297 = vsel %vm269, %v292, %v296
      %v299 = vshrl.u32 %v201, 16
      %v301 = vrot.slane %v299, 4
      %v302 = vshll.u32 %v201, 16
      %v304 = vrot.slane %v302, 5
      %v305 = vor.u32 %v301, %v304
      %v306 = vrot.slane %v305, 4
      %v308 = vshll.u32 %v253, 16
      %v310 = vrot.slane %v308, 5
      %v311 = vsel %vm269, %v306, %v310
      %v313 = vshrl.u32 %v202, 16
      %v315 = vrot.slane %v313, 4
      %v316 = vshll.u32 %v202, 16
      %v318 = vrot.slane %v316, 5
      %v319 = vor.u32 %v315, %v318
      %v320 = vrot.slane %v319, 4
      %v322 = vshll.u32 %v254, 16
      %v324 = vrot.slane %v322, 5
      %v325 = vsel %vm269, %v320, %v324
      %v327 = vshrl.u32 %v203, 16
      %v329 = vrot.slane %v327, 4
      %v330 = vshll.u32 %v203, 16
      %v332 = vrot.slane %v330, 5
      %v333 = vor.u32 %v329, %v332
      %v334 = vrot.slane %v333, 4
      %v336 = vshll.u32 %v255, 16
      %v338 = vrot.slane %v336, 5
      %v339 = vsel %vm269, %v334, %v338
      %v341 = vshrl.u32 %v204, 16
      %v343 = vrot.slane %v341, 4
      %v344 = vshll.u32 %v204, 16
      %v346 = vrot.slane %v344, 5
      %v347 = vor.u32 %v343, %v346
      %v348 = vrot.slane %v347, 4
      %v350 = vshll.u32 %v256, 16
      %v352 = vrot.slane %v350, 5
      %v353 = vsel %vm269, %v348, %v352
      %v355 = vshrl.u32 %v205, 16
      %v357 = vrot.slane %v355, 4
      %v358 = vshll.u32 %v205, 16
      %v360 = vrot.slane %v358, 5
      %v361 = vor.u32 %v357, %v360
      %v362 = vrot.slane %v361, 4
      %v364 = vshll.u32 %v257, 16
      %v366 = vrot.slane %v364, 5
      %v367 = vsel %vm269, %v362, %v366
      %v369 = vshrl.u32 %v206, 16
      %v371 = vrot.slane %v369, 4
      %v372 = vshll.u32 %v206, 16
      %v374 = vrot.slane %v372, 5
      %v375 = vor.u32 %v371, %v374
      %v376 = vrot.slane %v375, 4
      %v378 = vshll.u32 %v258, 16
      %v380 = vrot.slane %v378, 5
      %v381 = vsel %vm269, %v376, %v380
      %v383 = vshrl.u32 %v207, 16
      %v385 = vrot.slane %v383, 4
      %v386 = vshll.u32 %v207, 16
      %v388 = vrot.slane %v386, 5
      %v389 = vor.u32 %v385, %v388
      %v390 = vrot.slane %v389, 4
      %v392 = vshll.u32 %v259, 16
      %v394 = vrot.slane %v392, 5
      %v395 = vsel %vm269, %v390, %v394
      %v397 = vshrl.u32 %v208, 16
      %v399 = vrot.slane %v397, 4
      %v400 = vshll.u32 %v208, 16
      %v402 = vrot.slane %v400, 5
      %v403 = vor.u32 %v399, %v402
      %v404 = vrot.slane %v403, 4
      %v406 = vshll.u32 %v260, 16
      %v408 = vrot.slane %v406, 5
      %v409 = vsel %vm269, %v404, %v408
      %v411 = vshrl.u32 %v209, 16
      %v413 = vrot.slane %v411, 4
      %v414 = vshll.u32 %v209, 16
      %v416 = vrot.slane %v414, 5
      %v417 = vor.u32 %v413, %v416
      %v418 = vrot.slane %v417, 4
      %v420 = vshll.u32 %v261, 16
      %v422 = vrot.slane %v420, 5
      %v423 = vsel %vm269, %v418, %v422
      %v425 = vshrl.u32 %v210, 16
      %v427 = vrot.slane %v425, 4
      %v428 = vshll.u32 %v210, 16
      %v430 = vrot.slane %v428, 5
      %v431 = vor.u32 %v427, %v430
      %v432 = vrot.slane %v431, 4
      %v434 = vshll.u32 %v262, 16
      %v436 = vrot.slane %v434, 5
      %v437 = vsel %vm269, %v432, %v436
      %v439 = vshrl.u32 %v211, 16
      %v441 = vrot.slane %v439, 4
      %v442 = vshll.u32 %v211, 16
      %v444 = vrot.slane %v442, 5
      %v445 = vor.u32 %v441, %v444
      %v446 = vrot.slane %v445, 4
      %v448 = vshll.u32 %v263, 16
      %v450 = vrot.slane %v448, 5
      %v451 = vsel %vm269, %v446, %v450
      %v453 = vshrl.u32 %v212, 16
      %v455 = vrot.slane %v453, 4
      %v456 = vshll.u32 %v212, 16
      %v458 = vrot.slane %v456, 5
      %v459 = vor.u32 %v455, %v458
      %v460 = vrot.slane %v459, 4
      %v462 = vshll.u32 %v264, 16
      %v464 = vrot.slane %v462, 5
      %v465 = vsel %vm269, %v460, %v464
      %v467 = vshrl.u32 %v213, 16
      %v469 = vrot.slane %v467, 4
      %v470 = vshll.u32 %v213, 16
      %v472 = vrot.slane %v470, 5
      %v473 = vor.u32 %v469, %v472
      %v474 = vrot.slane %v473, 4
      %v476 = vshll.u32 %v265, 16
      %v478 = vrot.slane %v476, 5
      %v479 = vsel %vm269, %v474, %v478
      %v481 = vshrl.u32 %v214, 16
      %v483 = vrot.slane %v481, 4
      %v484 = vshll.u32 %v214, 16
      %v486 = vrot.slane %v484, 5
      %v487 = vor.u32 %v483, %v486
      %v488 = vrot.slane %v487, 4
      %v490 = vshll.u32 %v266, 16
      %v492 = vrot.slane %v490, 5
      %v493 = vsel %vm269, %v488, %v492
      %s494 = scalar_lea.vmem %s1, 144
      %v495 = vld [vmem:[%s494] sm:$0xf]
      %v496 = vld [vmem:[%s494 + $0x4] sm:$0xf]
      %v497 = vld [vmem:[%s494 + $0x8] sm:$0xf]
      %v498 = vld [vmem:[%s494 + $0xc] sm:$0xf]
      %v499 = vld [vmem:[%s494 + $0x10] sm:$0xf]
      %v500 = vld [vmem:[%s494 + $0x14] sm:$0xf]
      %v501 = vld [vmem:[%s494 + $0x18] sm:$0xf]
      %v502 = vld [vmem:[%s494 + $0x1c] sm:$0xf]
      %v503 = vld [vmem:[%s494 + $0x20] sm:$0xf]
      %v504 = vld [vmem:[%s494 + $0x24] sm:$0xf]
      %v505 = vld [vmem:[%s494 + $0x28] sm:$0xf]
      %v506 = vld [vmem:[%s494 + $0x2c] sm:$0xf]
      %v507 = vld [vmem:[%s494 + $0x30] sm:$0xf]
      %v508 = vld [vmem:[%s494 + $0x34] sm:$0xf]
      %v509 = vld [vmem:[%s494 + $0x38] sm:$0xf]
      %v510 = vld [vmem:[%s494 + $0x3c] sm:$0xf]
      %v511 = vld [vmem:[%s494 + $0x40] sm:$0xf]
      %v512 = vld [vmem:[%s494 + $0x44] sm:$0xf]
      %v513 = vld [vmem:[%s494 + $0x48] sm:$0xf]
      %v514 = vld [vmem:[%s494 + $0x4c] sm:$0xf]
      %v515 = vld [vmem:[%s494 + $0x50] sm:$0xf]
      %v516 = vld [vmem:[%s494 + $0x54] sm:$0xf]
      %v517 = vld [vmem:[%s494 + $0x58] sm:$0xf]
      %v518 = vld [vmem:[%s494 + $0x5c] sm:$0xf]
      %v519 = vld [vmem:[%s494 + $0x60] sm:$0xf]
      %v520 = vld [vmem:[%s494 + $0x64] sm:$0xf]
      %v521 = vld [vmem:[%s494 + $0x68] sm:$0xf]
      %v522 = vld [vmem:[%s494 + $0x6c] sm:$0xf]
      %v523 = vld [vmem:[%s494 + $0x70] sm:$0xf]
      %v524 = vld [vmem:[%s494 + $0x74] sm:$0xf]
      %v525 = vld [vmem:[%s494 + $0x78] sm:$0xf]
      %v526 = vld [vmem:[%s494 + $0x7c] sm:$0xf]
      %v527 = vld [vmem:[%s494 + $0x80] sm:$0xf]
      %v528 = vld [vmem:[%s494 + $0x84] sm:$0xf]
      %v529 = vld [vmem:[%s494 + $0x88] sm:$0xf]
      %v530 = vld [vmem:[%s494 + $0x8c] sm:$0xf]
      %v531 = vunpack.c.l.b16 %v283
      %v532 = vunpack.c.h.b16 %v283
      %v533 = vunpack.c.l.b16 %v297
      %v534 = vunpack.c.l.b16 %v311
      %v535 = vunpack.c.h.b16 %v311
      %v536 = vunpack.c.l.b16 %v325
      %v537 = vunpack.c.l.b16 %v339
      %v538 = vunpack.c.h.b16 %v339
      %v539 = vunpack.c.l.b16 %v353
      %v540 = vunpack.c.l.b16 %v367
      %v541 = vunpack.c.h.b16 %v367
      %v542 = vunpack.c.l.b16 %v381
      %v543 = vunpack.c.l.b16 %v395
      %v544 = vunpack.c.h.b16 %v395
      %v545 = vunpack.c.l.b16 %v409
      %v546 = vunpack.c.l.b16 %v423
      %v547 = vunpack.c.h.b16 %v423
      %v548 = vunpack.c.l.b16 %v437
      %v549 = vunpack.c.l.b16 %v451
      %v550 = vunpack.c.h.b16 %v451
      %v551 = vunpack.c.l.b16 %v465
      %v552 = vunpack.c.l.b16 %v479
      %v553 = vunpack.c.h.b16 %v479
      %v554 = vunpack.c.l.b16 %v493
      %v555 = vpack.c.b16 %v534, %v531
      %v556 = vpack.c.b16 %v535, %v532
      %v557 = vpack.c.b16 %v536, %v533
      %v558 = vpack.c.b16 %v540, %v537
      %v559 = vpack.c.b16 %v541, %v538
      %v560 = vpack.c.b16 %v542, %v539
      %v561 = vpack.c.b16 %v546, %v543
      %v562 = vpack.c.b16 %v547, %v544
      %v563 = vpack.c.b16 %v548, %v545
      %v564 = vpack.c.b16 %v552, %v549
      %v565 = vpack.c.b16 %v553, %v550
      %v566 = vpack.c.b16 %v554, %v551
      %v611 = vunpack.c.l.b16 %v495
      %v612 = vunpack.c.l.b16 %v496
      %v613 = vunpack.c.l.b16 %v497
      %v614 = vunpack.c.l.b16 %v498
      %v615 = vunpack.c.l.b16 %v499
      %v616 = vunpack.c.l.b16 %v500
      %v617 = vunpack.c.l.b16 %v501
      %v618 = vunpack.c.l.b16 %v502
      %v619 = vunpack.c.l.b16 %v503
      %v620 = vunpack.c.l.b16 %v504
      %v621 = vunpack.c.l.b16 %v505
      %v622 = vunpack.c.l.b16 %v506
      %v623 = vunpack.c.l.b16 %v507
      %v624 = vunpack.c.l.b16 %v508
      %v625 = vunpack.c.l.b16 %v509
      %v626 = vunpack.c.l.b16 %v510
      %v627 = vunpack.c.l.b16 %v511
      %v628 = vunpack.c.l.b16 %v512
      %v629 = vunpack.c.l.b16 %v513
      %v630 = vunpack.c.l.b16 %v514
      %v631 = vunpack.c.l.b16 %v515
      %v632 = vunpack.c.l.b16 %v516
      %v633 = vunpack.c.l.b16 %v517
      %v634 = vunpack.c.l.b16 %v518
      %v635 = vunpack.c.l.b16 %v519
      %v636 = vunpack.c.l.b16 %v520
      %v637 = vunpack.c.l.b16 %v521
      %v638 = vunpack.c.l.b16 %v522
      %v639 = vunpack.c.l.b16 %v523
      %v640 = vunpack.c.l.b16 %v524
      %v641 = vunpack.c.l.b16 %v525
      %v642 = vunpack.c.l.b16 %v526
      %v643 = vunpack.c.l.b16 %v527
      %v644 = vunpack.c.l.b16 %v528
      %v645 = vunpack.c.l.b16 %v529
      %v646 = vunpack.c.l.b16 %v530
      %v647 = vpack.c.b16 %v612, %v611
      %v648 = vpack.c.b16 %v614, %v613
      %v649 = vpack.c.b16 %v616, %v615
      %v650 = vpack.c.b16 %v618, %v617
      %v651 = vpack.c.b16 %v620, %v619
      %v652 = vpack.c.b16 %v622, %v621
      %v653 = vpack.c.b16 %v624, %v623
      %v654 = vpack.c.b16 %v626, %v625
      %v655 = vpack.c.b16 %v628, %v627
      %v656 = vpack.c.b16 %v630, %v629
      %v657 = vpack.c.b16 %v632, %v631
      %v658 = vpack.c.b16 %v634, %v633
      %v659 = vpack.c.b16 %v636, %v635
      %v660 = vpack.c.b16 %v638, %v637
      %v661 = vpack.c.b16 %v640, %v639
      %v662 = vpack.c.b16 %v642, %v641
      %v663 = vpack.c.b16 %v644, %v643
      %v664 = vpack.c.b16 %v646, %v645
      %vm683 = vcmask 261120
      %v685 = vsel %vm683, %v557, 0
      %v688 = vsel %vm683, %v560, 0
      %v691 = vsel %vm683, %v563, 0
      %v694 = vsel %vm683, %v566, 0
      %696 = vmatprep.subr.bf16.mxu0 0
      %697 = vmatpush1.bf16.msra.mxu0 %v647
      %698 = vmatprep.subr.bf16.mxu0 0
      %699 = vmatpush1.bf16.msra.mxu0 %v648
      %700 = vmatprep.subr.bf16.mxu0 0
      %701 = vmatpush1.bf16.msra.mxu0 %v649
      %702 = vmatprep.subr.bf16.mxu0 0
      %703 = vmatpush1.bf16.msra.mxu0 %v650
      %704 = vmatprep.subr.bf16.mxu0 0
      %705 = vmatpush1.bf16.msra.mxu0 %v651
      %706 = vmatprep.subr.bf16.mxu0 0
      %707 = vmatpush1.bf16.msra.mxu0 %v652
      %708 = vmatprep.subr.bf16.mxu0 0
      %709 = vmatpush1.bf16.msra.mxu0 %v653
      %710 = vmatprep.subr.bf16.mxu0 0
      %711 = vmatpush1.bf16.msra.mxu0 %v654
      %712 = vmatprep.subr.bf16.mxu0 0
      %713 = vmatpush1.bf16.msra.mxu0 %v655
      %714 = vmatprep.subr.bf16.mxu0 0
      %715 = vmatpush1.bf16.msra.mxu0 %v656
      %716 = vmatprep.subr.bf16.mxu0 0
      %717 = vmatpush1.bf16.msra.mxu0 %v657
      %718 = vmatprep.subr.bf16.mxu0 0
      %719 = vmatpush1.bf16.msra.mxu0 %v658
      %720 = vmatprep.subr.bf16.mxu0 0
      %721 = vmatpush1.bf16.msra.mxu0 %v659
      %722 = vmatprep.subr.bf16.mxu0 0
      %723 = vmatpush1.bf16.msra.mxu0 %v660
      %724 = vmatprep.subr.bf16.mxu0 0
      %725 = vmatpush1.bf16.msra.mxu0 %v661
      %726 = vmatprep.subr.bf16.mxu0 0
      %727 = vmatpush1.bf16.msra.mxu0 %v662
      %728 = vmatprep.mubr.bf16.mxu0 %v556
      %729 = vmatmul.mubr.bf16.gmra.mrb[0].mxu0 %v555
      %v730 = vpop.f32.mrb[0].mxu0
      %v731 = vadd.f32 0.0, %v730
      %v732 = vpop.f32.mrb[0].mxu0
      %v733 = vpop.f32.mrb[0].mxu0
      %v734 = vadd.f32 0.0, %v733
      %v735 = vpop.f32.mrb[0].mxu0
      %736 = vmatprep.mubr.bf16.mxu0 %v559
      %737 = vmatmul.mubr.bf16.gmra.mrb[0].mxu0 %v558
      %v738 = vpop.f32.mrb[0].mxu0
      %v739 = vadd.f32 0.0, %v738
      %v740 = vpop.f32.mrb[0].mxu0
      %v741 = vpop.f32.mrb[0].mxu0
      %v742 = vadd.f32 0.0, %v741
      %v743 = vpop.f32.mrb[0].mxu0
      %744 = vmatprep.mubr.bf16.mxu0 %v562
      %745 = vmatmul.mubr.bf16.gmra.mrb[0].mxu0 %v561
      %v746 = vpop.f32.mrb[0].mxu0
      %v747 = vadd.f32 0.0, %v746
      %v748 = vpop.f32.mrb[0].mxu0
      %v749 = vpop.f32.mrb[0].mxu0
      %v750 = vadd.f32 0.0, %v749
      %v751 = vpop.f32.mrb[0].mxu0
      %752 = vmatprep.mubr.bf16.mxu0 %v565
      %753 = vmatmul.mubr.bf16.gmra.mrb[0].mxu0 %v564
      %v754 = vpop.f32.mrb[0].mxu0
      %v755 = vadd.f32 0.0, %v754
      %v756 = vpop.f32.mrb[0].mxu0
      %v757 = vpop.f32.mrb[0].mxu0
      %v758 = vadd.f32 0.0, %v757
      %v759 = vpop.f32.mrb[0].mxu0
      %760 = vdwg.mxu0
      %761 = vmatprep.subr.bf16.mxu0 0
      %762 = vmatpush1.bf16.msra.mxu0 %v663
      %763 = vmatprep.subr.bf16.mxu0 0
      %764 = vmatpush1.bf16.msra.mxu0 %v664
      %765 = vmatprep.subr.bf16.mxu0 0
      %766 = vmatpush1.bf16.msra.mxu0 0
      %767 = vmatprep.subr.bf16.mxu0 0
      %768 = vmatpush1.bf16.msra.mxu0 0
      %769 = vmatprep.subr.bf16.mxu0 0
      %770 = vmatpush1.bf16.msra.mxu0 0
      %771 = vmatprep.subr.bf16.mxu0 0
      %772 = vmatpush1.bf16.msra.mxu0 0
      %773 = vmatprep.subr.bf16.mxu0 0
      %774 = vmatpush1.bf16.msra.mxu0 0
      %775 = vmatprep.subr.bf16.mxu0 0
      %776 = vmatpush1.bf16.msra.mxu0 0
      %777 = vmatprep.subr.bf16.mxu0 0
      %778 = vmatpush1.bf16.msra.mxu0 0
      %779 = vmatprep.subr.bf16.mxu0 0
      %780 = vmatpush1.bf16.msra.mxu0 0
      %781 = vmatprep.subr.bf16.mxu0 0
      %782 = vmatpush1.bf16.msra.mxu0 0
      %783 = vmatprep.subr.bf16.mxu0 0
      %784 = vmatpush1.bf16.msra.mxu0 0
      %785 = vmatprep.subr.bf16.mxu0 0
      %786 = vmatpush1.bf16.msra.mxu0 0
      %787 = vmatprep.subr.bf16.mxu0 0
      %788 = vmatpush1.bf16.msra.mxu0 0
      %789 = vmatprep.subr.bf16.mxu0 0
      %790 = vmatpush1.bf16.msra.mxu0 0
      %791 = vmatprep.subr.bf16.mxu0 0
      %792 = vmatpush1.bf16.msra.mxu0 0
      %793 = vmatprep.mubr.bf16.mxu0 0
      %794 = vmatmul.mubr.bf16.gmra.mrb[0].mxu0 %v685
      %v795 = vpop.f32.mrb[0].mxu0
      %v796 = vadd.f32 %v731, %v795
      %v797 = vpop.f32.mrb[0].mxu0
      %v798 = vpop.f32.mrb[0].mxu0
      %v799 = vadd.f32 %v734, %v798
      %v800 = vpop.f32.mrb[0].mxu0
      %801 = vmatprep.mubr.bf16.mxu0 0
      %802 = vmatmul.mubr.bf16.gmra.mrb[0].mxu0 %v688
      %v803 = vpop.f32.mrb[0].mxu0
      %v804 = vadd.f32 %v739, %v803
      %v805 = vpop.f32.mrb[0].mxu0
      %v806 = vpop.f32.mrb[0].mxu0
      %v807 = vadd.f32 %v742, %v806
      %v808 = vpop.f32.mrb[0].mxu0
      %809 = vmatprep.mubr.bf16.mxu0 0
      %810 = vmatmul.mubr.bf16.gmra.mrb[0].mxu0 %v691
      %v811 = vpop.f32.mrb[0].mxu0
      %v812 = vadd.f32 %v747, %v811
      %v813 = vpop.f32.mrb[0].mxu0
      %v814 = vpop.f32.mrb[0].mxu0
      %v815 = vadd.f32 %v750, %v814
      %v816 = vpop.f32.mrb[0].mxu0
      %817 = vmatprep.mubr.bf16.mxu0 0
      %818 = vmatmul.mubr.bf16.gmra.mrb[0].mxu0 %v694
      %v819 = vpop.f32.mrb[0].mxu0
      %v820 = vadd.f32 %v755, %v819
      %v821 = vpop.f32.mrb[0].mxu0
      %v822 = vpop.f32.mrb[0].mxu0
      %v823 = vadd.f32 %v758, %v822
      %v824 = vpop.f32.mrb[0].mxu0
      %825 = vdwg.mxu0
      %v842 = vunpack.c.l.b16 %v199
      %v843 = vunpack.c.h.b16 %v199
      %v844 = vunpack.c.l.b16 %v200
      %v845 = vunpack.c.l.b16 %v201
      %v846 = vunpack.c.h.b16 %v201
      %v847 = vunpack.c.l.b16 %v202
      %v848 = vunpack.c.l.b16 %v203
      %v849 = vunpack.c.h.b16 %v203
      %v850 = vunpack.c.l.b16 %v204
      %v851 = vunpack.c.l.b16 %v205
      %v852 = vunpack.c.h.b16 %v205
      %v853 = vunpack.c.l.b16 %v206
      %v854 = vunpack.c.l.b16 %v207
      %v855 = vunpack.c.h.b16 %v207
      %v856 = vunpack.c.l.b16 %v208
      %v857 = vunpack.c.l.b16 %v209
      %v858 = vunpack.c.h.b16 %v209
      %v859 = vunpack.c.l.b16 %v210
      %v860 = vunpack.c.l.b16 %v211
      %v861 = vunpack.c.h.b16 %v211
      %v862 = vunpack.c.l.b16 %v212
      %v863 = vunpack.c.l.b16 %v213
      %v864 = vunpack.c.h.b16 %v213
      %v865 = vunpack.c.l.b16 %v214
      %v866 = vpack.c.b16 %v845, %v842
      %v867 = vpack.c.b16 %v846, %v843
      %v868 = vpack.c.b16 %v847, %v844
      %v869 = vpack.c.b16 %v851, %v848
      %v870 = vpack.c.b16 %v852, %v849
      %v871 = vpack.c.b16 %v853, %v850
      %v872 = vpack.c.b16 %v857, %v854
      %v873 = vpack.c.b16 %v858, %v855
      %v874 = vpack.c.b16 %v859, %v856
      %v875 = vpack.c.b16 %v863, %v860
      %v876 = vpack.c.b16 %v864, %v861
      %v877 = vpack.c.b16 %v865, %v862
      %v922 = vunpack.c.l.b16 %v215
      %v923 = vunpack.c.l.b16 %v216
      %v924 = vunpack.c.l.b16 %v217
      %v925 = vunpack.c.l.b16 %v218
      %v926 = vunpack.c.l.b16 %v219
      %v927 = vunpack.c.l.b16 %v220
      %v928 = vunpack.c.l.b16 %v221
      %v929 = vunpack.c.l.b16 %v222
      %v930 = vunpack.c.l.b16 %v223
      %v931 = vunpack.c.l.b16 %v224
      %v932 = vunpack.c.l.b16 %v225
      %v933 = vunpack.c.l.b16 %v226
      %v934 = vunpack.c.l.b16 %v227
      %v935 = vunpack.c.l.b16 %v228
      %v936 = vunpack.c.l.b16 %v229
      %v937 = vunpack.c.l.b16 %v230
      %v938 = vunpack.c.l.b16 %v231
      %v939 = vunpack.c.l.b16 %v232
      %v940 = vunpack.c.l.b16 %v233
      %v941 = vunpack.c.l.b16 %v234
      %v942 = vunpack.c.l.b16 %v235
      %v943 = vunpack.c.l.b16 %v236
      %v944 = vunpack.c.l.b16 %v237
      %v945 = vunpack.c.l.b16 %v238
      %v946 = vunpack.c.l.b16 %v239
      %v947 = vunpack.c.l.b16 %v240
      %v948 = vunpack.c.l.b16 %v241
      %v949 = vunpack.c.l.b16 %v242
      %v950 = vunpack.c.l.b16 %v243
      %v951 = vunpack.c.l.b16 %v244
      %v952 = vunpack.c.l.b16 %v245
      %v953 = vunpack.c.l.b16 %v246
      %v954 = vunpack.c.l.b16 %v247
      %v955 = vunpack.c.l.b16 %v248
      %v956 = vunpack.c.l.b16 %v249
      %v957 = vunpack.c.l.b16 %v250
      %v958 = vpack.c.b16 %v923, %v922
      %v959 = vpack.c.b16 %v925, %v924
      %v960 = vpack.c.b16 %v927, %v926
      %v961 = vpack.c.b16 %v929, %v928
      %v962 = vpack.c.b16 %v931, %v930
      %v963 = vpack.c.b16 %v933, %v932
      %v964 = vpack.c.b16 %v935, %v934
      %v965 = vpack.c.b16 %v937, %v936
      %v966 = vpack.c.b16 %v939, %v938
      %v967 = vpack.c.b16 %v941, %v940
      %v968 = vpack.c.b16 %v943, %v942
      %v969 = vpack.c.b16 %v945, %v944
      %v970 = vpack.c.b16 %v947, %v946
      %v971 = vpack.c.b16 %v949, %v948
      %v972 = vpack.c.b16 %v951, %v950
      %v973 = vpack.c.b16 %v953, %v952
      %v974 = vpack.c.b16 %v955, %v954
      %v975 = vpack.c.b16 %v957, %v956
      %v995 = vsel %vm683, %v868, 0
      %v998 = vsel %vm683, %v871, 0
      %v1001 = vsel %vm683, %v874, 0
      %v1004 = vsel %vm683, %v877, 0
      %1006 = vmatprep.subr.bf16.mxu0 0
      %1007 = vmatpush1.bf16.msra.mxu0 %v958
      %1008 = vmatprep.subr.bf16.mxu0 0
      %1009 = vmatpush1.bf16.msra.mxu0 %v959
      %1010 = vmatprep.subr.bf16.mxu0 0
      %1011 = vmatpush1.bf16.msra.mxu0 %v960
      %1012 = vmatprep.subr.bf16.mxu0 0
      %1013 = vmatpush1.bf16.msra.mxu0 %v961
      %1014 = vmatprep.subr.bf16.mxu0 0
      %1015 = vmatpush1.bf16.msra.mxu0 %v962
      %1016 = vmatprep.subr.bf16.mxu0 0
      %1017 = vmatpush1.bf16.msra.mxu0 %v963
      %1018 = vmatprep.subr.bf16.mxu0 0
      %1019 = vmatpush1.bf16.msra.mxu0 %v964
      %1020 = vmatprep.subr.bf16.mxu0 0
      %1021 = vmatpush1.bf16.msra.mxu0 %v965
      %1022 = vmatprep.subr.bf16.mxu0 0
      %1023 = vmatpush1.bf16.msra.mxu0 %v966
      %1024 = vmatprep.subr.bf16.mxu0 0
      %1025 = vmatpush1.bf16.msra.mxu0 %v967
      %1026 = vmatprep.subr.bf16.mxu0 0
      %1027 = vmatpush1.bf16.msra.mxu0 %v968
      %1028 = vmatprep.subr.bf16.mxu0 0
      %1029 = vmatpush1.bf16.msra.mxu0 %v969
      %1030 = vmatprep.subr.bf16.mxu0 0
      %1031 = vmatpush1.bf16.msra.mxu0 %v970
      %1032 = vmatprep.subr.bf16.mxu0 0
      %1033 = vmatpush1.bf16.msra.mxu0 %v971
      %1034 = vmatprep.subr.bf16.mxu0 0
      %1035 = vmatpush1.bf16.msra.mxu0 %v972
      %1036 = vmatprep.subr.bf16.mxu0 0
      %1037 = vmatpush1.bf16.msra.mxu0 %v973
      %1038 = vmatprep.mubr.bf16.mxu0 %v867
      %1039 = vmatmul.mubr.bf16.gmra.mrb[0].mxu0 %v866
      %v1040 = vpop.f32.mrb[0].mxu0
      %v1041 = vadd.f32 %v796, %v1040
      %v1042 = vpop.f32.mrb[0].mxu0
      %v1043 = vpop.f32.mrb[0].mxu0
      %v1044 = vadd.f32 %v799, %v1043
      %v1045 = vpop.f32.mrb[0].mxu0
      %1046 = vmatprep.mubr.bf16.mxu0 %v870
      %1047 = vmatmul.mubr.bf16.gmra.mrb[0].mxu0 %v869
      %v1048 = vpop.f32.mrb[0].mxu0
      %v1049 = vadd.f32 %v804, %v1048
      %v1050 = vpop.f32.mrb[0].mxu0
      %v1051 = vpop.f32.mrb[0].mxu0
      %v1052 = vadd.f32 %v807, %v1051
      %v1053 = vpop.f32.mrb[0].mxu0
      %1054 = vmatprep.mubr.bf16.mxu0 %v873
      %1055 = vmatmul.mubr.bf16.gmra.mrb[0].mxu0 %v872
      %v1056 = vpop.f32.mrb[0].mxu0
      %v1057 = vadd.f32 %v812, %v1056
      %v1058 = vpop.f32.mrb[0].mxu0
      %v1059 = vpop.f32.mrb[0].mxu0
      %v1060 = vadd.f32 %v815, %v1059
      %v1061 = vpop.f32.mrb[0].mxu0
      %1062 = vmatprep.mubr.bf16.mxu0 %v876
      %1063 = vmatmul.mubr.bf16.gmra.mrb[0].mxu0 %v875
      %v1064 = vpop.f32.mrb[0].mxu0
      %v1065 = vadd.f32 %v820, %v1064
      %v1066 = vpop.f32.mrb[0].mxu0
      %v1067 = vpop.f32.mrb[0].mxu0
      %v1068 = vadd.f32 %v823, %v1067
      %v1069 = vpop.f32.mrb[0].mxu0
      %1070 = vdwg.mxu0
      %1071 = vmatprep.subr.bf16.mxu0 0
      %1072 = vmatpush1.bf16.msra.mxu0 %v974
      %1073 = vmatprep.subr.bf16.mxu0 0
      %1074 = vmatpush1.bf16.msra.mxu0 %v975
      %1075 = vmatprep.subr.bf16.mxu0 0
      %1076 = vmatpush1.bf16.msra.mxu0 0
      %1077 = vmatprep.subr.bf16.mxu0 0
      %1078 = vmatpush1.bf16.msra.mxu0 0
      %1079 = vmatprep.subr.bf16.mxu0 0
      %1080 = vmatpush1.bf16.msra.mxu0 0
      %1081 = vmatprep.subr.bf16.mxu0 0
      %1082 = vmatpush1.bf16.msra.mxu0 0
      %1083 = vmatprep.subr.bf16.mxu0 0
      %1084 = vmatpush1.bf16.msra.mxu0 0
      %1085 = vmatprep.subr.bf16.mxu0 0
      %1086 = vmatpush1.bf16.msra.mxu0 0
      %1087 = vmatprep.subr.bf16.mxu0 0
      %1088 = vmatpush1.bf16.msra.mxu0 0
      %1089 = vmatprep.subr.bf16.mxu0 0
      %1090 = vmatpush1.bf16.msra.mxu0 0
      %1091 = vmatprep.subr.bf16.mxu0 0
      %1092 = vmatpush1.bf16.msra.mxu0 0
      %1093 = vmatprep.subr.bf16.mxu0 0
      %1094 = vmatpush1.bf16.msra.mxu0 0
      %1095 = vmatprep.subr.bf16.mxu0 0
      %1096 = vmatpush1.bf16.msra.mxu0 0
      %1097 = vmatprep.subr.bf16.mxu0 0
      %1098 = vmatpush1.bf16.msra.mxu0 0
      %1099 = vmatprep.subr.bf16.mxu0 0
      %1100 = vmatpush1.bf16.msra.mxu0 0
      %1101 = vmatprep.subr.bf16.mxu0 0
      %1102 = vmatpush1.bf16.msra.mxu0 0
      %1103 = vmatprep.mubr.bf16.mxu0 0
      %1104 = vmatmul.mubr.bf16.gmra.mrb[0].mxu0 %v995
      %v1105 = vpop.f32.mrb[0].mxu0
      %v1106 = vadd.f32 %v1041, %v1105
      %v1107 = vpop.f32.mrb[0].mxu0
      %v1108 = vpop.f32.mrb[0].mxu0
      %v1109 = vadd.f32 %v1044, %v1108
      %v1110 = vpop.f32.mrb[0].mxu0
      %1111 = vmatprep.mubr.bf16.mxu0 0
      %1112 = vmatmul.mubr.bf16.gmra.mrb[0].mxu0 %v998
      %v1113 = vpop.f32.mrb[0].mxu0
      %v1114 = vadd.f32 %v1049, %v1113
      %v1115 = vpop.f32.mrb[0].mxu0
      %v1116 = vpop.f32.mrb[0].mxu0
      %v1117 = vadd.f32 %v1052, %v1116
      %v1118 = vpop.f32.mrb[0].mxu0
      %1119 = vmatprep.mubr.bf16.mxu0 0
      %1120 = vmatmul.mubr.bf16.gmra.mrb[0].mxu0 %v1001
      %v1121 = vpop.f32.mrb[0].mxu0
      %v1122 = vadd.f32 %v1057, %v1121
      %v1123 = vpop.f32.mrb[0].mxu0
      %v1124 = vpop.f32.mrb[0].mxu0
      %v1125 = vadd.f32 %v1060, %v1124
      %v1126 = vpop.f32.mrb[0].mxu0
      %1127 = vmatprep.mubr.bf16.mxu0 0
      %1128 = vmatmul.mubr.bf16.gmra.mrb[0].mxu0 %v1004
      %v1129 = vpop.f32.mrb[0].mxu0
      %v1130 = vadd.f32 %v1065, %v1129
      %v1131 = vpop.f32.mrb[0].mxu0
      %v1132 = vpop.f32.mrb[0].mxu0
      %v1133 = vadd.f32 %v1068, %v1132
      %v1134 = vpop.f32.mrb[0].mxu0
      %1135 = vdwg.mxu0
      %s1136 = scalar_lea.vmem %s192, 24
      %v1137 = vld [vmem:[%s1136] sm:$0xff]
      %v1138 = vld [vmem:[%s1136 + $0x8] sm:$0xf]
      %v1139 = vld [vmem:[%s1136 + $0x18] sm:$0xff]
      %v1140 = vld [vmem:[%s1136 + $0x20] sm:$0xf]
      %v1141 = vld [vmem:[%s1136 + $0x30] sm:$0xff]
      %v1142 = vld [vmem:[%s1136 + $0x38] sm:$0xf]
      %v1143 = vld [vmem:[%s1136 + $0x48] sm:$0xff]
      %v1144 = vld [vmem:[%s1136 + $0x50] sm:$0xf]
      %v1145 = vld [vmem:[%s1136 + $0x60] sm:$0xff]
      %v1146 = vld [vmem:[%s1136 + $0x68] sm:$0xf]
      %v1147 = vld [vmem:[%s1136 + $0x78] sm:$0xff]
      %v1148 = vld [vmem:[%s1136 + $0x80] sm:$0xf]
      %v1149 = vld [vmem:[%s1136 + $0x90] sm:$0xff]
      %v1150 = vld [vmem:[%s1136 + $0x98] sm:$0xf]
      %v1151 = vld [vmem:[%s1136 + $0xa8] sm:$0xff]
      %v1152 = vld [vmem:[%s1136 + $0xb0] sm:$0xf]
      %s1153 = scalar_lea.vmem %s1, 288
      %v1154 = vld [vmem:[%s1153] sm:$0xf]
      %v1155 = vld [vmem:[%s1153 + $0x4] sm:$0xf]
      %v1156 = vld [vmem:[%s1153 + $0x8] sm:$0xf]
      %v1157 = vld [vmem:[%s1153 + $0xc] sm:$0xf]
      %v1158 = vld [vmem:[%s1153 + $0x10] sm:$0xf]
      %v1159 = vld [vmem:[%s1153 + $0x14] sm:$0xf]
      %v1160 = vld [vmem:[%s1153 + $0x18] sm:$0xf]
      %v1161 = vld [vmem:[%s1153 + $0x1c] sm:$0xf]
      %v1162 = vld [vmem:[%s1153 + $0x20] sm:$0xf]
      %v1163 = vld [vmem:[%s1153 + $0x24] sm:$0xf]
      %v1164 = vld [vmem:[%s1153 + $0x28] sm:$0xf]
      %v1165 = vld [vmem:[%s1153 + $0x2c] sm:$0xf]
      %v1166 = vld [vmem:[%s1153 + $0x30] sm:$0xf]
      %v1167 = vld [vmem:[%s1153 + $0x34] sm:$0xf]
      %v1168 = vld [vmem:[%s1153 + $0x38] sm:$0xf]
      %v1169 = vld [vmem:[%s1153 + $0x3c] sm:$0xf]
      %v1170 = vld [vmem:[%s1153 + $0x40] sm:$0xf]
      %v1171 = vld [vmem:[%s1153 + $0x44] sm:$0xf]
      %v1172 = vld [vmem:[%s1153 + $0x48] sm:$0xf]
      %v1173 = vld [vmem:[%s1153 + $0x4c] sm:$0xf]
      %v1174 = vld [vmem:[%s1153 + $0x50] sm:$0xf]
      %v1175 = vld [vmem:[%s1153 + $0x54] sm:$0xf]
      %v1176 = vld [vmem:[%s1153 + $0x58] sm:$0xf]
      %v1177 = vld [vmem:[%s1153 + $0x5c] sm:$0xf]
      %v1178 = vld [vmem:[%s1153 + $0x60] sm:$0xf]
      %v1179 = vld [vmem:[%s1153 + $0x64] sm:$0xf]
      %v1180 = vld [vmem:[%s1153 + $0x68] sm:$0xf]
      %v1181 = vld [vmem:[%s1153 + $0x6c] sm:$0xf]
      %v1182 = vld [vmem:[%s1153 + $0x70] sm:$0xf]
      %v1183 = vld [vmem:[%s1153 + $0x74] sm:$0xf]
      %v1184 = vld [vmem:[%s1153 + $0x78] sm:$0xf]
      %v1185 = vld [vmem:[%s1153 + $0x7c] sm:$0xf]
      %v1186 = vld [vmem:[%s1153 + $0x80] sm:$0xf]
      %v1187 = vld [vmem:[%s1153 + $0x84] sm:$0xf]
      %v1188 = vld [vmem:[%s1153 + $0x88] sm:$0xf]
      %v1189 = vld [vmem:[%s1153 + $0x8c] sm:$0xf]
      %v1206 = vunpack.c.l.b16 %v1137
      %v1207 = vunpack.c.h.b16 %v1137
      %v1208 = vunpack.c.l.b16 %v1138
      %v1209 = vunpack.c.l.b16 %v1139
      %v1210 = vunpack.c.h.b16 %v1139
      %v1211 = vunpack.c.l.b16 %v1140
      %v1212 = vunpack.c.l.b16 %v1141
      %v1213 = vunpack.c.h.b16 %v1141
      %v1214 = vunpack.c.l.b16 %v1142
      %v1215 = vunpack.c.l.b16 %v1143
      %v1216 = vunpack.c.h.b16 %v1143
      %v1217 = vunpack.c.l.b16 %v1144
      %v1218 = vunpack.c.l.b16 %v1145
      %v1219 = vunpack.c.h.b16 %v1145
      %v1220 = vunpack.c.l.b16 %v1146
      %v1221 = vunpack.c.l.b16 %v1147
      %v1222 = vunpack.c.h.b16 %v1147
      %v1223 = vunpack.c.l.b16 %v1148
      %v1224 = vunpack.c.l.b16 %v1149
      %v1225 = vunpack.c.h.b16 %v1149
      %v1226 = vunpack.c.l.b16 %v1150
      %v1227 = vunpack.c.l.b16 %v1151
      %v1228 = vunpack.c.h.b16 %v1151
      %v1229 = vunpack.c.l.b16 %v1152
      %v1230 = vpack.c.b16 %v1209, %v1206
      %v1231 = vpack.c.b16 %v1210, %v1207
      %v1232 = vpack.c.b16 %v1211, %v1208
      %v1233 = vpack.c.b16 %v1215, %v1212
      %v1234 = vpack.c.b16 %v1216, %v1213
      %v1235 = vpack.c.b16 %v1217, %v1214
      %v1236 = vpack.c.b16 %v1221, %v1218
      %v1237 = vpack.c.b16 %v1222, %v1219
      %v1238 = vpack.c.b16 %v1223, %v1220
      %v1239 = vpack.c.b16 %v1227, %v1224
      %v1240 = vpack.c.b16 %v1228, %v1225
      %v1241 = vpack.c.b16 %v1229, %v1226
      %v1286 = vunpack.c.l.b16 %v1154
      %v1287 = vunpack.c.l.b16 %v1155
      %v1288 = vunpack.c.l.b16 %v1156
      %v1289 = vunpack.c.l.b16 %v1157
      %v1290 = vunpack.c.l.b16 %v1158
      %v1291 = vunpack.c.l.b16 %v1159
      %v1292 = vunpack.c.l.b16 %v1160
      %v1293 = vunpack.c.l.b16 %v1161
      %v1294 = vunpack.c.l.b16 %v1162
      %v1295 = vunpack.c.l.b16 %v1163
      %v1296 = vunpack.c.l.b16 %v1164
      %v1297 = vunpack.c.l.b16 %v1165
      %v1298 = vunpack.c.l.b16 %v1166
      %v1299 = vunpack.c.l.b16 %v1167
      %v1300 = vunpack.c.l.b16 %v1168
      %v1301 = vunpack.c.l.b16 %v1169
      %v1302 = vunpack.c.l.b16 %v1170
      %v1303 = vunpack.c.l.b16 %v1171
      %v1304 = vunpack.c.l.b16 %v1172
      %v1305 = vunpack.c.l.b16 %v1173
      %v1306 = vunpack.c.l.b16 %v1174
      %v1307 = vunpack.c.l.b16 %v1175
      %v1308 = vunpack.c.l.b16 %v1176
      %v1309 = vunpack.c.l.b16 %v1177
      %v1310 = vunpack.c.l.b16 %v1178
      %v1311 = vunpack.c.l.b16 %v1179
      %v1312 = vunpack.c.l.b16 %v1180
      %v1313 = vunpack.c.l.b16 %v1181
      %v1314 = vunpack.c.l.b16 %v1182
      %v1315 = vunpack.c.l.b16 %v1183
      %v1316 = vunpack.c.l.b16 %v1184
      %v1317 = vunpack.c.l.b16 %v1185
      %v1318 = vunpack.c.l.b16 %v1186
      %v1319 = vunpack.c.l.b16 %v1187
      %v1320 = vunpack.c.l.b16 %v1188
      %v1321 = vunpack.c.l.b16 %v1189
      %v1322 = vpack.c.b16 %v1287, %v1286
      %v1323 = vpack.c.b16 %v1289, %v1288
      %v1324 = vpack.c.b16 %v1291, %v1290
      %v1325 = vpack.c.b16 %v1293, %v1292
      %v1326 = vpack.c.b16 %v1295, %v1294
      %v1327 = vpack.c.b16 %v1297, %v1296
      %v1328 = vpack.c.b16 %v1299, %v1298
      %v1329 = vpack.c.b16 %v1301, %v1300
      %v1330 = vpack.c.b16 %v1303, %v1302
      %v1331 = vpack.c.b16 %v1305, %v1304
      %v1332 = vpack.c.b16 %v1307, %v1306
      %v1333 = vpack.c.b16 %v1309, %v1308
      %v1334 = vpack.c.b16 %v1311, %v1310
      %v1335 = vpack.c.b16 %v1313, %v1312
      %v1336 = vpack.c.b16 %v1315, %v1314
      %v1337 = vpack.c.b16 %v1317, %v1316
      %v1338 = vpack.c.b16 %v1319, %v1318
      %v1339 = vpack.c.b16 %v1321, %v1320
      %v1359 = vsel %vm683, %v1232, 0
      %v1362 = vsel %vm683, %v1235, 0
      %v1365 = vsel %vm683, %v1238, 0
      %v1368 = vsel %vm683, %v1241, 0
      %1370 = vmatprep.subr.bf16.mxu0 0
      %1371 = vmatpush1.bf16.msra.mxu0 %v1322
      %1372 = vmatprep.subr.bf16.mxu0 0
      %1373 = vmatpush1.bf16.msra.mxu0 %v1323
      %1374 = vmatprep.subr.bf16.mxu0 0
      %1375 = vmatpush1.bf16.msra.mxu0 %v1324
      %1376 = vmatprep.subr.bf16.mxu0 0
      %1377 = vmatpush1.bf16.msra.mxu0 %v1325
      %1378 = vmatprep.subr.bf16.mxu0 0
      %1379 = vmatpush1.bf16.msra.mxu0 %v1326
      %1380 = vmatprep.subr.bf16.mxu0 0
      %1381 = vmatpush1.bf16.msra.mxu0 %v1327
      %1382 = vmatprep.subr.bf16.mxu0 0
      %1383 = vmatpush1.bf16.msra.mxu0 %v1328
      %1384 = vmatprep.subr.bf16.mxu0 0
      %1385 = vmatpush1.bf16.msra.mxu0 %v1329
      %1386 = vmatprep.subr.bf16.mxu0 0
      %1387 = vmatpush1.bf16.msra.mxu0 %v1330
      %1388 = vmatprep.subr.bf16.mxu0 0
      %1389 = vmatpush1.bf16.msra.mxu0 %v1331
      %1390 = vmatprep.subr.bf16.mxu0 0
      %1391 = vmatpush1.bf16.msra.mxu0 %v1332
      %1392 = vmatprep.subr.bf16.mxu0 0
      %1393 = vmatpush1.bf16.msra.mxu0 %v1333
      %1394 = vmatprep.subr.bf16.mxu0 0
      %1395 = vmatpush1.bf16.msra.mxu0 %v1334
      %1396 = vmatprep.subr.bf16.mxu0 0
      %1397 = vmatpush1.bf16.msra.mxu0 %v1335
      %1398 = vmatprep.subr.bf16.mxu0 0
      %1399 = vmatpush1.bf16.msra.mxu0 %v1336
      %1400 = vmatprep.subr.bf16.mxu0 0
      %1401 = vmatpush1.bf16.msra.mxu0 %v1337
      %1402 = vmatprep.mubr.bf16.mxu0 %v1231
      %1403 = vmatmul.mubr.bf16.gmra.mrb[0].mxu0 %v1230
      %v1404 = vpop.f32.mrb[0].mxu0
      %v1405 = vadd.f32 0.0, %v1404
      %v1406 = vpop.f32.mrb[0].mxu0
      %v1407 = vpop.f32.mrb[0].mxu0
      %v1408 = vadd.f32 0.0, %v1407
      %v1409 = vpop.f32.mrb[0].mxu0
      %1410 = vmatprep.mubr.bf16.mxu0 %v1234
      %1411 = vmatmul.mubr.bf16.gmra.mrb[0].mxu0 %v1233
      %v1412 = vpop.f32.mrb[0].mxu0
      %v1413 = vadd.f32 0.0, %v1412
      %v1414 = vpop.f32.mrb[0].mxu0
      %v1415 = vpop.f32.mrb[0].mxu0
      %v1416 = vadd.f32 0.0, %v1415
      %v1417 = vpop.f32.mrb[0].mxu0
      %1418 = vmatprep.mubr.bf16.mxu0 %v1237
      %1419 = vmatmul.mubr.bf16.gmra.mrb[0].mxu0 %v1236
      %v1420 = vpop.f32.mrb[0].mxu0
      %v1421 = vadd.f32 0.0, %v1420
      %v1422 = vpop.f32.mrb[0].mxu0
      %v1423 = vpop.f32.mrb[0].mxu0
      %v1424 = vadd.f32 0.0, %v1423
      %v1425 = vpop.f32.mrb[0].mxu0
      %1426 = vmatprep.mubr.bf16.mxu0 %v1240
      %1427 = vmatmul.mubr.bf16.gmra.mrb[0].mxu0 %v1239
      %v1428 = vpop.f32.mrb[0].mxu0
      %v1429 = vadd.f32 0.0, %v1428
      %v1430 = vpop.f32.mrb[0].mxu0
      %v1431 = vpop.f32.mrb[0].mxu0
      %v1432 = vadd.f32 0.0, %v1431
      %v1433 = vpop.f32.mrb[0].mxu0
      %1434 = vdwg.mxu0
      %1435 = vmatprep.subr.bf16.mxu0 0
      %1436 = vmatpush1.bf16.msra.mxu0 %v1338
      %1437 = vmatprep.subr.bf16.mxu0 0
      %1438 = vmatpush1.bf16.msra.mxu0 %v1339
      %1439 = vmatprep.subr.bf16.mxu0 0
      %1440 = vmatpush1.bf16.msra.mxu0 0
      %1441 = vmatprep.subr.bf16.mxu0 0
      %1442 = vmatpush1.bf16.msra.mxu0 0
      %1443 = vmatprep.subr.bf16.mxu0 0
      %1444 = vmatpush1.bf16.msra.mxu0 0
      %1445 = vmatprep.subr.bf16.mxu0 0
      %1446 = vmatpush1.bf16.msra.mxu0 0
      %1447 = vmatprep.subr.bf16.mxu0 0
      %1448 = vmatpush1.bf16.msra.mxu0 0
      %1449 = vmatprep.subr.bf16.mxu0 0
      %1450 = vmatpush1.bf16.msra.mxu0 0
      %1451 = vmatprep.subr.bf16.mxu0 0
      %1452 = vmatpush1.bf16.msra.mxu0 0
      %1453 = vmatprep.subr.bf16.mxu0 0
      %1454 = vmatpush1.bf16.msra.mxu0 0
      %1455 = vmatprep.subr.bf16.mxu0 0
      %1456 = vmatpush1.bf16.msra.mxu0 0
      %1457 = vmatprep.subr.bf16.mxu0 0
      %1458 = vmatpush1.bf16.msra.mxu0 0
      %1459 = vmatprep.subr.bf16.mxu0 0
      %1460 = vmatpush1.bf16.msra.mxu0 0
      %1461 = vmatprep.subr.bf16.mxu0 0
      %1462 = vmatpush1.bf16.msra.mxu0 0
      %1463 = vmatprep.subr.bf16.mxu0 0
      %1464 = vmatpush1.bf16.msra.mxu0 0
      %1465 = vmatprep.subr.bf16.mxu0 0
      %1466 = vmatpush1.bf16.msra.mxu0 0
      %1467 = vmatprep.mubr.bf16.mxu0 0
      %1468 = vmatmul.mubr.bf16.gmra.mrb[0].mxu0 %v1359
      %v1469 = vpop.f32.mrb[0].mxu0
      %v1470 = vadd.f32 %v1405, %v1469
      %v1471 = vpop.f32.mrb[0].mxu0
      %v1472 = vpop.f32.mrb[0].mxu0
      %v1473 = vadd.f32 %v1408, %v1472
      %v1474 = vpop.f32.mrb[0].mxu0
      %1475 = vmatprep.mubr.bf16.mxu0 0
      %1476 = vmatmul.mubr.bf16.gmra.mrb[0].mxu0 %v1362
      %v1477 = vpop.f32.mrb[0].mxu0
      %v1478 = vadd.f32 %v1413, %v1477
      %v1479 = vpop.f32.mrb[0].mxu0
      %v1480 = vpop.f32.mrb[0].mxu0
      %v1481 = vadd.f32 %v1416, %v1480
      %v1482 = vpop.f32.mrb[0].mxu0
      %1483 = vmatprep.mubr.bf16.mxu0 0
      %1484 = vmatmul.mubr.bf16.gmra.mrb[0].mxu0 %v1365
      %v1485 = vpop.f32.mrb[0].mxu0
      %v1486 = vadd.f32 %v1421, %v1485
      %v1487 = vpop.f32.mrb[0].mxu0
      %v1488 = vpop.f32.mrb[0].mxu0
      %v1489 = vadd.f32 %v1424, %v1488
      %v1490 = vpop.f32.mrb[0].mxu0
      %1491 = vmatprep.mubr.bf16.mxu0 0
      %1492 = vmatmul.mubr.bf16.gmra.mrb[0].mxu0 %v1368
      %v1493 = vpop.f32.mrb[0].mxu0
      %v1494 = vadd.f32 %v1429, %v1493
      %v1495 = vpop.f32.mrb[0].mxu0
      %v1496 = vpop.f32.mrb[0].mxu0
      %v1497 = vadd.f32 %v1432, %v1496
      %v1498 = vpop.f32.mrb[0].mxu0
      %1499 = vdwg.mxu0
      %v1500 = vadd.f32 %v1106, %v1470
      %v1501 = vadd.f32 %v1109, %v1473
      %v1502 = vadd.f32 %v1114, %v1478
      %v1503 = vadd.f32 %v1117, %v1481
      %v1504 = vadd.f32 %v1122, %v1486
      %v1505 = vadd.f32 %v1125, %v1489
      %v1506 = vadd.f32 %v1130, %v1494
      %v1507 = vadd.f32 %v1133, %v1497
      %v1508 = vld [vmem:[%s1136] sm:$0xff]
      %v1509 = vld [vmem:[%s1136 + $0x8] sm:$0xf]
      %v1510 = vld [vmem:[%s1136 + $0xc] sm:$0x11]
      %v1511 = vld [vmem:[%s1136 + $0x14] sm:$0x1]
      %v1512 = vld [vmem:[%s1136 + $0x18] sm:$0xff]
      %v1513 = vld [vmem:[%s1136 + $0x20] sm:$0xf]
      %v1514 = vld [vmem:[%s1136 + $0x24] sm:$0x11]
      %v1515 = vld [vmem:[%s1136 + $0x2c] sm:$0x1]
      %v1516 = vld [vmem:[%s1136 + $0x30] sm:$0xff]
      %v1517 = vld [vmem:[%s1136 + $0x38] sm:$0xf]
      %v1518 = vld [vmem:[%s1136 + $0x3c] sm:$0x11]
      %v1519 = vld [vmem:[%s1136 + $0x44] sm:$0x1]
      %v1520 = vld [vmem:[%s1136 + $0x48] sm:$0xff]
      %v1521 = vld [vmem:[%s1136 + $0x50] sm:$0xf]
      %v1522 = vld [vmem:[%s1136 + $0x54] sm:$0x11]
      %v1523 = vld [vmem:[%s1136 + $0x5c] sm:$0x1]
      %v1524 = vld [vmem:[%s1136 + $0x60] sm:$0xff]
      %v1525 = vld [vmem:[%s1136 + $0x68] sm:$0xf]
      %v1526 = vld [vmem:[%s1136 + $0x6c] sm:$0x11]
      %v1527 = vld [vmem:[%s1136 + $0x74] sm:$0x1]
      %v1528 = vld [vmem:[%s1136 + $0x78] sm:$0xff]
      %v1529 = vld [vmem:[%s1136 + $0x80] sm:$0xf]
      %v1530 = vld [vmem:[%s1136 + $0x84] sm:$0x11]
      %v1531 = vld [vmem:[%s1136 + $0x8c] sm:$0x1]
      %v1532 = vld [vmem:[%s1136 + $0x90] sm:$0xff]
      %v1533 = vld [vmem:[%s1136 + $0x98] sm:$0xf]
      %v1534 = vld [vmem:[%s1136 + $0x9c] sm:$0x11]
      %v1535 = vld [vmem:[%s1136 + $0xa4] sm:$0x1]
      %v1536 = vld [vmem:[%s1136 + $0xa8] sm:$0xff]
      %v1537 = vld [vmem:[%s1136 + $0xb0] sm:$0xf]
      %v1538 = vld [vmem:[%s1136 + $0xb4] sm:$0x11]
      %v1539 = vld [vmem:[%s1136 + $0xbc] sm:$0x1]
      %v1541 = vshrl.u32 %v1508, 16
      %v1543 = vrot.slane %v1541, 4
      %v1544 = vshll.u32 %v1508, 16
      %v1546 = vrot.slane %v1544, 5
      %v1547 = vor.u32 %v1543, %v1546
      %v1548 = vrot.slane %v1547, 4
      %v1550 = vshll.u32 %v1510, 16
      %v1552 = vrot.slane %v1550, 5
      %v1553 = vsel %vm269, %v1548, %v1552
      %v1555 = vshrl.u32 %v1509, 16
      %v1557 = vrot.slane %v1555, 4
      %v1558 = vshll.u32 %v1509, 16
      %v1560 = vrot.slane %v1558, 5
      %v1561 = vor.u32 %v1557, %v1560
      %v1562 = vrot.slane %v1561, 4
      %v1564 = vshll.u32 %v1511, 16
      %v1566 = vrot.slane %v1564, 5
      %v1567 = vsel %vm269, %v1562, %v1566
      %v1569 = vshrl.u32 %v1512, 16
      %v1571 = vrot.slane %v1569, 4
      %v1572 = vshll.u32 %v1512, 16
      %v1574 = vrot.slane %v1572, 5
      %v1575 = vor.u32 %v1571, %v1574
      %v1576 = vrot.slane %v1575, 4
      %v1578 = vshll.u32 %v1514, 16
      %v1580 = vrot.slane %v1578, 5
      %v1581 = vsel %vm269, %v1576, %v1580
      %v1583 = vshrl.u32 %v1513, 16
      %v1585 = vrot.slane %v1583, 4
      %v1586 = vshll.u32 %v1513, 16
      %v1588 = vrot.slane %v1586, 5
      %v1589 = vor.u32 %v1585, %v1588
      %v1590 = vrot.slane %v1589, 4
      %v1592 = vshll.u32 %v1515, 16
      %v1594 = vrot.slane %v1592, 5
      %v1595 = vsel %vm269, %v1590, %v1594
      %v1597 = vshrl.u32 %v1516, 16
      %v1599 = vrot.slane %v1597, 4
      %v1600 = vshll.u32 %v1516, 16
      %v1602 = vrot.slane %v1600, 5
      %v1603 = vor.u32 %v1599, %v1602
      %v1604 = vrot.slane %v1603, 4
      %v1606 = vshll.u32 %v1518, 16
      %v1608 = vrot.slane %v1606, 5
      %v1609 = vsel %vm269, %v1604, %v1608
      %v1611 = vshrl.u32 %v1517, 16
      %v1613 = vrot.slane %v1611, 4
      %v1614 = vshll.u32 %v1517, 16
      %v1616 = vrot.slane %v1614, 5
      %v1617 = vor.u32 %v1613, %v1616
      %v1618 = vrot.slane %v1617, 4
      %v1620 = vshll.u32 %v1519, 16
      %v1622 = vrot.slane %v1620, 5
      %v1623 = vsel %vm269, %v1618, %v1622
      %v1625 = vshrl.u32 %v1520, 16
      %v1627 = vrot.slane %v1625, 4
      %v1628 = vshll.u32 %v1520, 16
      %v1630 = vrot.slane %v1628, 5
      %v1631 = vor.u32 %v1627, %v1630
      %v1632 = vrot.slane %v1631, 4
      %v1634 = vshll.u32 %v1522, 16
      %v1636 = vrot.slane %v1634, 5
      %v1637 = vsel %vm269, %v1632, %v1636
      %v1639 = vshrl.u32 %v1521, 16
      %v1641 = vrot.slane %v1639, 4
      %v1642 = vshll.u32 %v1521, 16
      %v1644 = vrot.slane %v1642, 5
      %v1645 = vor.u32 %v1641, %v1644
      %v1646 = vrot.slane %v1645, 4
      %v1648 = vshll.u32 %v1523, 16
      %v1650 = vrot.slane %v1648, 5
      %v1651 = vsel %vm269, %v1646, %v1650
      %v1653 = vshrl.u32 %v1524, 16
      %v1655 = vrot.slane %v1653, 4
      %v1656 = vshll.u32 %v1524, 16
      %v1658 = vrot.slane %v1656, 5
      %v1659 = vor.u32 %v1655, %v1658
      %v1660 = vrot.slane %v1659, 4
      %v1662 = vshll.u32 %v1526, 16
      %v1664 = vrot.slane %v1662, 5
      %v1665 = vsel %vm269, %v1660, %v1664
      %v1667 = vshrl.u32 %v1525, 16
      %v1669 = vrot.slane %v1667, 4
      %v1670 = vshll.u32 %v1525, 16
      %v1672 = vrot.slane %v1670, 5
      %v1673 = vor.u32 %v1669, %v1672
      %v1674 = vrot.slane %v1673, 4
      %v1676 = vshll.u32 %v1527, 16
      %v1678 = vrot.slane %v1676, 5
      %v1679 = vsel %vm269, %v1674, %v1678
      %v1681 = vshrl.u32 %v1528, 16
      %v1683 = vrot.slane %v1681, 4
      %v1684 = vshll.u32 %v1528, 16
      %v1686 = vrot.slane %v1684, 5
      %v1687 = vor.u32 %v1683, %v1686
      %v1688 = vrot.slane %v1687, 4
      %v1690 = vshll.u32 %v1530, 16
      %v1692 = vrot.slane %v1690, 5
      %v1693 = vsel %vm269, %v1688, %v1692
      %v1695 = vshrl.u32 %v1529, 16
      %v1697 = vrot.slane %v1695, 4
      %v1698 = vshll.u32 %v1529, 16
      %v1700 = vrot.slane %v1698, 5
      %v1701 = vor.u32 %v1697, %v1700
      %v1702 = vrot.slane %v1701, 4
      %v1704 = vshll.u32 %v1531, 16
      %v1706 = vrot.slane %v1704, 5
      %v1707 = vsel %vm269, %v1702, %v1706
      %v1709 = vshrl.u32 %v1532, 16
      %v1711 = vrot.slane %v1709, 4
      %v1712 = vshll.u32 %v1532, 16
      %v1714 = vrot.slane %v1712, 5
      %v1715 = vor.u32 %v1711, %v1714
      %v1716 = vrot.slane %v1715, 4
      %v1718 = vshll.u32 %v1534, 16
      %v1720 = vrot.slane %v1718, 5
      %v1721 = vsel %vm269, %v1716, %v1720
      %v1723 = vshrl.u32 %v1533, 16
      %v1725 = vrot.slane %v1723, 4
      %v1726 = vshll.u32 %v1533, 16
      %v1728 = vrot.slane %v1726, 5
      %v1729 = vor.u32 %v1725, %v1728
      %v1730 = vrot.slane %v1729, 4
      %v1732 = vshll.u32 %v1535, 16
      %v1734 = vrot.slane %v1732, 5
      %v1735 = vsel %vm269, %v1730, %v1734
      %v1737 = vshrl.u32 %v1536, 16
      %v1739 = vrot.slane %v1737, 4
      %v1740 = vshll.u32 %v1536, 16
      %v1742 = vrot.slane %v1740, 5
      %v1743 = vor.u32 %v1739, %v1742
      %v1744 = vrot.slane %v1743, 4
      %v1746 = vshll.u32 %v1538, 16
      %v1748 = vrot.slane %v1746, 5
      %v1749 = vsel %vm269, %v1744, %v1748
      %v1751 = vshrl.u32 %v1537, 16
      %v1753 = vrot.slane %v1751, 4
      %v1754 = vshll.u32 %v1537, 16
      %v1756 = vrot.slane %v1754, 5
      %v1757 = vor.u32 %v1753, %v1756
      %v1758 = vrot.slane %v1757, 4
      %v1760 = vshll.u32 %v1539, 16
      %v1762 = vrot.slane %v1760, 5
      %v1763 = vsel %vm269, %v1758, %v1762
      %s1764 = scalar_lea.vmem %s1, 432
      %v1765 = vld [vmem:[%s1764] sm:$0xf]
      %v1766 = vld [vmem:[%s1764 + $0x4] sm:$0xf]
      %v1767 = vld [vmem:[%s1764 + $0x8] sm:$0xf]
      %v1768 = vld [vmem:[%s1764 + $0xc] sm:$0xf]
      %v1769 = vld [vmem:[%s1764 + $0x10] sm:$0xf]
      %v1770 = vld [vmem:[%s1764 + $0x14] sm:$0xf]
      %v1771 = vld [vmem:[%s1764 + $0x18] sm:$0xf]
      %v1772 = vld [vmem:[%s1764 + $0x1c] sm:$0xf]
      %v1773 = vld [vmem:[%s1764 + $0x20] sm:$0xf]
      %v1774 = vld [vmem:[%s1764 + $0x24] sm:$0xf]
      %v1775 = vld [vmem:[%s1764 + $0x28] sm:$0xf]
      %v1776 = vld [vmem:[%s1764 + $0x2c] sm:$0xf]
      %v1777 = vld [vmem:[%s1764 + $0x30] sm:$0xf]
      %v1778 = vld [vmem:[%s1764 + $0x34] sm:$0xf]
      %v1779 = vld [vmem:[%s1764 + $0x38] sm:$0xf]
      %v1780 = vld [vmem:[%s1764 + $0x3c] sm:$0xf]
      %v1781 = vld [vmem:[%s1764 + $0x40] sm:$0xf]
      %v1782 = vld [vmem:[%s1764 + $0x44] sm:$0xf]
      %v1783 = vld [vmem:[%s1764 + $0x48] sm:$0xf]
      %v1784 = vld [vmem:[%s1764 + $0x4c] sm:$0xf]
      %v1785 = vld [vmem:[%s1764 + $0x50] sm:$0xf]
      %v1786 = vld [vmem:[%s1764 + $0x54] sm:$0xf]
      %v1787 = vld [vmem:[%s1764 + $0x58] sm:$0xf]
      %v1788 = vld [vmem:[%s1764 + $0x5c] sm:$0xf]
      %v1789 = vld [vmem:[%s1764 + $0x60] sm:$0xf]
      %v1790 = vld [vmem:[%s1764 + $0x64] sm:$0xf]
      %v1791 = vld [vmem:[%s1764 + $0x68] sm:$0xf]
      %v1792 = vld [vmem:[%s1764 + $0x6c] sm:$0xf]
      %v1793 = vld [vmem:[%s1764 + $0x70] sm:$0xf]
      %v1794 = vld [vmem:[%s1764 + $0x74] sm:$0xf]
      %v1795 = vld [vmem:[%s1764 + $0x78] sm:$0xf]
      %v1796 = vld [vmem:[%s1764 + $0x7c] sm:$0xf]
      %v1797 = vld [vmem:[%s1764 + $0x80] sm:$0xf]
      %v1798 = vld [vmem:[%s1764 + $0x84] sm:$0xf]
      %v1799 = vld [vmem:[%s1764 + $0x88] sm:$0xf]
      %v1800 = vld [vmem:[%s1764 + $0x8c] sm:$0xf]
      %v1801 = vunpack.c.l.b16 %v1553
      %v1802 = vunpack.c.h.b16 %v1553
      %v1803 = vunpack.c.l.b16 %v1567
      %v1804 = vunpack.c.l.b16 %v1581
      %v1805 = vunpack.c.h.b16 %v1581
      %v1806 = vunpack.c.l.b16 %v1595
      %v1807 = vunpack.c.l.b16 %v1609
      %v1808 = vunpack.c.h.b16 %v1609
      %v1809 = vunpack.c.l.b16 %v1623
      %v1810 = vunpack.c.l.b16 %v1637
      %v1811 = vunpack.c.h.b16 %v1637
      %v1812 = vunpack.c.l.b16 %v1651
      %v1813 = vunpack.c.l.b16 %v1665
      %v1814 = vunpack.c.h.b16 %v1665
      %v1815 = vunpack.c.l.b16 %v1679
      %v1816 = vunpack.c.l.b16 %v1693
      %v1817 = vunpack.c.h.b16 %v1693
      %v1818 = vunpack.c.l.b16 %v1707
      %v1819 = vunpack.c.l.b16 %v1721
      %v1820 = vunpack.c.h.b16 %v1721
      %v1821 = vunpack.c.l.b16 %v1735
      %v1822 = vunpack.c.l.b16 %v1749
      %v1823 = vunpack.c.h.b16 %v1749
      %v1824 = vunpack.c.l.b16 %v1763
      %v1825 = vpack.c.b16 %v1804, %v1801
      %v1826 = vpack.c.b16 %v1805, %v1802
      %v1827 = vpack.c.b16 %v1806, %v1803
      %v1828 = vpack.c.b16 %v1810, %v1807
      %v1829 = vpack.c.b16 %v1811, %v1808
      %v1830 = vpack.c.b16 %v1812, %v1809
      %v1831 = vpack.c.b16 %v1816, %v1813
      %v1832 = vpack.c.b16 %v1817, %v1814
      %v1833 = vpack.c.b16 %v1818, %v1815
      %v1834 = vpack.c.b16 %v1822, %v1819
      %v1835 = vpack.c.b16 %v1823, %v1820
      %v1836 = vpack.c.b16 %v1824, %v1821
      %v1881 = vunpack.c.l.b16 %v1765
      %v1882 = vunpack.c.l.b16 %v1766
      %v1883 = vunpack.c.l.b16 %v1767
      %v1884 = vunpack.c.l.b16 %v1768
      %v1885 = vunpack.c.l.b16 %v1769
      %v1886 = vunpack.c.l.b16 %v1770
      %v1887 = vunpack.c.l.b16 %v1771
      %v1888 = vunpack.c.l.b16 %v1772
      %v1889 = vunpack.c.l.b16 %v1773
      %v1890 = vunpack.c.l.b16 %v1774
      %v1891 = vunpack.c.l.b16 %v1775
      %v1892 = vunpack.c.l.b16 %v1776
      %v1893 = vunpack.c.l.b16 %v1777
      %v1894 = vunpack.c.l.b16 %v1778
      %v1895 = vunpack.c.l.b16 %v1779
      %v1896 = vunpack.c.l.b16 %v1780
      %v1897 = vunpack.c.l.b16 %v1781
      %v1898 = vunpack.c.l.b16 %v1782
      %v1899 = vunpack.c.l.b16 %v1783
      %v1900 = vunpack.c.l.b16 %v1784
      %v1901 = vunpack.c.l.b16 %v1785
      %v1902 = vunpack.c.l.b16 %v1786
      %v1903 = vunpack.c.l.b16 %v1787
      %v1904 = vunpack.c.l.b16 %v1788
      %v1905 = vunpack.c.l.b16 %v1789
      %v1906 = vunpack.c.l.b16 %v1790
      %v1907 = vunpack.c.l.b16 %v1791
      %v1908 = vunpack.c.l.b16 %v1792
      %v1909 = vunpack.c.l.b16 %v1793
      %v1910 = vunpack.c.l.b16 %v1794
      %v1911 = vunpack.c.l.b16 %v1795
      %v1912 = vunpack.c.l.b16 %v1796
      %v1913 = vunpack.c.l.b16 %v1797
      %v1914 = vunpack.c.l.b16 %v1798
      %v1915 = vunpack.c.l.b16 %v1799
      %v1916 = vunpack.c.l.b16 %v1800
      %v1917 = vpack.c.b16 %v1882, %v1881
      %v1918 = vpack.c.b16 %v1884, %v1883
      %v1919 = vpack.c.b16 %v1886, %v1885
      %v1920 = vpack.c.b16 %v1888, %v1887
      %v1921 = vpack.c.b16 %v1890, %v1889
      %v1922 = vpack.c.b16 %v1892, %v1891
      %v1923 = vpack.c.b16 %v1894, %v1893
      %v1924 = vpack.c.b16 %v1896, %v1895
      %v1925 = vpack.c.b16 %v1898, %v1897
      %v1926 = vpack.c.b16 %v1900, %v1899
      %v1927 = vpack.c.b16 %v1902, %v1901
      %v1928 = vpack.c.b16 %v1904, %v1903
      %v1929 = vpack.c.b16 %v1906, %v1905
      %v1930 = vpack.c.b16 %v1908, %v1907
      %v1931 = vpack.c.b16 %v1910, %v1909
      %v1932 = vpack.c.b16 %v1912, %v1911
      %v1933 = vpack.c.b16 %v1914, %v1913
      %v1934 = vpack.c.b16 %v1916, %v1915
      %v1954 = vsel %vm683, %v1827, 0
      %v1957 = vsel %vm683, %v1830, 0
      %v1960 = vsel %vm683, %v1833, 0
      %v1963 = vsel %vm683, %v1836, 0
      %1965 = vmatprep.subr.bf16.mxu0 0
      %1966 = vmatpush1.bf16.msra.mxu0 %v1917
      %1967 = vmatprep.subr.bf16.mxu0 0
      %1968 = vmatpush1.bf16.msra.mxu0 %v1918
      %1969 = vmatprep.subr.bf16.mxu0 0
      %1970 = vmatpush1.bf16.msra.mxu0 %v1919
      %1971 = vmatprep.subr.bf16.mxu0 0
      %1972 = vmatpush1.bf16.msra.mxu0 %v1920
      %1973 = vmatprep.subr.bf16.mxu0 0
      %1974 = vmatpush1.bf16.msra.mxu0 %v1921
      %1975 = vmatprep.subr.bf16.mxu0 0
      %1976 = vmatpush1.bf16.msra.mxu0 %v1922
      %1977 = vmatprep.subr.bf16.mxu0 0
      %1978 = vmatpush1.bf16.msra.mxu0 %v1923
      %1979 = vmatprep.subr.bf16.mxu0 0
      %1980 = vmatpush1.bf16.msra.mxu0 %v1924
      %1981 = vmatprep.subr.bf16.mxu0 0
      %1982 = vmatpush1.bf16.msra.mxu0 %v1925
      %1983 = vmatprep.subr.bf16.mxu0 0
      %1984 = vmatpush1.bf16.msra.mxu0 %v1926
      %1985 = vmatprep.subr.bf16.mxu0 0
      %1986 = vmatpush1.bf16.msra.mxu0 %v1927
      %1987 = vmatprep.subr.bf16.mxu0 0
      %1988 = vmatpush1.bf16.msra.mxu0 %v1928
      %1989 = vmatprep.subr.bf16.mxu0 0
      %1990 = vmatpush1.bf16.msra.mxu0 %v1929
      %1991 = vmatprep.subr.bf16.mxu0 0
      %1992 = vmatpush1.bf16.msra.mxu0 %v1930
      %1993 = vmatprep.subr.bf16.mxu0 0
      %1994 = vmatpush1.bf16.msra.mxu0 %v1931
      %1995 = vmatprep.subr.bf16.mxu0 0
      %1996 = vmatpush1.bf16.msra.mxu0 %v1932
      %1997 = vmatprep.mubr.bf16.mxu0 %v1826
      %1998 = vmatmul.mubr.bf16.gmra.mrb[0].mxu0 %v1825
      %v1999 = vpop.f32.mrb[0].mxu0
      %v2000 = vadd.f32 0.0, %v1999
      %v2001 = vpop.f32.mrb[0].mxu0
      %v2002 = vpop.f32.mrb[0].mxu0
      %v2003 = vadd.f32 0.0, %v2002
      %v2004 = vpop.f32.mrb[0].mxu0
      %2005 = vmatprep.mubr.bf16.mxu0 %v1829
      %2006 = vmatmul.mubr.bf16.gmra.mrb[0].mxu0 %v1828
      %v2007 = vpop.f32.mrb[0].mxu0
      %v2008 = vadd.f32 0.0, %v2007
      %v2009 = vpop.f32.mrb[0].mxu0
      %v2010 = vpop.f32.mrb[0].mxu0
      %v2011 = vadd.f32 0.0, %v2010
      %v2012 = vpop.f32.mrb[0].mxu0
      %2013 = vmatprep.mubr.bf16.mxu0 %v1832
      %2014 = vmatmul.mubr.bf16.gmra.mrb[0].mxu0 %v1831
      %v2015 = vpop.f32.mrb[0].mxu0
      %v2016 = vadd.f32 0.0, %v2015
      %v2017 = vpop.f32.mrb[0].mxu0
      %v2018 = vpop.f32.mrb[0].mxu0
      %v2019 = vadd.f32 0.0, %v2018
      %v2020 = vpop.f32.mrb[0].mxu0
      %2021 = vmatprep.mubr.bf16.mxu0 %v1835
      %2022 = vmatmul.mubr.bf16.gmra.mrb[0].mxu0 %v1834
      %v2023 = vpop.f32.mrb[0].mxu0
      %v2024 = vadd.f32 0.0, %v2023
      %v2025 = vpop.f32.mrb[0].mxu0
      %v2026 = vpop.f32.mrb[0].mxu0
      %v2027 = vadd.f32 0.0, %v2026
      %v2028 = vpop.f32.mrb[0].mxu0
      %2029 = vdwg.mxu0
      %2030 = vmatprep.subr.bf16.mxu0 0
      %2031 = vmatpush1.bf16.msra.mxu0 %v1933
      %2032 = vmatprep.subr.bf16.mxu0 0
      %2033 = vmatpush1.bf16.msra.mxu0 %v1934
      %2034 = vmatprep.subr.bf16.mxu0 0
      %2035 = vmatpush1.bf16.msra.mxu0 0
      %2036 = vmatprep.subr.bf16.mxu0 0
      %2037 = vmatpush1.bf16.msra.mxu0 0
      %2038 = vmatprep.subr.bf16.mxu0 0
      %2039 = vmatpush1.bf16.msra.mxu0 0
      %2040 = vmatprep.subr.bf16.mxu0 0
      %2041 = vmatpush1.bf16.msra.mxu0 0
      %2042 = vmatprep.subr.bf16.mxu0 0
      %2043 = vmatpush1.bf16.msra.mxu0 0
      %2044 = vmatprep.subr.bf16.mxu0 0
      %2045 = vmatpush1.bf16.msra.mxu0 0
      %2046 = vmatprep.subr.bf16.mxu0 0
      %2047 = vmatpush1.bf16.msra.mxu0 0
      %2048 = vmatprep.subr.bf16.mxu0 0
      %2049 = vmatpush1.bf16.msra.mxu0 0
      %2050 = vmatprep.subr.bf16.mxu0 0
      %2051 = vmatpush1.bf16.msra.mxu0 0
      %2052 = vmatprep.subr.bf16.mxu0 0
      %2053 = vmatpush1.bf16.msra.mxu0 0
      %2054 = vmatprep.subr.bf16.mxu0 0
      %2055 = vmatpush1.bf16.msra.mxu0 0
      %2056 = vmatprep.subr.bf16.mxu0 0
      %2057 = vmatpush1.bf16.msra.mxu0 0
      %2058 = vmatprep.subr.bf16.mxu0 0
      %2059 = vmatpush1.bf16.msra.mxu0 0
      %2060 = vmatprep.subr.bf16.mxu0 0
      %2061 = vmatpush1.bf16.msra.mxu0 0
      %2062 = vmatprep.mubr.bf16.mxu0 0
      %2063 = vmatmul.mubr.bf16.gmra.mrb[0].mxu0 %v1954
      %v2064 = vpop.f32.mrb[0].mxu0
      %v2065 = vadd.f32 %v2000, %v2064
      %v2066 = vpop.f32.mrb[0].mxu0
      %v2067 = vpop.f32.mrb[0].mxu0
      %v2068 = vadd.f32 %v2003, %v2067
      %v2069 = vpop.f32.mrb[0].mxu0
      %2070 = vmatprep.mubr.bf16.mxu0 0
      %2071 = vmatmul.mubr.bf16.gmra.mrb[0].mxu0 %v1957
      %v2072 = vpop.f32.mrb[0].mxu0
      %v2073 = vadd.f32 %v2008, %v2072
      %v2074 = vpop.f32.mrb[0].mxu0
      %v2075 = vpop.f32.mrb[0].mxu0
      %v2076 = vadd.f32 %v2011, %v2075
      %v2077 = vpop.f32.mrb[0].mxu0
      %2078 = vmatprep.mubr.bf16.mxu0 0
      %2079 = vmatmul.mubr.bf16.gmra.mrb[0].mxu0 %v1960
      %v2080 = vpop.f32.mrb[0].mxu0
      %v2081 = vadd.f32 %v2016, %v2080
      %v2082 = vpop.f32.mrb[0].mxu0
      %v2083 = vpop.f32.mrb[0].mxu0
      %v2084 = vadd.f32 %v2019, %v2083
      %v2085 = vpop.f32.mrb[0].mxu0
      %2086 = vmatprep.mubr.bf16.mxu0 0
      %2087 = vmatmul.mubr.bf16.gmra.mrb[0].mxu0 %v1963
      %v2088 = vpop.f32.mrb[0].mxu0
      %v2089 = vadd.f32 %v2024, %v2088
      %v2090 = vpop.f32.mrb[0].mxu0
      %v2091 = vpop.f32.mrb[0].mxu0
      %v2092 = vadd.f32 %v2027, %v2091
      %v2093 = vpop.f32.mrb[0].mxu0
      %2094 = vdwg.mxu0
      %v2095 = vadd.f32 %v1500, %v2065
      %v2096 = vadd.f32 %v1501, %v2068
      %v2097 = vadd.f32 %v1502, %v2073
      %v2098 = vadd.f32 %v1503, %v2076
      %v2099 = vadd.f32 %v1504, %v2081
      %v2100 = vadd.f32 %v1505, %v2084
      %v2101 = vadd.f32 %v1506, %v2089
      %v2102 = vadd.f32 %v1507, %v2092
      %v2103 = vadd.f32 %v2095, %v2096
      %v2104 = vadd.f32 %v2103, %v2097
      %v2105 = vadd.f32 %v2104, %v2098
      %v2106 = vadd.f32 %v2105, %v2099
      %v2107 = vadd.f32 %v2106, %v2100
      %v2108 = vadd.f32 %v2107, %v2101
      %v2109 = vadd.f32 %v2108, %v2102
      %v2110 = vrot.slane %v2109, 4
      %v2111 = vadd.f32 %v2109, %v2110
      %v2112 = vrot.slane %v2111, 2
      %v2113 = vadd.f32 %v2111, %v2112
      %v2114 = vrot.slane %v2113, 1
      %v2115 = vadd.f32 %v2113, %v2114
      %2117 = vrot.lane.b32.xlu0 %v2115, 112
      %v2118 = vpop.permute.xlu0 %2117
      %v2120 = vadd.f32 %v2115, %v2118
      %2121 = vrot.lane.b32.xlu0 %v2115, 96
      %v2122 = vpop.permute.xlu0 %2121
      %v2124 = vadd.f32 %v2120, %v2122
      %2125 = vrot.lane.b32.xlu0 %v2115, 80
      %v2126 = vpop.permute.xlu0 %2125
      %v2128 = vadd.f32 %v2124, %v2126
      %2129 = vrot.lane.b32.xlu0 %v2115, 64
      %v2130 = vpop.permute.xlu0 %2129
      %v2132 = vadd.f32 %v2128, %v2130
      %2133 = vrot.lane.b32.xlu0 %v2115, 48
      %v2134 = vpop.permute.xlu0 %2133
      %v2136 = vadd.f32 %v2132, %v2134
      %2137 = vrot.lane.b32.xlu0 %v2115, 32
      %v2138 = vpop.permute.xlu0 %2137
      %v2140 = vadd.f32 %v2136, %v2138
      %2141 = vrot.lane.b32.xlu0 %v2115, 16
      %v2142 = vpop.permute.xlu0 %2141
      %v2144 = vadd.f32 %v2140, %v2142
      %v2145 = vrcp.pop 512.0
      %v2146 = vmul.f32 %v2144, %v2145
      %2148 = vrot.lane.b32.xlu0 %v2146, 16
      %v2149 = vpop.permute.xlu0 %2148
      %2151 = vrot.lane.b32.xlu0 %v2146, 32
      %v2152 = vpop.permute.xlu0 %2151
      %2154 = vrot.lane.b32.xlu0 %v2146, 48
      %v2155 = vpop.permute.xlu0 %2154
      %2157 = vrot.lane.b32.xlu0 %v2146, 64
      %v2158 = vpop.permute.xlu0 %2157
      %2160 = vrot.lane.b32.xlu0 %v2146, 80
      %v2161 = vpop.permute.xlu0 %2160
      %2163 = vrot.lane.b32.xlu0 %v2146, 96
      %v2164 = vpop.permute.xlu0 %2163
      %2166 = vrot.lane.b32.xlu0 %v2146, 112
      %v2167 = vpop.permute.xlu0 %2166
      %vm2169 = vcmask 130048
      %v2170 = vsel %vm2169, %v2146, %v2149
      %v2171 = vsel %vm683, %v2170, %v2152
      %vm2172 = vcmask 392192
      %v2173 = vsel %vm2172, %v2171, %v2155
      %vm2174 = vcmask 523264
      %v2175 = vsel %vm2174, %v2173, %v2158
      %vm2176 = vcmask 654336
      %v2177 = vsel %vm2176, %v2175, %v2161
      %vm2178 = vcmask 785408
      %v2179 = vsel %vm2178, %v2177, %v2164
      %vm2180 = vcmask 916480
      %v2181 = vsel %vm2180, %v2179, %v2167
      %v2182 = vlaneseq
      %v2183 = vshrl.u32 %v2182, 7
      %v2184 = vsub.s32 0, %v2183
      %v2185 = vrot.slane %v2181, %v2184
      %v2186 = vsub.f32 %v2095, %v2185
      %v2187 = vsub.f32 %v2096, %v2185
      %v2188 = vsub.f32 %v2097, %v2185
      %v2189 = vsub.f32 %v2098, %v2185
      %v2190 = vsub.f32 %v2099, %v2185
      %v2191 = vsub.f32 %v2100, %v2185
      %v2192 = vsub.f32 %v2101, %v2185
      %v2193 = vsub.f32 %v2102, %v2185
      %v2194 = vmul.f32 %v2186, %v2186
      %v2195 = vmul.f32 %v2187, %v2187
      %v2196 = vmul.f32 %v2188, %v2188
      %v2197 = vmul.f32 %v2189, %v2189
      %v2198 = vmul.f32 %v2190, %v2190
      %v2199 = vmul.f32 %v2191, %v2191
      %v2200 = vmul.f32 %v2192, %v2192
      %v2201 = vmul.f32 %v2193, %v2193
      %v2202 = vadd.f32 %v2194, %v2195
      %v2203 = vadd.f32 %v2202, %v2196
      %v2204 = vadd.f32 %v2203, %v2197
      %v2205 = vadd.f32 %v2204, %v2198
      %v2206 = vadd.f32 %v2205, %v2199
      %v2207 = vadd.f32 %v2206, %v2200
      %v2208 = vadd.f32 %v2207, %v2201
      %v2209 = vrot.slane %v2208, 4
      %v2210 = vadd.f32 %v2208, %v2209
      %v2211 = vrot.slane %v2210, 2
      %v2212 = vadd.f32 %v2210, %v2211
      %v2213 = vrot.slane %v2212, 1
      %v2214 = vadd.f32 %v2212, %v2213
      %2216 = vrot.lane.b32.xlu0 %v2214, 112
      %v2217 = vpop.permute.xlu0 %2216
      %v2219 = vadd.f32 %v2214, %v2217
      %2220 = vrot.lane.b32.xlu0 %v2214, 96
      %v2221 = vpop.permute.xlu0 %2220
      %v2223 = vadd.f32 %v2219, %v2221
      %2224 = vrot.lane.b32.xlu0 %v2214, 80
      %v2225 = vpop.permute.xlu0 %2224
      %v2227 = vadd.f32 %v2223, %v2225
      %2228 = vrot.lane.b32.xlu0 %v2214, 64
      %v2229 = vpop.permute.xlu0 %2228
      %v2231 = vadd.f32 %v2227, %v2229
      %2232 = vrot.lane.b32.xlu0 %v2214, 48
      %v2233 = vpop.permute.xlu0 %2232
      %v2235 = vadd.f32 %v2231, %v2233
      %2236 = vrot.lane.b32.xlu0 %v2214, 32
      %v2237 = vpop.permute.xlu0 %2236
      %v2239 = vadd.f32 %v2235, %v2237
      %2240 = vrot.lane.b32.xlu0 %v2214, 16
      %v2241 = vpop.permute.xlu0 %2240
      %v2243 = vadd.f32 %v2239, %v2241
      %v2244 = vmul.f32 %v2243, %v2145
      %v2245 = vld [vmem:[%s2] sm:$0x1]
      %v2246 = vadd.f32 %v2244, 1e-05
      %v2247 = vrsqrt.pop %v2246
      %v2248 = vmul.f32 %v2245, %v2247
      %v2250 = vlaneseq
      %v2251 = vshrl.u32 %v2250, 7
      %v2252 = vsub.s32 0, %v2251
      %v2253 = vrot.slane %v2248, %v2252
      %2254 = vrot.lane.b32.xlu0 %v2253, 16
      %v2255 = vpop.permute.xlu0 %2254
      %2257 = vrot.lane.b32.xlu0 %v2253, 32
      %v2258 = vpop.permute.xlu0 %2257
      %2260 = vrot.lane.b32.xlu0 %v2253, 48
      %v2261 = vpop.permute.xlu0 %2260
      %2263 = vrot.lane.b32.xlu0 %v2253, 64
      %v2264 = vpop.permute.xlu0 %2263
      %2266 = vrot.lane.b32.xlu0 %v2253, 80
      %v2267 = vpop.permute.xlu0 %2266
      %2269 = vrot.lane.b32.xlu0 %v2253, 96
      %v2270 = vpop.permute.xlu0 %2269
      %2272 = vrot.lane.b32.xlu0 %v2253, 112
      %v2273 = vpop.permute.xlu0 %2272
      %v2275 = vsel %vm2169, %v2248, %v2255
      %v2276 = vsel %vm683, %v2275, %v2258
      %v2277 = vsel %vm2172, %v2276, %v2261
      %v2278 = vsel %vm2174, %v2277, %v2264
      %v2279 = vsel %vm2176, %v2278, %v2267
      %v2280 = vsel %vm2178, %v2279, %v2270
      %v2281 = vsel %vm2180, %v2280, %v2273
      %v2282 = vlaneseq
      %v2283 = vshrl.u32 %v2282, 7
      %v2284 = vsub.s32 0, %v2283
      %v2285 = vrot.slane %v2281, %v2284
      %v2286 = vmul.f32 %v2186, %v2285
      %v2287 = vmul.f32 %v2187, %v2285
      %v2288 = vmul.f32 %v2188, %v2285
      %v2289 = vmul.f32 %v2189, %v2285
      %v2290 = vmul.f32 %v2190, %v2285
      %v2291 = vmul.f32 %v2191, %v2285
      %v2292 = vmul.f32 %v2192, %v2285
      %v2293 = vmul.f32 %v2193, %v2285
      %v2294 = vld [vmem:[%s3] sm:$0x1]
      %v2296 = vlaneseq
      %v2297 = vshrl.u32 %v2296, 7
      %v2298 = vsub.s32 0, %v2297
      %v2299 = vrot.slane %v2294, %v2298
      %2300 = vrot.lane.b32.xlu0 %v2299, 16
      %v2301 = vpop.permute.xlu0 %2300
      %2303 = vrot.lane.b32.xlu0 %v2299, 32
      %v2304 = vpop.permute.xlu0 %2303
      %2306 = vrot.lane.b32.xlu0 %v2299, 48
      %v2307 = vpop.permute.xlu0 %2306
      %2309 = vrot.lane.b32.xlu0 %v2299, 64
      %v2310 = vpop.permute.xlu0 %2309
      %2312 = vrot.lane.b32.xlu0 %v2299, 80
      %v2313 = vpop.permute.xlu0 %2312
      %2315 = vrot.lane.b32.xlu0 %v2299, 96
      %v2316 = vpop.permute.xlu0 %2315
      %2318 = vrot.lane.b32.xlu0 %v2299, 112
      %v2319 = vpop.permute.xlu0 %2318
      %v2321 = vsel %vm2169, %v2294, %v2301
      %v2322 = vsel %vm683, %v2321, %v2304
      %v2323 = vsel %vm2172, %v2322, %v2307
      %v2324 = vsel %vm2174, %v2323, %v2310
      %v2325 = vsel %vm2176, %v2324, %v2313
      %v2326 = vsel %vm2178, %v2325, %v2316
      %v2327 = vsel %vm2180, %v2326, %v2319
      %v2328 = vlaneseq
      %v2329 = vshrl.u32 %v2328, 7
      %v2330 = vsub.s32 0, %v2329
      %v2331 = vrot.slane %v2327, %v2330
      %v2332 = vadd.f32 %v2286, %v2331
      %v2333 = vadd.f32 %v2287, %v2331
      %v2334 = vadd.f32 %v2288, %v2331
      %v2335 = vadd.f32 %v2289, %v2331
      %v2336 = vadd.f32 %v2290, %v2331
      %v2337 = vadd.f32 %v2291, %v2331
      %v2338 = vadd.f32 %v2292, %v2331
      %v2339 = vadd.f32 %v2293, %v2331
      %v2340 = vmax.f32 %v2332, 0.0
      %v2341 = vmax.f32 %v2333, 0.0
      %v2342 = vmax.f32 %v2334, 0.0
      %v2343 = vmax.f32 %v2335, 0.0
      %v2344 = vmax.f32 %v2336, 0.0
      %v2345 = vmax.f32 %v2337, 0.0
      %v2346 = vmax.f32 %v2338, 0.0
      %v2347 = vmax.f32 %v2339, 0.0
      %v2348 = vpack.c.bf16 %v2340, %v2340
      %v2349 = vpack.c.bf16 %v2341, %v2341
      %v2350 = vpack.c.bf16 %v2342, %v2342
      %v2351 = vpack.c.bf16 %v2343, %v2343
      %v2352 = vpack.c.bf16 %v2344, %v2344
      %v2353 = vpack.c.bf16 %v2345, %v2345
      %v2354 = vpack.c.bf16 %v2346, %v2346
      %v2355 = vpack.c.bf16 %v2347, %v2347
      %2356 = vst [vmem:[%s197] sm:$0xf] %v2348
      %2357 = vst [vmem:[%s197 + $0x4] sm:$0xf] %v2349
      %2358 = vst [vmem:[%s197 + $0x8] sm:$0xf] %v2350
      %2359 = vst [vmem:[%s197 + $0xc] sm:$0xf] %v2351
      %2360 = vst [vmem:[%s197 + $0x10] sm:$0xf] %v2352
      %2361 = vst [vmem:[%s197 + $0x14] sm:$0xf] %v2353
      %2362 = vst [vmem:[%s197 + $0x18] sm:$0xf] %v2354
      %2363 = vst [vmem:[%s197 + $0x1c] sm:$0xf] %v2355
      %p2364 = scmp.lt.s32.totalorder %s15, 1
      %s2365 = scalar_select %p2364, %s15, 1
      %s2366 = smul.addr %s2365, 8
      %s2367 = smul.addr %s2366, 4
      %s2368 = scalar_lea.vmem %s4, %s2367
      // Predicated region
      $region37: #{encoder_cnn_block_apply.2} parent=35 // pred_check
        %p2369 = pneg %p122
      $region38: #{encoder_cnn_block_apply.2} parent=35 // pred_check_branch
        %2371 = sbr.rel (%p2369) target = $region40
      $region39: #{encoder_cnn_block_apply.2} parent=35 // pred_region
        _
      $region40: #{encoder_cnn_block_apply.2} parent=35 // pred_fallthru
        _
    $region36: #{encoder_cnn_block_apply.2} parent=5 // pred_fallthru
      _
    %p2372 = scmp.le.s32.totalorder 2, %s10
    // Predicated region
    $region41: #{encoder_cnn_block_apply.2} parent=5 // pred_check
      %p2373 = pneg %p2372
    $region42: #{encoder_cnn_block_apply.2} parent=5 // pred_check_branch
      %2375 = sbr.rel (%p2373) target = $region44
    $region43: #{encoder_cnn_block_apply.2} parent=5 // pred_region
      %s2376 = ssub.s32 %s10, 2
      // Predicated region
      $region45: #{encoder_cnn_block_apply.2} parent=43 // pred_check
        %p2377 = pneg %p128
      $region46: #{encoder_cnn_block_apply.2} parent=43 // pred_check_branch
        %2379 = sbr.rel (%p2377) target = $region48
      $region47: #{encoder_cnn_block_apply.2} parent=43 // pred_region
        %p2380 = scmp.lt.s32.totalorder %s16, 1
        %s2381 = scalar_select %p2380, %s16, 1
        %s2382 = smul.addr %s2381, 8
        %s2383 = smul.addr %s2382, 4
        %s2384 = scalar_lea.vmem %s4, %s2383
      $region48: #{encoder_cnn_block_apply.2} parent=43 // pred_fallthru
        _
    $region44: #{encoder_cnn_block_apply.2} parent=5 // pred_fallthru
      _
  $region6: #{encoder_cnn_block_apply.2} parent=0 // loop_footer
    %s14 = sadd.s32 1, %s10
  $region7: #{encoder_cnn_block_apply.2} parent=0 // loop_footer_branch
    %9 = sbr.rel target = $region3
  $region8: #{encoder_cnn_block_apply.2} parent=0 // loop_exit
    _

// kernel: encoder_cnn_block_apply.3
$region0: #{encoder_cnn_block_apply.3}
  #allocation0 [shape = 'u32[]', space=smem, size = 0x4, offset = 0x4, fixed_abs, tag = 'smem constant byte address 0x4 - core index']
  #allocation1 [shape = 'u32[144,128]{1,0:T(1,128)}', space=vmem, size = 0x12000, scoped, tag = 'internal scratch']
  #allocation2 [shape = 'bf16[10,10,160]{2,1,0:T(8,128)(2,1)}', space=vmem, size = 0x14000, scoped, tag = 'scratch operand']
  %s0 = inlined_call_operand.vmem [shape: bf16[2,8,8,128], index: 0, kind: input, shape index: {}]
  %s1 = inlined_call_operand.vmem [shape: bf16[9,160,128], index: 1, kind: input, shape index: {}]
  %s2 = inlined_call_operand.vmem [shape: f32[1,16], index: 2, kind: input, shape index: {}]
  %s3 = inlined_call_operand.vmem [shape: f32[1,16], index: 3, kind: input, shape index: {}]
  %s4 = inlined_call_operand.vmem [shape: f32[2,8,8,128], index: 4, kind: output, shape index: {}]
  %s5 = sld [smem:[#allocation0]]
  $region49: #{encoder_cnn_block_apply.3} parent=0
    _
  %s7 = ssub.s32 1, %s5
  %s8 = scalar_select 0, %s7, %s5
  loop: start=0, step=1, limit=4
  $region2: #{encoder_cnn_block_apply.3} parent=0 // loop_pre_header
    _
  $region3: #{encoder_cnn_block_apply.3} parent=0 // loop_header
    %s10 = sphi 0, %s14
    %p11 = scmp.ge.s32.totalorder %s10, 4
    %s20 = sphi 0, %s22
    %s23 = sphi 0, %s20
    %s24 = sphi 0, %s23
    %s40 = sphi 0, %s24
    %s44 = sphi 0, %s44
    %s46 = sphi 0, %s44
    %s47 = sphi 0, %s46
    %s61 = sphi 0, %s47
    %s65 = sphi 0, %s65
    %s67 = sphi 0, %s65
    %s68 = sphi 0, %s67
    %s82 = sphi 0, %s68
    %s86 = sphi 0, %s86
    %s88 = sphi 0, %s86
    %s89 = sphi 0, %s88
    %s103 = sphi 0, %s89
    %s109 = sphi 0, %s111
    %s112 = sphi 0, %s109
    %s113 = sphi 0, %s112
    %s129 = sphi 0, %s113
  $region4: #{encoder_cnn_block_apply.3} parent=0 // loop_header_branch
    %13 = sbr.rel (%p11) target = $region8
  $region5: #{encoder_cnn_block_apply.3} parent=0 // loop_body
    %s15 = ssub.s32 %s10, 1
    %s16 = ssub.s32 %s10, 2
    %s17 = sadd.s32 %s10, 1
    %s18 = ssub.s32 %s10, %s17
    %p19 = scmp.eq.s32.totalorder %s18, 0
    %s21 = sadd.s32 %s20, 1
    %s22 = scalar_select %p19, %s20, %s21
    %p25 = pneg %p19
    %p26 = scmp.eq.s32.totalorder %s10, 1
    %p27 = por %p25, %p26
    %p28 = scmp.ne.s32.totalorder %s20, %s23
    %p29 = scmp.eq.s32.totalorder %s10, 0
    %p30 = por %p28, %p29
    %p31 = scmp.ne.s32.totalorder %s20, %s23
    %p32 = scmp.eq.s32.totalorder %s15, 1
    %p33 = por %p31, %p32
    %p34 = scmp.ne.s32.totalorder %s23, %s24
    %p35 = scmp.eq.s32.totalorder %s15, 0
    %p36 = por %p34, %p35
    %p37 = scmp.ne.s32.totalorder %s23, %s24
    %p38 = scmp.eq.s32.totalorder %s16, 1
    %p39 = por %p37, %p38
    %p41 = scmp.ne.s32.totalorder %s24, %s40
    %p42 = scmp.eq.s32.totalorder %s16, 0
    %p43 = por %p41, %p42
    %s45 = sadd.s32 %s44, 1
    %p48 = scmp.eq.s32.totalorder %s10, 1
    %p49 = scmp.ne.s32.totalorder %s44, %s46
    %p50 = scmp.eq.s32.totalorder %s10, 0
    %p51 = por %p49, %p50
    %p52 = scmp.ne.s32.totalorder %s44, %s46
    %p53 = scmp.eq.s32.totalorder %s15, 1
    %p54 = por %p52, %p53
    %p55 = scmp.ne.s32.totalorder %s46, %s47
    %p56 = scmp.eq.s32.totalorder %s15, 0
    %p57 = por %p55, %p56
    %p58 = scmp.ne.s32.totalorder %s46, %s47
    %p59 = scmp.eq.s32.totalorder %s16, 1
    %p60 = por %p58, %p59
    %p62 = scmp.ne.s32.totalorder %s47, %s61
    %p63 = scmp.eq.s32.totalorder %s16, 0
    %p64 = por %p62, %p63
    %s66 = sadd.s32 %s65, 1
    %p69 = scmp.eq.s32.totalorder %s10, 1
    %p70 = scmp.ne.s32.totalorder %s65, %s67
    %p71 = scmp.eq.s32.totalorder %s10, 0
    %p72 = por %p70, %p71
    %p73 = scmp.ne.s32.totalorder %s65, %s67
    %p74 = scmp.eq.s32.totalorder %s15, 1
    %p75 = por %p73, %p74
    %p76 = scmp.ne.s32.totalorder %s67, %s68
    %p77 = scmp.eq.s32.totalorder %s15, 0
    %p78 = por %p76, %p77
    %p79 = scmp.ne.s32.totalorder %s67, %s68
    %p80 = scmp.eq.s32.totalorder %s16, 1
    %p81 = por %p79, %p80
    %p83 = scmp.ne.s32.totalorder %s68, %s82
    %p84 = scmp.eq.s32.totalorder %s16, 0
    %p85 = por %p83, %p84
    %s87 = sadd.s32 %s86, 1
    %p90 = scmp.eq.s32.totalorder %s10, 1
    %p91 = scmp.ne.s32.totalorder %s86, %s88
    %p92 = scmp.eq.s32.totalorder %s10, 0
    %p93 = por %p91, %p92
    %p94 = scmp.ne.s32.totalorder %s86, %s88
    %p95 = scmp.eq.s32.totalorder %s15, 1
    %p96 = por %p94, %p95
    %p97 = scmp.ne.s32.totalorder %s88, %s89
    %p98 = scmp.eq.s32.totalorder %s15, 0
    %p99 = por %p97, %p98
    %p100 = scmp.ne.s32.totalorder %s88, %s89
    %p101 = scmp.eq.s32.totalorder %s16, 1
    %p102 = por %p100, %p101
    %p104 = scmp.ne.s32.totalorder %s89, %s103
    %p105 = scmp.eq.s32.totalorder %s16, 0
    %p106 = por %p104, %p105
    %s107 = ssub.s32 %s10, %s17
    %p108 = scmp.eq.s32.totalorder %s107, 0
    %s110 = sadd.s32 %s109, 1
    %s111 = scalar_select %p108, %s109, %s110
    %p114 = pneg %p108
    %p115 = scmp.eq.s32.totalorder %s10, 1
    %p116 = por %p114, %p115
    %p117 = scmp.ne.s32.totalorder %s109, %s112
    %p118 = scmp.eq.s32.totalorder %s10, 0
    %p119 = por %p117, %p118
    %p120 = scmp.ne.s32.totalorder %s109, %s112
    %p121 = scmp.eq.s32.totalorder %s15, 1
    %p122 = por %p120, %p121
    %p123 = scmp.ne.s32.totalorder %s112, %s113
    %p124 = scmp.eq.s32.totalorder %s15, 0
    %p125 = por %p123, %p124
    %p126 = scmp.ne.s32.totalorder %s112, %s113
    %p127 = scmp.eq.s32.totalorder %s16, 1
    %p128 = por %p126, %p127
    %p130 = scmp.ne.s32.totalorder %s113, %s129
    %p131 = scmp.eq.s32.totalorder %s16, 0
    %p132 = por %p130, %p131
    %p133 = scmp.le.s32.totalorder 1, %s10
    %p134 = scmp.lt.s32.totalorder %s10, 3
    %p135 = pnand %p133, %p134
    %p136 = pneg %p135
    // Predicated region
    $region9: #{encoder_cnn_block_apply.3} parent=5 // pred_check
      _
    $region10: #{encoder_cnn_block_apply.3} parent=5 // pred_check_branch
      %138 = sbr.rel (%p135) target = $region12
    $region11: #{encoder_cnn_block_apply.3} parent=5 // pred_region
      %s139 = ssub.s32 %s10, 1
      // Predicated region
      $region13: #{encoder_cnn_block_apply.3} parent=11 // pred_check
        %p140 = pneg %p57
      $region14: #{encoder_cnn_block_apply.3} parent=11 // pred_check_branch
        %142 = sbr.rel (%p140) target = $region16
      $region15: #{encoder_cnn_block_apply.3} parent=11 // pred_region
        _
      $region16: #{encoder_cnn_block_apply.3} parent=11 // pred_fallthru
        _
      // Predicated region
      $region17: #{encoder_cnn_block_apply.3} parent=11 // pred_check
        %p143 = pneg %p78
      $region18: #{encoder_cnn_block_apply.3} parent=11 // pred_check_branch
        %145 = sbr.rel (%p143) target = $region20
      $region19: #{encoder_cnn_block_apply.3} parent=11 // pred_region
        _
      $region20: #{encoder_cnn_block_apply.3} parent=11 // pred_fallthru
        _
      // Predicated region
      $region21: #{encoder_cnn_block_apply.3} parent=11 // pred_check
        %p146 = pneg %p99
      $region22: #{encoder_cnn_block_apply.3} parent=11 // pred_check_branch
        %148 = sbr.rel (%p146) target = $region24
      $region23: #{encoder_cnn_block_apply.3} parent=11 // pred_region
        _
      $region24: #{encoder_cnn_block_apply.3} parent=11 // pred_fallthru
        _
    $region12: #{encoder_cnn_block_apply.3} parent=5 // pred_fallthru
      _
    %p149 = scmp.lt.s32.totalorder %s10, 2
    // Predicated region
    $region25: #{encoder_cnn_block_apply.3} parent=5 // pred_check
      %p150 = pneg %p149
    $region26: #{encoder_cnn_block_apply.3} parent=5 // pred_check_branch
      %152 = sbr.rel (%p150) target = $region28
    $region27: #{encoder_cnn_block_apply.3} parent=5 // pred_region
      // Predicated region
      $region29: #{encoder_cnn_block_apply.3} parent=27 // pred_check
        %p153 = pneg %p30
      $region30: #{encoder_cnn_block_apply.3} parent=27 // pred_check_branch
        %155 = sbr.rel (%p153) target = $region32
      $region31: #{encoder_cnn_block_apply.3} parent=27 // pred_region
        %p156 = scmp.lt.s32.totalorder %s10, 1
        %s157 = scalar_select %p156, %s10, 1
        %s158 = smul.addr %s157, 8
        %s159 = smul.addr %s158, 4
        %s160 = scalar_lea.vmem %s0, %s159
      $region32: #{encoder_cnn_block_apply.3} parent=27 // pred_fallthru
        _
    $region28: #{encoder_cnn_block_apply.3} parent=5 // pred_fallthru
      _
    %p161 = scmp.le.s32.totalorder 1, %s10
    %p162 = scmp.lt.s32.totalorder %s10, 3
    %p163 = pnand %p161, %p162
    %p164 = pneg %p163
    // Predicated region
    $region33: #{encoder_cnn_block_apply.3} parent=5 // pred_check
      _
    $region34: #{encoder_cnn_block_apply.3} parent=5 // pred_check_branch
      %166 = sbr.rel (%p163) target = $region36
    $region35: #{encoder_cnn_block_apply.3} parent=5 // pred_region
      %s167 = ssub.s32 %s10, 1
      %p168 = scmp.lt.s32.totalorder %s15, 1
      %s169 = scalar_select %p168, %s15, 1
      %s170 = smul.addr %s169, 8
      %s171 = smul.addr %s170, 4
      %s172 = scalar_lea.vmem %s0, %s171
      %p173 = pneg %p36
      %p174 = pneg %p33
      %p175 = pneg %p57
      %p176 = pneg %p54
      %p177 = pneg %p78
      %p178 = pneg %p75
      %p179 = pneg %p99
      %p180 = pneg %p96
      %p181 = pneg %p125
      %p182 = pneg %p122
      %p183 = scmp.lt.s32.totalorder %s15, 1
      %s184 = scalar_select %p183, %s15, 1
      %s185 = smul.addr %s184, 8
      %s186 = smul.addr %s185, 8
      %s187 = scalar_lea.vmem %s4, %s186
      %p188 = scmp.lt.s32.totalorder %s15, 1
      %s189 = scalar_select %p188, %s15, 1
      %s190 = smul.addr %s189, 8
      %s191 = smul.addr %s190, 4
      %s192 = scalar_lea.vmem %s0, %s191
      %p193 = scmp.lt.s32.totalorder %s15, 1
      %s194 = scalar_select %p193, %s15, 1
      %s195 = smul.addr %s194, 8
      %s196 = smul.addr %s195, 8
      %s197 = scalar_lea.vmem %s4, %s196
      %vm199 = vcmask 1043456
      %vm200 = vcmask 261124
      %vm201 = vmor %vm200, %vm199
      %202 = vst.msk [vmem:[#allocation2] sm:$0xff] %vm201, 0
      %vm203 = vcmask 1040384
      %vm204 = vcmask 258052
      %vm205 = vmor %vm204, %vm203
      %206 = vst.msk [vmem:[#allocation2 + $0x8] sm:$0x11] %vm205, 0
      %207 = vst.msk [vmem:[#allocation2 + $0x10] sm:$0xff] %vm201, 0
      %208 = vst.msk [vmem:[#allocation2 + $0x18] sm:$0x11] %vm205, 0
      %209 = vst.msk [vmem:[#allocation2 + $0x20] sm:$0xff] %vm201, 0
      %210 = vst.msk [vmem:[#allocation2 + $0x28] sm:$0x11] %vm205, 0
      %211 = vst.msk [vmem:[#allocation2 + $0x30] sm:$0xff] %vm201, 0
      %212 = vst.msk [vmem:[#allocation2 + $0x38] sm:$0x11] %vm205, 0
      %213 = vst.msk [vmem:[#allocation2 + $0x40] sm:$0xff] %vm201, 0
      %214 = vst.msk [vmem:[#allocation2 + $0x48] sm:$0x11] %vm205, 0
      %215 = vst.msk [vmem:[#allocation2 + $0x50] sm:$0xff] %vm201, 0
      %216 = vst.msk [vmem:[#allocation2 + $0x58] sm:$0x11] %vm205, 0
      %217 = vst.msk [vmem:[#allocation2 + $0x60] sm:$0xff] %vm201, 0
      %218 = vst.msk [vmem:[#allocation2 + $0x68] sm:$0x11] %vm205, 0
      %219 = vst.msk [vmem:[#allocation2 + $0x70] sm:$0xff] %vm201, 0
      %220 = vst.msk [vmem:[#allocation2 + $0x78] sm:$0x11] %vm205, 0
      %221 = vst.msk [vmem:[#allocation2 + $0x80] sm:$0xff] %vm201, 0
      %222 = vst.msk [vmem:[#allocation2 + $0x88] sm:$0x11] %vm205, 0
      %223 = vst.msk [vmem:[#allocation2 + $0x90] sm:$0xff] %vm201, 0
      %224 = vst.msk [vmem:[#allocation2 + $0x98] sm:$0x11] %vm205, 0
      %v225 = vld [vmem:[%s192] sm:$0xf]
      %v226 = vld [vmem:[%s192 + $0x4] sm:$0xf]
      %v227 = vld [vmem:[%s192 + $0x8] sm:$0xf]
      %v228 = vld [vmem:[%s192 + $0xc] sm:$0xf]
      %v229 = vld [vmem:[%s192 + $0x10] sm:$0xf]
      %v230 = vld [vmem:[%s192 + $0x14] sm:$0xf]
      %v231 = vld [vmem:[%s192 + $0x18] sm:$0xf]
      %v232 = vld [vmem:[%s192 + $0x1c] sm:$0xf]
      %v234 = vshrl.u32 %v225, 16
      %v236 = vrot.slane %v234, 7
      %v237 = vshll.u32 %v225, 16
      %v239 = vor.u32 %v236, %v237
      %v240 = vrot.slane %v236, 4
      %v242 = vshrl.u32 %v226, 16
      %v244 = vrot.slane %v242, 7
      %v245 = vshll.u32 %v226, 16
      %v247 = vor.u32 %v244, %v245
      %v248 = vrot.slane %v244, 4
      %v250 = vshrl.u32 %v227, 16
      %v252 = vrot.slane %v250, 7
      %v253 = vshll.u32 %v227, 16
      %v255 = vor.u32 %v252, %v253
      %v256 = vrot.slane %v252, 4
      %v258 = vshrl.u32 %v228, 16
      %v260 = vrot.slane %v258, 7
      %v261 = vshll.u32 %v228, 16
      %v263 = vor.u32 %v260, %v261
      %v264 = vrot.slane %v260, 4
      %v266 = vshrl.u32 %v229, 16
      %v268 = vrot.slane %v266, 7
      %v269 = vshll.u32 %v229, 16
      %v271 = vor.u32 %v268, %v269
      %v272 = vrot.slane %v268, 4
      %v274 = vshrl.u32 %v230, 16
      %v276 = vrot.slane %v274, 7
      %v277 = vshll.u32 %v230, 16
      %v279 = vor.u32 %v276, %v277
      %v280 = vrot.slane %v276, 4
      %v282 = vshrl.u32 %v231, 16
      %v284 = vrot.slane %v282, 7
      %v285 = vshll.u32 %v231, 16
      %v287 = vor.u32 %v284, %v285
      %v288 = vrot.slane %v284, 4
      %v290 = vshrl.u32 %v232, 16
      %v292 = vrot.slane %v290, 7
      %v293 = vshll.u32 %v232, 16
      %v295 = vor.u32 %v292, %v293
      %v296 = vrot.slane %v292, 4
      %297 = vrot.lane.b32.xlu0 %v239, 16
      %v298 = vpop.permute.xlu0 %297
      %299 = vrot.lane.b32.xlu0 %v240, 16
      %v300 = vpop.permute.xlu0 %299
      %301 = vrot.lane.b32.xlu0 %v247, 16
      %v302 = vpop.permute.xlu0 %301
      %303 = vrot.lane.b32.xlu0 %v248, 16
      %v304 = vpop.permute.xlu0 %303
      %305 = vrot.lane.b32.xlu0 %v255, 16
      %v306 = vpop.permute.xlu0 %305
      %307 = vrot.lane.b32.xlu0 %v256, 16
      %v308 = vpop.permute.xlu0 %307
      %309 = vrot.lane.b32.xlu0 %v263, 16
      %v310 = vpop.permute.xlu0 %309
      %311 = vrot.lane.b32.xlu0 %v264, 16
      %v312 = vpop.permute.xlu0 %311
      %313 = vrot.lane.b32.xlu0 %v271, 16
      %v314 = vpop.permute.xlu0 %313
      %315 = vrot.lane.b32.xlu0 %v272, 16
      %v316 = vpop.permute.xlu0 %315
      %317 = vrot.lane.b32.xlu0 %v279, 16
      %v318 = vpop.permute.xlu0 %317
      %319 = vrot.lane.b32.xlu0 %v280, 16
      %v320 = vpop.permute.xlu0 %319
      %321 = vrot.lane.b32.xlu0 %v287, 16
      %v322 = vpop.permute.xlu0 %321
      %323 = vrot.lane.b32.xlu0 %v288, 16
      %v324 = vpop.permute.xlu0 %323
      %325 = vrot.lane.b32.xlu0 %v295, 16
      %v326 = vpop.permute.xlu0 %325
      %327 = vrot.lane.b32.xlu0 %v296, 16
      %v328 = vpop.permute.xlu0 %327
      %v329 = vrot.slane %v298, 4
      %v330 = vrot.slane %v300, 4
      %v331 = vrot.slane %v302, 4
      %v332 = vrot.slane %v304, 4
      %v333 = vrot.slane %v306, 4
      %v334 = vrot.slane %v308, 4
      %v335 = vrot.slane %v310, 4
      %v336 = vrot.slane %v312, 4
      %v337 = vrot.slane %v314, 4
      %v338 = vrot.slane %v316, 4
      %v339 = vrot.slane %v318, 4
      %v340 = vrot.slane %v320, 4
      %v341 = vrot.slane %v322, 4
      %v342 = vrot.slane %v324, 4
      %v343 = vrot.slane %v326, 4
      %v344 = vrot.slane %v328, 4
      %vm345 = vcmask 130048
      %v346 = vsel %vm345, %v329, %v298
      %v347 = vsel %vm345, %v330, %v300
      %v348 = vsel %vm345, %v331, %v302
      %v349 = vsel %vm345, %v332, %v304
      %v350 = vsel %vm345, %v333, %v306
      %v351 = vsel %vm345, %v334, %v308
      %v352 = vsel %vm345, %v335, %v310
      %v353 = vsel %vm345, %v336, %v312
      %v354 = vsel %vm345, %v337, %v314
      %v355 = vsel %vm345, %v338, %v316
      %v356 = vsel %vm345, %v339, %v318
      %v357 = vsel %vm345, %v340, %v320
      %v358 = vsel %vm345, %v341, %v322
      %v359 = vsel %vm345, %v342, %v324
      %v360 = vsel %vm345, %v343, %v326
      %v361 = vsel %vm345, %v344, %v328
      %s378 = scalar_lea.vmem [#allocation2], 16
      %vm379 = vcmask 1043584
      %vm380 = vsmask.f32 7938
      %vm381 = vmand %vm379, %vm380
      %vm382 = vcmask 130052
      %vm383 = vsmask.f32 7954
      %vm384 = vmand %vm382, %vm383
      %vm385 = vmor %vm384, %vm381
      %v386 = vld [vmem:[%s378] sm:$0xff]
      %v387 = vsel %vm385, %v346, %v386
      %388 = vst [vmem:[%s378] sm:$0xff] %v387
      %vm389 = vcmask 1040512
      %vm390 = vsmask.f32 256
      %vm391 = vmand %vm389, %vm390
      %vm392 = vcmask 126980
      %vm393 = vsmask.f32 4352
      %vm394 = vmand %vm392, %vm393
      %vm395 = vmor %vm394, %vm391
      %v396 = vld [vmem:[%s378 + $0x8] sm:$0x11]
      %v397 = vsel %vm395, %v347, %v396
      %398 = vst [vmem:[%s378 + $0x8] sm:$0x11] %v397
      %v399 = vld [vmem:[%s378 + $0x10] sm:$0xff]
      %v400 = vsel %vm385, %v348, %v399
      %401 = vst [vmem:[%s378 + $0x10] sm:$0xff] %v400
      %v402 = vld [vmem:[%s378 + $0x18] sm:$0x11]
      %v403 = vsel %vm395, %v349, %v402
      %404 = vst [vmem:[%s378 + $0x18] sm:$0x11] %v403
      %v405 = vld [vmem:[%s378 + $0x20] sm:$0xff]
      %v406 = vsel %vm385, %v350, %v405
      %407 = vst [vmem:[%s378 + $0x20] sm:$0xff] %v406
      %v408 = vld [vmem:[%s378 + $0x28] sm:$0x11]
      %v409 = vsel %vm395, %v351, %v408
      %410 = vst [vmem:[%s378 + $0x28] sm:$0x11] %v409
      %v411 = vld [vmem:[%s378 + $0x30] sm:$0xff]
      %v412 = vsel %vm385, %v352, %v411
      %413 = vst [vmem:[%s378 + $0x30] sm:$0xff] %v412
      %v414 = vld [vmem:[%s378 + $0x38] sm:$0x11]
      %v415 = vsel %vm395, %v353, %v414
      %416 = vst [vmem:[%s378 + $0x38] sm:$0x11] %v415
      %v417 = vld [vmem:[%s378 + $0x40] sm:$0xff]
      %v418 = vsel %vm385, %v354, %v417
      %419 = vst [vmem:[%s378 + $0x40] sm:$0xff] %v418
      %v420 = vld [vmem:[%s378 + $0x48] sm:$0x11]
      %v421 = vsel %vm395, %v355, %v420
      %422 = vst [vmem:[%s378 + $0x48] sm:$0x11] %v421
      %v423 = vld [vmem:[%s378 + $0x50] sm:$0xff]
      %v424 = vsel %vm385, %v356, %v423
      %425 = vst [vmem:[%s378 + $0x50] sm:$0xff] %v424
      %v426 = vld [vmem:[%s378 + $0x58] sm:$0x11]
      %v427 = vsel %vm395, %v357, %v426
      %428 = vst [vmem:[%s378 + $0x58] sm:$0x11] %v427
      %v429 = vld [vmem:[%s378 + $0x60] sm:$0xff]
      %v430 = vsel %vm385, %v358, %v429
      %431 = vst [vmem:[%s378 + $0x60] sm:$0xff] %v430
      %v432 = vld [vmem:[%s378 + $0x68] sm:$0x11]
      %v433 = vsel %vm395, %v359, %v432
      %434 = vst [vmem:[%s378 + $0x68] sm:$0x11] %v433
      %v435 = vld [vmem:[%s378 + $0x70] sm:$0xff]
      %v436 = vsel %vm385, %v360, %v435
      %437 = vst [vmem:[%s378 + $0x70] sm:$0xff] %v436
      %v438 = vld [vmem:[%s378 + $0x78] sm:$0x11]
      %v439 = vsel %vm395, %v361, %v438
      %440 = vst [vmem:[%s378 + $0x78] sm:$0x11] %v439
      %v441 = vld [vmem:[#allocation2] sm:$0xff]
      %v442 = vld [vmem:[#allocation2 + $0x10] sm:$0xff]
      %v443 = vld [vmem:[#allocation2 + $0x20] sm:$0xff]
      %v444 = vld [vmem:[#allocation2 + $0x30] sm:$0xff]
      %v445 = vld [vmem:[#allocation2 + $0x40] sm:$0xff]
      %v446 = vld [vmem:[#allocation2 + $0x50] sm:$0xff]
      %v447 = vld [vmem:[#allocation2 + $0x60] sm:$0xff]
      %v448 = vld [vmem:[#allocation2 + $0x70] sm:$0xff]
      %v449 = vld [vmem:[%s1] sm:$0xf]
      %v450 = vld [vmem:[%s1 + $0x4] sm:$0xf]
      %v451 = vld [vmem:[%s1 + $0x8] sm:$0xf]
      %v452 = vld [vmem:[%s1 + $0xc] sm:$0xf]
      %v453 = vld [vmem:[%s1 + $0x10] sm:$0xf]
      %v454 = vld [vmem:[%s1 + $0x14] sm:$0xf]
      %v455 = vld [vmem:[%s1 + $0x18] sm:$0xf]
      %v456 = vld [vmem:[%s1 + $0x1c] sm:$0xf]
      %v457 = vld [vmem:[%s1 + $0x20] sm:$0xf]
      %v458 = vld [vmem:[%s1 + $0x24] sm:$0xf]
      %v459 = vld [vmem:[%s1 + $0x28] sm:$0xf]
      %v460 = vld [vmem:[%s1 + $0x2c] sm:$0xf]
      %v461 = vld [vmem:[%s1 + $0x30] sm:$0xf]
      %v462 = vld [vmem:[%s1 + $0x34] sm:$0xf]
      %v463 = vld [vmem:[%s1 + $0x38] sm:$0xf]
      %v464 = vld [vmem:[%s1 + $0x3c] sm:$0xf]
      %v465 = vld [vmem:[%s1 + $0x40] sm:$0xf]
      %v466 = vld [vmem:[%s1 + $0x44] sm:$0xf]
      %v467 = vld [vmem:[%s1 + $0x48] sm:$0xf]
      %v468 = vld [vmem:[%s1 + $0x4c] sm:$0xf]
      %v469 = vld [vmem:[#allocation2 + $0x8] sm:$0x11]
      %v470 = vld [vmem:[#allocation2 + $0x18] sm:$0x11]
      %v471 = vld [vmem:[#allocation2 + $0x28] sm:$0x11]
      %v472 = vld [vmem:[#allocation2 + $0x38] sm:$0x11]
      %v473 = vld [vmem:[#allocation2 + $0x48] sm:$0x11]
      %v474 = vld [vmem:[#allocation2 + $0x58] sm:$0x11]
      %v475 = vld [vmem:[#allocation2 + $0x68] sm:$0x11]
      %v476 = vld [vmem:[#allocation2 + $0x78] sm:$0x11]
      %vm477 = vsmask.f32 3328
      %vm478 = vsmask.f32 7440
      %vm479 = vmor %vm477, %vm478
      %v481 = vshrl.u32 %v441, 16
      %v483 = vrot.slane %v481, 4
      %v484 = vshll.u32 %v441, 16
      %v486 = vrot.slane %v484, 5
      %v487 = vor.u32 %v483, %v486
      %v488 = vrot.slane %v487, 4
      %v490 = vshll.u32 %v469, 16
      %v492 = vrot.slane %v490, 5
      %v493 = vsel %vm479, %v488, %v492
      %v495 = vshrl.u32 %v442, 16
      %v497 = vrot.slane %v495, 4
      %v498 = vshll.u32 %v442, 16
      %v500 = vrot.slane %v498, 5
      %v501 = vor.u32 %v497, %v500
      %v502 = vrot.slane %v501, 4
      %v504 = vshll.u32 %v470, 16
      %v506 = vrot.slane %v504, 5
      %v507 = vsel %vm479, %v502, %v506
      %v509 = vshrl.u32 %v443, 16
      %v511 = vrot.slane %v509, 4
      %v512 = vshll.u32 %v443, 16
      %v514 = vrot.slane %v512, 5
      %v515 = vor.u32 %v511, %v514
      %v516 = vrot.slane %v515, 4
      %v518 = vshll.u32 %v471, 16
      %v520 = vrot.slane %v518, 5
      %v521 = vsel %vm479, %v516, %v520
      %v523 = vshrl.u32 %v444, 16
      %v525 = vrot.slane %v523, 4
      %v526 = vshll.u32 %v444, 16
      %v528 = vrot.slane %v526, 5
      %v529 = vor.u32 %v525, %v528
      %v530 = vrot.slane %v529, 4
      %v532 = vshll.u32 %v472, 16
      %v534 = vrot.slane %v532, 5
      %v535 = vsel %vm479, %v530, %v534
      %v537 = vshrl.u32 %v445, 16
      %v539 = vrot.slane %v537, 4
      %v540 = vshll.u32 %v445, 16
      %v542 = vrot.slane %v540, 5
      %v543 = vor.u32 %v539, %v542
      %v544 = vrot.slane %v543, 4
      %v546 = vshll.u32 %v473, 16
      %v548 = vrot.slane %v546, 5
      %v549 = vsel %vm479, %v544, %v548
      %v551 = vshrl.u32 %v446, 16
      %v553 = vrot.slane %v551, 4
      %v554 = vshll.u32 %v446, 16
      %v556 = vrot.slane %v554, 5
      %v557 = vor.u32 %v553, %v556
      %v558 = vrot.slane %v557, 4
      %v560 = vshll.u32 %v474, 16
      %v562 = vrot.slane %v560, 5
      %v563 = vsel %vm479, %v558, %v562
      %v565 = vshrl.u32 %v447, 16
      %v567 = vrot.slane %v565, 4
      %v568 = vshll.u32 %v447, 16
      %v570 = vrot.slane %v568, 5
      %v571 = vor.u32 %v567, %v570
      %v572 = vrot.slane %v571, 4
      %v574 = vshll.u32 %v475, 16
      %v576 = vrot.slane %v574, 5
      %v577 = vsel %vm479, %v572, %v576
      %v579 = vshrl.u32 %v448, 16
      %v581 = vrot.slane %v579, 4
      %v582 = vshll.u32 %v448, 16
      %v584 = vrot.slane %v582, 5
      %v585 = vor.u32 %v581, %v584
      %v586 = vrot.slane %v585, 4
      %v588 = vshll.u32 %v476, 16
      %v590 = vrot.slane %v588, 5
      %v591 = vsel %vm479, %v586, %v590
      %s592 = scalar_lea.vmem %s1, 80
      %v593 = vld [vmem:[%s592] sm:$0xf]
      %v594 = vld [vmem:[%s592 + $0x4] sm:$0xf]
      %v595 = vld [vmem:[%s592 + $0x8] sm:$0xf]
      %v596 = vld [vmem:[%s592 + $0xc] sm:$0xf]
      %v597 = vld [vmem:[%s592 + $0x10] sm:$0xf]
      %v598 = vld [vmem:[%s592 + $0x14] sm:$0xf]
      %v599 = vld [vmem:[%s592 + $0x18] sm:$0xf]
      %v600 = vld [vmem:[%s592 + $0x1c] sm:$0xf]
      %v601 = vld [vmem:[%s592 + $0x20] sm:$0xf]
      %v602 = vld [vmem:[%s592 + $0x24] sm:$0xf]
      %v603 = vld [vmem:[%s592 + $0x28] sm:$0xf]
      %v604 = vld [vmem:[%s592 + $0x2c] sm:$0xf]
      %v605 = vld [vmem:[%s592 + $0x30] sm:$0xf]
      %v606 = vld [vmem:[%s592 + $0x34] sm:$0xf]
      %v607 = vld [vmem:[%s592 + $0x38] sm:$0xf]
      %v608 = vld [vmem:[%s592 + $0x3c] sm:$0xf]
      %v609 = vld [vmem:[%s592 + $0x40] sm:$0xf]
      %v610 = vld [vmem:[%s592 + $0x44] sm:$0xf]
      %v611 = vld [vmem:[%s592 + $0x48] sm:$0xf]
      %v612 = vld [vmem:[%s592 + $0x4c] sm:$0xf]
      %v613 = vunpack.c.l.b16 %v493
      %v614 = vunpack.c.h.b16 %v493
      %v615 = vunpack.c.l.b16 %v507
      %v616 = vunpack.c.h.b16 %v507
      %v617 = vunpack.c.l.b16 %v521
      %v618 = vunpack.c.h.b16 %v521
      %v619 = vunpack.c.l.b16 %v535
      %v620 = vunpack.c.h.b16 %v535
      %v621 = vunpack.c.l.b16 %v549
      %v622 = vunpack.c.h.b16 %v549
      %v623 = vunpack.c.l.b16 %v563
      %v624 = vunpack.c.h.b16 %v563
      %v625 = vunpack.c.l.b16 %v577
      %v626 = vunpack.c.h.b16 %v577
      %v627 = vunpack.c.l.b16 %v591
      %v628 = vunpack.c.h.b16 %v591
      %v629 = vpack.c.b16 %v615, %v613
      %v630 = vpack.c.b16 %v616, %v614
      %v631 = vpack.c.b16 %v619, %v617
      %v632 = vpack.c.b16 %v620, %v618
      %v633 = vpack.c.b16 %v623, %v621
      %v634 = vpack.c.b16 %v624, %v622
      %v635 = vpack.c.b16 %v627, %v625
      %v636 = vpack.c.b16 %v628, %v626
      %v661 = vunpack.c.l.b16 %v593
      %v662 = vunpack.c.l.b16 %v594
      %v663 = vunpack.c.l.b16 %v595
      %v664 = vunpack.c.l.b16 %v596
      %v665 = vunpack.c.l.b16 %v597
      %v666 = vunpack.c.l.b16 %v598
      %v667 = vunpack.c.l.b16 %v599
      %v668 = vunpack.c.l.b16 %v600
      %v669 = vunpack.c.l.b16 %v601
      %v670 = vunpack.c.l.b16 %v602
      %v671 = vunpack.c.l.b16 %v603
      %v672 = vunpack.c.l.b16 %v604
      %v673 = vunpack.c.l.b16 %v605
      %v674 = vunpack.c.l.b16 %v606
      %v675 = vunpack.c.l.b16 %v607
      %v676 = vunpack.c.l.b16 %v608
      %v677 = vunpack.c.l.b16 %v609
      %v678 = vunpack.c.l.b16 %v610
      %v679 = vunpack.c.l.b16 %v611
      %v680 = vunpack.c.l.b16 %v612
      %v681 = vpack.c.b16 %v662, %v661
      %v682 = vpack.c.b16 %v664, %v663
      %v683 = vpack.c.b16 %v666, %v665
      %v684 = vpack.c.b16 %v668, %v667
      %v685 = vpack.c.b16 %v670, %v669
      %v686 = vpack.c.b16 %v672, %v671
      %v687 = vpack.c.b16 %v674, %v673
      %v688 = vpack.c.b16 %v676, %v675
      %v689 = vpack.c.b16 %v678, %v677
      %v690 = vpack.c.b16 %v680, %v679
      %vm701 = vcmask 261120
      %v703 = vsel %vm701, %v630, 0
      %v706 = vsel %vm701, %v632, 0
      %v709 = vsel %vm701, %v634, 0
      %v712 = vsel %vm701, %v636, 0
      %714 = vmatprep.subr.bf16.mxu0 0
      %715 = vmatpush1.bf16.msra.mxu0 %v681
      %716 = vmatprep.subr.bf16.mxu0 0
      %717 = vmatpush1.bf16.msra.mxu0 %v682
      %718 = vmatprep.subr.bf16.mxu0 0
      %719 = vmatpush1.bf16.msra.mxu0 %v683
      %720 = vmatprep.subr.bf16.mxu0 0
      %721 = vmatpush1.bf16.msra.mxu0 %v684
      %722 = vmatprep.subr.bf16.mxu0 0
      %723 = vmatpush1.bf16.msra.mxu0 %v685
      %724 = vmatprep.subr.bf16.mxu0 0
      %725 = vmatpush1.bf16.msra.mxu0 %v686
      %726 = vmatprep.subr.bf16.mxu0 0
      %727 = vmatpush1.bf16.msra.mxu0 %v687
      %728 = vmatprep.subr.bf16.mxu0 0
      %729 = vmatpush1.bf16.msra.mxu0 %v688
      %730 = vmatprep.subr.bf16.mxu0 0
      %731 = vmatpush1.bf16.msra.mxu0 %v689
      %732 = vmatprep.subr.bf16.mxu0 0
      %733 = vmatpush1.bf16.msra.mxu0 %v690
      %734 = vmatprep.subr.bf16.mxu0 0
      %735 = vmatpush1.bf16.msra.mxu0 0
      %736 = vmatprep.subr.bf16.mxu0 0
      %737 = vmatpush1.bf16.msra.mxu0 0
      %738 = vmatprep.subr.bf16.mxu0 0
      %739 = vmatpush1.bf16.msra.mxu0 0
      %740 = vmatprep.subr.bf16.mxu0 0
      %741 = vmatpush1.bf16.msra.mxu0 0
      %742 = vmatprep.subr.bf16.mxu0 0
      %743 = vmatpush1.bf16.msra.mxu0 0
      %744 = vmatprep.subr.bf16.mxu0 0
      %745 = vmatpush1.bf16.msra.mxu0 0
      %746 = vmatprep.mubr.bf16.mxu0 %v703
      %747 = vmatmul.mubr.bf16.gmra.mrb[0].mxu0 %v629
      %v748 = vpop.f32.mrb[0].mxu0
      %v749 = vadd.f32 0.0, %v748
      %v750 = vpop.f32.mrb[0].mxu0
      %v751 = vpop.f32.mrb[0].mxu0
      %v752 = vadd.f32 0.0, %v751
      %v753 = vpop.f32.mrb[0].mxu0
      %754 = vmatprep.mubr.bf16.mxu0 %v706
      %755 = vmatmul.mubr.bf16.gmra.mrb[0].mxu0 %v631
      %v756 = vpop.f32.mrb[0].mxu0
      %v757 = vadd.f32 0.0, %v756
      %v758 = vpop.f32.mrb[0].mxu0
      %v759 = vpop.f32.mrb[0].mxu0
      %v760 = vadd.f32 0.0, %v759
      %v761 = vpop.f32.mrb[0].mxu0
      %762 = vmatprep.mubr.bf16.mxu0 %v709
      %763 = vmatmul.mubr.bf16.gmra.mrb[0].mxu0 %v633
      %v764 = vpop.f32.mrb[0].mxu0
      %v765 = vadd.f32 0.0, %v764
      %v766 = vpop.f32.mrb[0].mxu0
      %v767 = vpop.f32.mrb[0].mxu0
      %v768 = vadd.f32 0.0, %v767
      %v769 = vpop.f32.mrb[0].mxu0
      %770 = vmatprep.mubr.bf16.mxu0 %v712
      %771 = vmatmul.mubr.bf16.gmra.mrb[0].mxu0 %v635
      %v772 = vpop.f32.mrb[0].mxu0
      %v773 = vadd.f32 0.0, %v772
      %v774 = vpop.f32.mrb[0].mxu0
      %v775 = vpop.f32.mrb[0].mxu0
      %v776 = vadd.f32 0.0, %v775
      %v777 = vpop.f32.mrb[0].mxu0
      %778 = vdwg.mxu0
      %v787 = vunpack.c.l.b16 %v441
      %v788 = vunpack.c.h.b16 %v441
      %v789 = vunpack.c.l.b16 %v442
      %v790 = vunpack.c.h.b16 %v442
      %v791 = vunpack.c.l.b16 %v443
      %v792 = vunpack.c.h.b16 %v443
      %v793 = vunpack.c.l.b16 %v444
      %v794 = vunpack.c.h.b16 %v444
      %v795 = vunpack.c.l.b16 %v445
      %v796 = vunpack.c.h.b16 %v445
      %v797 = vunpack.c.l.b16 %v446
      %v798 = vunpack.c.h.b16 %v446
      %v799 = vunpack.c.l.b16 %v447
      %v800 = vunpack.c.h.b16 %v447
      %v801 = vunpack.c.l.b16 %v448
      %v802 = vunpack.c.h.b16 %v448
      %v803 = vpack.c.b16 %v789, %v787
      %v804 = vpack.c.b16 %v790, %v788
      %v805 = vpack.c.b16 %v793, %v791
      %v806 = vpack.c.b16 %v794, %v792
      %v807 = vpack.c.b16 %v797, %v795
      %v808 = vpack.c.b16 %v798, %v796
      %v809 = vpack.c.b16 %v801, %v799
      %v810 = vpack.c.b16 %v802, %v800
      %v835 = vunpack.c.l.b16 %v449
      %v836 = vunpack.c.l.b16 %v450
      %v837 = vunpack.c.l.b16 %v451
      %v838 = vunpack.c.l.b16 %v452
      %v839 = vunpack.c.l.b16 %v453
      %v840 = vunpack.c.l.b16 %v454
      %v841 = vunpack.c.l.b16 %v455
      %v842 = vunpack.c.l.b16 %v456
      %v843 = vunpack.c.l.b16 %v457
      %v844 = vunpack.c.l.b16 %v458
      %v845 = vunpack.c.l.b16 %v459
      %v846 = vunpack.c.l.b16 %v460
      %v847 = vunpack.c.l.b16 %v461
      %v848 = vunpack.c.l.b16 %v462
      %v849 = vunpack.c.l.b16 %v463
      %v850 = vunpack.c.l.b16 %v464
      %v851 = vunpack.c.l.b16 %v465
      %v852 = vunpack.c.l.b16 %v466
      %v853 = vunpack.c.l.b16 %v467
      %v854 = vunpack.c.l.b16 %v468
      %v855 = vpack.c.b16 %v836, %v835
      %v856 = vpack.c.b16 %v838, %v837
      %v857 = vpack.c.b16 %v840, %v839
      %v858 = vpack.c.b16 %v842, %v841
      %v859 = vpack.c.b16 %v844, %v843
      %v860 = vpack.c.b16 %v846, %v845
      %v861 = vpack.c.b16 %v848, %v847
      %v862 = vpack.c.b16 %v850, %v849
      %v863 = vpack.c.b16 %v852, %v851
      %v864 = vpack.c.b16 %v854, %v853
      %v876 = vsel %vm701, %v804, 0
      %v879 = vsel %vm701, %v806, 0
      %v882 = vsel %vm701, %v808, 0
      %v885 = vsel %vm701, %v810, 0
      %887 = vmatprep.subr.bf16.mxu0 0
      %888 = vmatpush1.bf16.msra.mxu0 %v855
      %889 = vmatprep.subr.bf16.mxu0 0
      %890 = vmatpush1.bf16.msra.mxu0 %v856
      %891 = vmatprep.subr.bf16.mxu0 0
      %892 = vmatpush1.bf16.msra.mxu0 %v857
      %893 = vmatprep.subr.bf16.mxu0 0
      %894 = vmatpush1.bf16.msra.mxu0 %v858
      %895 = vmatprep.subr.bf16.mxu0 0
      %896 = vmatpush1.bf16.msra.mxu0 %v859
      %897 = vmatprep.subr.bf16.mxu0 0
      %898 = vmatpush1.bf16.msra.mxu0 %v860
      %899 = vmatprep.subr.bf16.mxu0 0
      %900 = vmatpush1.bf16.msra.mxu0 %v861
      %901 = vmatprep.subr.bf16.mxu0 0
      %902 = vmatpush1.bf16.msra.mxu0 %v862
      %903 = vmatprep.subr.bf16.mxu0 0
      %904 = vmatpush1.bf16.msra.mxu0 %v863
      %905 = vmatprep.subr.bf16.mxu0 0
      %906 = vmatpush1.bf16.msra.mxu0 %v864
      %907 = vmatprep.subr.bf16.mxu0 0
      %908 = vmatpush1.bf16.msra.mxu0 0
      %909 = vmatprep.subr.bf16.mxu0 0
      %910 = vmatpush1.bf16.msra.mxu0 0
      %911 = vmatprep.subr.bf16.mxu0 0
      %912 = vmatpush1.bf16.msra.mxu0 0
      %913 = vmatprep.subr.bf16.mxu0 0
      %914 = vmatpush1.bf16.msra.mxu0 0
      %915 = vmatprep.subr.bf16.mxu0 0
      %916 = vmatpush1.bf16.msra.mxu0 0
      %917 = vmatprep.subr.bf16.mxu0 0
      %918 = vmatpush1.bf16.msra.mxu0 0
      %919 = vmatprep.mubr.bf16.mxu0 %v876
      %920 = vmatmul.mubr.bf16.gmra.mrb[0].mxu0 %v803
      %v921 = vpop.f32.mrb[0].mxu0
      %v922 = vadd.f32 %v749, %v921
      %v923 = vpop.f32.mrb[0].mxu0
      %v924 = vpop.f32.mrb[0].mxu0
      %v925 = vadd.f32 %v752, %v924
      %v926 = vpop.f32.mrb[0].mxu0
      %927 = vmatprep.mubr.bf16.mxu0 %v879
      %928 = vmatmul.mubr.bf16.gmra.mrb[0].mxu0 %v805
      %v929 = vpop.f32.mrb[0].mxu0
      %v930 = vadd.f32 %v757, %v929
      %v931 = vpop.f32.mrb[0].mxu0
      %v932 = vpop.f32.mrb[0].mxu0
      %v933 = vadd.f32 %v760, %v932
      %v934 = vpop.f32.mrb[0].mxu0
      %935 = vmatprep.mubr.bf16.mxu0 %v882
      %936 = vmatmul.mubr.bf16.gmra.mrb[0].mxu0 %v807
      %v937 = vpop.f32.mrb[0].mxu0
      %v938 = vadd.f32 %v765, %v937
      %v939 = vpop.f32.mrb[0].mxu0
      %v940 = vpop.f32.mrb[0].mxu0
      %v941 = vadd.f32 %v768, %v940
      %v942 = vpop.f32.mrb[0].mxu0
      %943 = vmatprep.mubr.bf16.mxu0 %v885
      %944 = vmatmul.mubr.bf16.gmra.mrb[0].mxu0 %v809
      %v945 = vpop.f32.mrb[0].mxu0
      %v946 = vadd.f32 %v773, %v945
      %v947 = vpop.f32.mrb[0].mxu0
      %v948 = vpop.f32.mrb[0].mxu0
      %v949 = vadd.f32 %v776, %v948
      %v950 = vpop.f32.mrb[0].mxu0
      %951 = vdwg.mxu0
      %v952 = vld [vmem:[#allocation2] sm:$0xee]
      %v953 = vld [vmem:[#allocation2 + $0x10] sm:$0xee]
      %v954 = vld [vmem:[#allocation2 + $0x20] sm:$0xee]
      %v955 = vld [vmem:[#allocation2 + $0x30] sm:$0xee]
      %v956 = vld [vmem:[#allocation2 + $0x40] sm:$0xee]
      %v957 = vld [vmem:[#allocation2 + $0x50] sm:$0xee]
      %v958 = vld [vmem:[#allocation2 + $0x60] sm:$0xee]
      %v959 = vld [vmem:[#allocation2 + $0x70] sm:$0xee]
      %vm976 = vcmask 1042432
      %vm977 = vcmask 1046532
      %vm978 = vmor %vm976, %vm977
      %v979 = vrot.slane %v952, 5
      %v980 = vrot.slane %v979, 4
      %v981 = vrot.slane %v469, 5
      %v982 = vsel %vm978, %v980, %v981
      %v983 = vrot.slane %v953, 5
      %v984 = vrot.slane %v983, 4
      %v985 = vrot.slane %v470, 5
      %v986 = vsel %vm978, %v984, %v985
      %v987 = vrot.slane %v954, 5
      %v988 = vrot.slane %v987, 4
      %v989 = vrot.slane %v471, 5
      %v990 = vsel %vm978, %v988, %v989
      %v991 = vrot.slane %v955, 5
      %v992 = vrot.slane %v991, 4
      %v993 = vrot.slane %v472, 5
      %v994 = vsel %vm978, %v992, %v993
      %v995 = vrot.slane %v956, 5
      %v996 = vrot.slane %v995, 4
      %v997 = vrot.slane %v473, 5
      %v998 = vsel %vm978, %v996, %v997
      %v999 = vrot.slane %v957, 5
      %v1000 = vrot.slane %v999, 4
      %v1001 = vrot.slane %v474, 5
      %v1002 = vsel %vm978, %v1000, %v1001
      %v1003 = vrot.slane %v958, 5
      %v1004 = vrot.slane %v1003, 4
      %v1005 = vrot.slane %v475, 5
      %v1006 = vsel %vm978, %v1004, %v1005
      %v1007 = vrot.slane %v959, 5
      %v1008 = vrot.slane %v1007, 4
      %v1009 = vrot.slane %v476, 5
      %v1010 = vsel %vm978, %v1008, %v1009
      %s1011 = scalar_lea.vmem %s1, 160
      %v1012 = vld [vmem:[%s1011] sm:$0xf]
      %v1013 = vld [vmem:[%s1011 + $0x4] sm:$0xf]
      %v1014 = vld [vmem:[%s1011 + $0x8] sm:$0xf]
      %v1015 = vld [vmem:[%s1011 + $0xc] sm:$0xf]
      %v1016 = vld [vmem:[%s1011 + $0x10] sm:$0xf]
      %v1017 = vld [vmem:[%s1011 + $0x14] sm:$0xf]
      %v1018 = vld [vmem:[%s1011 + $0x18] sm:$0xf]
      %v1019 = vld [vmem:[%s1011 + $0x1c] sm:$0xf]
      %v1020 = vld [vmem:[%s1011 + $0x20] sm:$0xf]
      %v1021 = vld [vmem:[%s1011 + $0x24] sm:$0xf]
      %v1022 = vld [vmem:[%s1011 + $0x28] sm:$0xf]
      %v1023 = vld [vmem:[%s1011 + $0x2c] sm:$0xf]
      %v1024 = vld [vmem:[%s1011 + $0x30] sm:$0xf]
      %v1025 = vld [vmem:[%s1011 + $0x34] sm:$0xf]
      %v1026 = vld [vmem:[%s1011 + $0x38] sm:$0xf]
      %v1027 = vld [vmem:[%s1011 + $0x3c] sm:$0xf]
      %v1028 = vld [vmem:[%s1011 + $0x40] sm:$0xf]
      %v1029 = vld [vmem:[%s1011 + $0x44] sm:$0xf]
      %v1030 = vld [vmem:[%s1011 + $0x48] sm:$0xf]
      %v1031 = vld [vmem:[%s1011 + $0x4c] sm:$0xf]
      %v1032 = vunpack.c.l.b16 %v982
      %v1033 = vunpack.c.h.b16 %v982
      %v1034 = vunpack.c.l.b16 %v986
      %v1035 = vunpack.c.h.b16 %v986
      %v1036 = vunpack.c.l.b16 %v990
      %v1037 = vunpack.c.h.b16 %v990
      %v1038 = vunpack.c.l.b16 %v994
      %v1039 = vunpack.c.h.b16 %v994
      %v1040 = vunpack.c.l.b16 %v998
      %v1041 = vunpack.c.h.b16 %v998
      %v1042 = vunpack.c.l.b16 %v1002
      %v1043 = vunpack.c.h.b16 %v1002
      %v1044 = vunpack.c.l.b16 %v1006
      %v1045 = vunpack.c.h.b16 %v1006
      %v1046 = vunpack.c.l.b16 %v1010
      %v1047 = vunpack.c.h.b16 %v1010
      %v1048 = vpack.c.b16 %v1034, %v1032
      %v1049 = vpack.c.b16 %v1035, %v1033
      %v1050 = vpack.c.b16 %v1038, %v1036
      %v1051 = vpack.c.b16 %v1039, %v1037
      %v1052 = vpack.c.b16 %v1042, %v1040
      %v1053 = vpack.c.b16 %v1043, %v1041
      %v1054 = vpack.c.b16 %v1046, %v1044
      %v1055 = vpack.c.b16 %v1047, %v1045
      %v1080 = vunpack.c.l.b16 %v1012
      %v1081 = vunpack.c.l.b16 %v1013
      %v1082 = vunpack.c.l.b16 %v1014
      %v1083 = vunpack.c.l.b16 %v1015
      %v1084 = vunpack.c.l.b16 %v1016
      %v1085 = vunpack.c.l.b16 %v1017
      %v1086 = vunpack.c.l.b16 %v1018
      %v1087 = vunpack.c.l.b16 %v1019
      %v1088 = vunpack.c.l.b16 %v1020
      %v1089 = vunpack.c.l.b16 %v1021
      %v1090 = vunpack.c.l.b16 %v1022
      %v1091 = vunpack.c.l.b16 %v1023
      %v1092 = vunpack.c.l.b16 %v1024
      %v1093 = vunpack.c.l.b16 %v1025
      %v1094 = vunpack.c.l.b16 %v1026
      %v1095 = vunpack.c.l.b16 %v1027
      %v1096 = vunpack.c.l.b16 %v1028
      %v1097 = vunpack.c.l.b16 %v1029
      %v1098 = vunpack.c.l.b16 %v1030
      %v1099 = vunpack.c.l.b16 %v1031
      %v1100 = vpack.c.b16 %v1081, %v1080
      %v1101 = vpack.c.b16 %v1083, %v1082
      %v1102 = vpack.c.b16 %v1085, %v1084
      %v1103 = vpack.c.b16 %v1087, %v1086
      %v1104 = vpack.c.b16 %v1089, %v1088
      %v1105 = vpack.c.b16 %v1091, %v1090
      %v1106 = vpack.c.b16 %v1093, %v1092
      %v1107 = vpack.c.b16 %v1095, %v1094
      %v1108 = vpack.c.b16 %v1097, %v1096
      %v1109 = vpack.c.b16 %v1099, %v1098
      %v1121 = vsel %vm701, %v1049, 0
      %v1124 = vsel %vm701, %v1051, 0
      %v1127 = vsel %vm701, %v1053, 0
      %v1130 = vsel %vm701, %v1055, 0
      %1132 = vmatprep.subr.bf16.mxu0 0
      %1133 = vmatpush1.bf16.msra.mxu0 %v1100
      %1134 = vmatprep.subr.bf16.mxu0 0
      %1135 = vmatpush1.bf16.msra.mxu0 %v1101
      %1136 = vmatprep.subr.bf16.mxu0 0
      %1137 = vmatpush1.bf16.msra.mxu0 %v1102
      %1138 = vmatprep.subr.bf16.mxu0 0
      %1139 = vmatpush1.bf16.msra.mxu0 %v1103
      %1140 = vmatprep.subr.bf16.mxu0 0
      %1141 = vmatpush1.bf16.msra.mxu0 %v1104
      %1142 = vmatprep.subr.bf16.mxu0 0
      %1143 = vmatpush1.bf16.msra.mxu0 %v1105
      %1144 = vmatprep.subr.bf16.mxu0 0
      %1145 = vmatpush1.bf16.msra.mxu0 %v1106
      %1146 = vmatprep.subr.bf16.mxu0 0
      %1147 = vmatpush1.bf16.msra.mxu0 %v1107
      %1148 = vmatprep.subr.bf16.mxu0 0
      %1149 = vmatpush1.bf16.msra.mxu0 %v1108
      %1150 = vmatprep.subr.bf16.mxu0 0
      %1151 = vmatpush1.bf16.msra.mxu0 %v1109
      %1152 = vmatprep.subr.bf16.mxu0 0
      %1153 = vmatpush1.bf16.msra.mxu0 0
      %1154 = vmatprep.subr.bf16.mxu0 0
      %1155 = vmatpush1.bf16.msra.mxu0 0
      %1156 = vmatprep.subr.bf16.mxu0 0
      %1157 = vmatpush1.bf16.msra.mxu0 0
      %1158 = vmatprep.subr.bf16.mxu0 0
      %1159 = vmatpush1.bf16.msra.mxu0 0
      %1160 = vmatprep.subr.bf16.mxu0 0
      %1161 = vmatpush1.bf16.msra.mxu0 0
      %1162 = vmatprep.subr.bf16.mxu0 0
      %1163 = vmatpush1.bf16.msra.mxu0 0
      %1164 = vmatprep.mubr.bf16.mxu0 %v1121
      %1165 = vmatmul.mubr.bf16.gmra.mrb[0].mxu0 %v1048
      %v1166 = vpop.f32.mrb[0].mxu0
      %v1167 = vadd.f32 0.0, %v1166
      %v1168 = vpop.f32.mrb[0].mxu0
      %v1169 = vpop.f32.mrb[0].mxu0
      %v1170 = vadd.f32 0.0, %v1169
      %v1171 = vpop.f32.mrb[0].mxu0
      %1172 = vmatprep.mubr.bf16.mxu0 %v1124
      %1173 = vmatmul.mubr.bf16.gmra.mrb[0].mxu0 %v1050
      %v1174 = vpop.f32.mrb[0].mxu0
      %v1175 = vadd.f32 0.0, %v1174
      %v1176 = vpop.f32.mrb[0].mxu0
      %v1177 = vpop.f32.mrb[0].mxu0
      %v1178 = vadd.f32 0.0, %v1177
      %v1179 = vpop.f32.mrb[0].mxu0
      %1180 = vmatprep.mubr.bf16.mxu0 %v1127
      %1181 = vmatmul.mubr.bf16.gmra.mrb[0].mxu0 %v1052
      %v1182 = vpop.f32.mrb[0].mxu0
      %v1183 = vadd.f32 0.0, %v1182
      %v1184 = vpop.f32.mrb[0].mxu0
      %v1185 = vpop.f32.mrb[0].mxu0
      %v1186 = vadd.f32 0.0, %v1185
      %v1187 = vpop.f32.mrb[0].mxu0
      %1188 = vmatprep.mubr.bf16.mxu0 %v1130
      %1189 = vmatmul.mubr.bf16.gmra.mrb[0].mxu0 %v1054
      %v1190 = vpop.f32.mrb[0].mxu0
      %v1191 = vadd.f32 0.0, %v1190
      %v1192 = vpop.f32.mrb[0].mxu0
      %v1193 = vpop.f32.mrb[0].mxu0
      %v1194 = vadd.f32 0.0, %v1193
      %v1195 = vpop.f32.mrb[0].mxu0
      %1196 = vdwg.mxu0
      %v1197 = vadd.f32 %v922, %v1167
      %v1198 = vadd.f32 %v925, %v1170
      %v1199 = vadd.f32 %v930, %v1175
      %v1200 = vadd.f32 %v933, %v1178
      %v1201 = vadd.f32 %v938, %v1183
      %v1202 = vadd.f32 %v941, %v1186
      %v1203 = vadd.f32 %v946, %v1191
      %v1204 = vadd.f32 %v949, %v1194
      %v1205 = vld [vmem:[%s378] sm:$0xff]
      %v1206 = vld [vmem:[%s378 + $0x10] sm:$0xff]
      %v1207 = vld [vmem:[%s378 + $0x20] sm:$0xff]
      %v1208 = vld [vmem:[%s378 + $0x30] sm:$0xff]
      %v1209 = vld [vmem:[%s378 + $0x40] sm:$0xff]
      %v1210 = vld [vmem:[%s378 + $0x50] sm:$0xff]
      %v1211 = vld [vmem:[%s378 + $0x60] sm:$0xff]
      %v1212 = vld [vmem:[%s378 + $0x70] sm:$0xff]
      %s1213 = scalar_lea.vmem %s1, 240
      %v1214 = vld [vmem:[%s1213] sm:$0xf]
      %v1215 = vld [vmem:[%s1213 + $0x4] sm:$0xf]
      %v1216 = vld [vmem:[%s1213 + $0x8] sm:$0xf]
      %v1217 = vld [vmem:[%s1213 + $0xc] sm:$0xf]
      %v1218 = vld [vmem:[%s1213 + $0x10] sm:$0xf]
      %v1219 = vld [vmem:[%s1213 + $0x14] sm:$0xf]
      %v1220 = vld [vmem:[%s1213 + $0x18] sm:$0xf]
      %v1221 = vld [vmem:[%s1213 + $0x1c] sm:$0xf]
      %v1222 = vld [vmem:[%s1213 + $0x20] sm:$0xf]
      %v1223 = vld [vmem:[%s1213 + $0x24] sm:$0xf]
      %v1224 = vld [vmem:[%s1213 + $0x28] sm:$0xf]
      %v1225 = vld [vmem:[%s1213 + $0x2c] sm:$0xf]
      %v1226 = vld [vmem:[%s1213 + $0x30] sm:$0xf]
      %v1227 = vld [vmem:[%s1213 + $0x34] sm:$0xf]
      %v1228 = vld [vmem:[%s1213 + $0x38] sm:$0xf]
      %v1229 = vld [vmem:[%s1213 + $0x3c] sm:$0xf]
      %v1230 = vld [vmem:[%s1213 + $0x40] sm:$0xf]
      %v1231 = vld [vmem:[%s1213 + $0x44] sm:$0xf]
      %v1232 = vld [vmem:[%s1213 + $0x48] sm:$0xf]
      %v1233 = vld [vmem:[%s1213 + $0x4c] sm:$0xf]
      %v1242 = vunpack.c.l.b16 %v1205
      %v1243 = vunpack.c.h.b16 %v1205
      %v1244 = vunpack.c.l.b16 %v1206
      %v1245 = vunpack.c.h.b16 %v1206
      %v1246 = vunpack.c.l.b16 %v1207
      %v1247 = vunpack.c.h.b16 %v1207
      %v1248 = vunpack.c.l.b16 %v1208
      %v1249 = vunpack.c.h.b16 %v1208
      %v1250 = vunpack.c.l.b16 %v1209
      %v1251 = vunpack.c.h.b16 %v1209
      %v1252 = vunpack.c.l.b16 %v1210
      %v1253 = vunpack.c.h.b16 %v1210
      %v1254 = vunpack.c.l.b16 %v1211
      %v1255 = vunpack.c.h.b16 %v1211
      %v1256 = vunpack.c.l.b16 %v1212
      %v1257 = vunpack.c.h.b16 %v1212
      %v1258 = vpack.c.b16 %v1244, %v1242
      %v1259 = vpack.c.b16 %v1245, %v1243
      %v1260 = vpack.c.b16 %v1248, %v1246
      %v1261 = vpack.c.b16 %v1249, %v1247
      %v1262 = vpack.c.b16 %v1252, %v1250
      %v1263 = vpack.c.b16 %v1253, %v1251
      %v1264 = vpack.c.b16 %v1256, %v1254
      %v1265 = vpack.c.b16 %v1257, %v1255
      %v1290 = vunpack.c.l.b16 %v1214
      %v1291 = vunpack.c.l.b16 %v1215
      %v1292 = vunpack.c.l.b16 %v1216
      %v1293 = vunpack.c.l.b16 %v1217
      %v1294 = vunpack.c.l.b16 %v1218
      %v1295 = vunpack.c.l.b16 %v1219
      %v1296 = vunpack.c.l.b16 %v1220
      %v1297 = vunpack.c.l.b16 %v1221
      %v1298 = vunpack.c.l.b16 %v1222
      %v1299 = vunpack.c.l.b16 %v1223
      %v1300 = vunpack.c.l.b16 %v1224
      %v1301 = vunpack.c.l.b16 %v1225
      %v1302 = vunpack.c.l.b16 %v1226
      %v1303 = vunpack.c.l.b16 %v1227
      %v1304 = vunpack.c.l.b16 %v1228
      %v1305 = vunpack.c.l.b16 %v1229
      %v1306 = vunpack.c.l.b16 %v1230
      %v1307 = vunpack.c.l.b16 %v1231
      %v1308 = vunpack.c.l.b16 %v1232
      %v1309 = vunpack.c.l.b16 %v1233
      %v1310 = vpack.c.b16 %v1291, %v1290
      %v1311 = vpack.c.b16 %v1293, %v1292
      %v1312 = vpack.c.b16 %v1295, %v1294
      %v1313 = vpack.c.b16 %v1297, %v1296
      %v1314 = vpack.c.b16 %v1299, %v1298
      %v1315 = vpack.c.b16 %v1301, %v1300
      %v1316 = vpack.c.b16 %v1303, %v1302
      %v1317 = vpack.c.b16 %v1305, %v1304
      %v1318 = vpack.c.b16 %v1307, %v1306
      %v1319 = vpack.c.b16 %v1309, %v1308
      %v1331 = vsel %vm701, %v1259, 0
      %v1334 = vsel %vm701, %v1261, 0
      %v1337 = vsel %vm701, %v1263, 0
      %v1340 = vsel %vm701, %v1265, 0
      %1342 = vmatprep.subr.bf16.mxu0 0
      %1343 = vmatpush1.bf16.msra.mxu0 %v1310
      %1344 = vmatprep.subr.bf16.mxu0 0
      %1345 = vmatpush1.bf16.msra.mxu0 %v1311
      %1346 = vmatprep.subr.bf16.mxu0 0
      %1347 = vmatpush1.bf16.msra.mxu0 %v1312
      %1348 = vmatprep.subr.bf16.mxu0 0
      %1349 = vmatpush1.bf16.msra.mxu0 %v1313
      %1350 = vmatprep.subr.bf16.mxu0 0
      %1351 = vmatpush1.bf16.msra.mxu0 %v1314
      %1352 = vmatprep.subr.bf16.mxu0 0
      %1353 = vmatpush1.bf16.msra.mxu0 %v1315
      %1354 = vmatprep.subr.bf16.mxu0 0
      %1355 = vmatpush1.bf16.msra.mxu0 %v1316
      %1356 = vmatprep.subr.bf16.mxu0 0
      %1357 = vmatpush1.bf16.msra.mxu0 %v1317
      %1358 = vmatprep.subr.bf16.mxu0 0
      %1359 = vmatpush1.bf16.msra.mxu0 %v1318
      %1360 = vmatprep.subr.bf16.mxu0 0
      %1361 = vmatpush1.bf16.msra.mxu0 %v1319
      %1362 = vmatprep.subr.bf16.mxu0 0
      %1363 = vmatpush1.bf16.msra.mxu0 0
      %1364 = vmatprep.subr.bf16.mxu0 0
      %1365 = vmatpush1.bf16.msra.mxu0 0
      %1366 = vmatprep.subr.bf16.mxu0 0
      %1367 = vmatpush1.bf16.msra.mxu0 0
      %1368 = vmatprep.subr.bf16.mxu0 0
      %1369 = vmatpush1.bf16.msra.mxu0 0
      %1370 = vmatprep.subr.bf16.mxu0 0
      %1371 = vmatpush1.bf16.msra.mxu0 0
      %1372 = vmatprep.subr.bf16.mxu0 0
      %1373 = vmatpush1.bf16.msra.mxu0 0
      %1374 = vmatprep.mubr.bf16.mxu0 %v1331
      %1375 = vmatmul.mubr.bf16.gmra.mrb[0].mxu0 %v1258
      %v1376 = vpop.f32.mrb[0].mxu0
      %v1377 = vadd.f32 0.0, %v1376
      %v1378 = vpop.f32.mrb[0].mxu0
      %v1379 = vpop.f32.mrb[0].mxu0
      %v1380 = vadd.f32 0.0, %v1379
      %v1381 = vpop.f32.mrb[0].mxu0
      %1382 = vmatprep.mubr.bf16.mxu0 %v1334
      %1383 = vmatmul.mubr.bf16.gmra.mrb[0].mxu0 %v1260
      %v1384 = vpop.f32.mrb[0].mxu0
      %v1385 = vadd.f32 0.0, %v1384
      %v1386 = vpop.f32.mrb[0].mxu0
      %v1387 = vpop.f32.mrb[0].mxu0
      %v1388 = vadd.f32 0.0, %v1387
      %v1389 = vpop.f32.mrb[0].mxu0
      %1390 = vmatprep.mubr.bf16.mxu0 %v1337
      %1391 = vmatmul.mubr.bf16.gmra.mrb[0].mxu0 %v1262
      %v1392 = vpop.f32.mrb[0].mxu0
      %v1393 = vadd.f32 0.0, %v1392
      %v1394 = vpop.f32.mrb[0].mxu0
      %v1395 = vpop.f32.mrb[0].mxu0
      %v1396 = vadd.f32 0.0, %v1395
      %v1397 = vpop.f32.mrb[0].mxu0
      %1398 = vmatprep.mubr.bf16.mxu0 %v1340
      %1399 = vmatmul.mubr.bf16.gmra.mrb[0].mxu0 %v1264
      %v1400 = vpop.f32.mrb[0].mxu0
      %v1401 = vadd.f32 0.0, %v1400
      %v1402 = vpop.f32.mrb[0].mxu0
      %v1403 = vpop.f32.mrb[0].mxu0
      %v1404 = vadd.f32 0.0, %v1403
      %v1405 = vpop.f32.mrb[0].mxu0
      %1406 = vdwg.mxu0
      %v1407 = vadd.f32 %v1197, %v1377
      %v1408 = vadd.f32 %v1198, %v1380
      %v1409 = vadd.f32 %v1199, %v1385
      %v1410 = vadd.f32 %v1200, %v1388
      %v1411 = vadd.f32 %v1201, %v1393
      %v1412 = vadd.f32 %v1202, %v1396
      %v1413 = vadd.f32 %v1203, %v1401
      %v1414 = vadd.f32 %v1204, %v1404
      %v1415 = vld [vmem:[%s378] sm:$0xff]
      %v1416 = vld [vmem:[%s378 + $0x8] sm:$0x11]
      %v1417 = vld [vmem:[%s378 + $0x10] sm:$0xff]
      %v1418 = vld [vmem:[%s378 + $0x18] sm:$0x11]
      %v1419 = vld [vmem:[%s378 + $0x20] sm:$0xff]
      %v1420 = vld [vmem:[%s378 + $0x28] sm:$0x11]
      %v1421 = vld [vmem:[%s378 + $0x30] sm:$0xff]
      %v1422 = vld [vmem:[%s378 + $0x38] sm:$0x11]
      %v1423 = vld [vmem:[%s378 + $0x40] sm:$0xff]
      %v1424 = vld [vmem:[%s378 + $0x48] sm:$0x11]
      %v1425 = vld [vmem:[%s378 + $0x50] sm:$0xff]
      %v1426 = vld [vmem:[%s378 + $0x58] sm:$0x11]
      %v1427 = vld [vmem:[%s378 + $0x60] sm:$0xff]
      %v1428 = vld [vmem:[%s378 + $0x68] sm:$0x11]
      %v1429 = vld [vmem:[%s378 + $0x70] sm:$0xff]
      %v1430 = vld [vmem:[%s378 + $0x78] sm:$0x11]
      %v1432 = vshrl.u32 %v1415, 16
      %v1434 = vrot.slane %v1432, 4
      %v1435 = vshll.u32 %v1415, 16
      %v1437 = vrot.slane %v1435, 5
      %v1438 = vor.u32 %v1434, %v1437
      %v1439 = vrot.slane %v1438, 4
      %v1441 = vshll.u32 %v1416, 16
      %v1443 = vrot.slane %v1441, 5
      %v1444 = vsel %vm479, %v1439, %v1443
      %v1446 = vshrl.u32 %v1417, 16
      %v1448 = vrot.slane %v1446, 4
      %v1449 = vshll.u32 %v1417, 16
      %v1451 = vrot.slane %v1449, 5
      %v1452 = vor.u32 %v1448, %v1451
      %v1453 = vrot.slane %v1452, 4
      %v1455 = vshll.u32 %v1418, 16
      %v1457 = vrot.slane %v1455, 5
      %v1458 = vsel %vm479, %v1453, %v1457
      %v1460 = vshrl.u32 %v1419, 16
      %v1462 = vrot.slane %v1460, 4
      %v1463 = vshll.u32 %v1419, 16
      %v1465 = vrot.slane %v1463, 5
      %v1466 = vor.u32 %v1462, %v1465
      %v1467 = vrot.slane %v1466, 4
      %v1469 = vshll.u32 %v1420, 16
      %v1471 = vrot.slane %v1469, 5
      %v1472 = vsel %vm479, %v1467, %v1471
      %v1474 = vshrl.u32 %v1421, 16
      %v1476 = vrot.slane %v1474, 4
      %v1477 = vshll.u32 %v1421, 16
      %v1479 = vrot.slane %v1477, 5
      %v1480 = vor.u32 %v1476, %v1479
      %v1481 = vrot.slane %v1480, 4
      %v1483 = vshll.u32 %v1422, 16
      %v1485 = vrot.slane %v1483, 5
      %v1486 = vsel %vm479, %v1481, %v1485
      %v1488 = vshrl.u32 %v1423, 16
      %v1490 = vrot.slane %v1488, 4
      %v1491 = vshll.u32 %v1423, 16
      %v1493 = vrot.slane %v1491, 5
      %v1494 = vor.u32 %v1490, %v1493
      %v1495 = vrot.slane %v1494, 4
      %v1497 = vshll.u32 %v1424, 16
      %v1499 = vrot.slane %v1497, 5
      %v1500 = vsel %vm479, %v1495, %v1499
      %v1502 = vshrl.u32 %v1425, 16
      %v1504 = vrot.slane %v1502, 4
      %v1505 = vshll.u32 %v1425, 16
      %v1507 = vrot.slane %v1505, 5
      %v1508 = vor.u32 %v1504, %v1507
      %v1509 = vrot.slane %v1508, 4
      %v1511 = vshll.u32 %v1426, 16
      %v1513 = vrot.slane %v1511, 5
      %v1514 = vsel %vm479, %v1509, %v1513
      %v1516 = vshrl.u32 %v1427, 16
      %v1518 = vrot.slane %v1516, 4
      %v1519 = vshll.u32 %v1427, 16
      %v1521 = vrot.slane %v1519, 5
      %v1522 = vor.u32 %v1518, %v1521
      %v1523 = vrot.slane %v1522, 4
      %v1525 = vshll.u32 %v1428, 16
      %v1527 = vrot.slane %v1525, 5
      %v1528 = vsel %vm479, %v1523, %v1527
      %v1530 = vshrl.u32 %v1429, 16
      %v1532 = vrot.slane %v1530, 4
      %v1533 = vshll.u32 %v1429, 16
      %v1535 = vrot.slane %v1533, 5
      %v1536 = vor.u32 %v1532, %v1535
      %v1537 = vrot.slane %v1536, 4
      %v1539 = vshll.u32 %v1430, 16
      %v1541 = vrot.slane %v1539, 5
      %v1542 = vsel %vm479, %v1537, %v1541
      %s1543 = scalar_lea.vmem %s1, 320
      %v1544 = vld [vmem:[%s1543] sm:$0xf]
      %v1545 = vld [vmem:[%s1543 + $0x4] sm:$0xf]
      %v1546 = vld [vmem:[%s1543 + $0x8] sm:$0xf]
      %v1547 = vld [vmem:[%s1543 + $0xc] sm:$0xf]
      %v1548 = vld [vmem:[%s1543 + $0x10] sm:$0xf]
      %v1549 = vld [vmem:[%s1543 + $0x14] sm:$0xf]
      %v1550 = vld [vmem:[%s1543 + $0x18] sm:$0xf]
      %v1551 = vld [vmem:[%s1543 + $0x1c] sm:$0xf]
      %v1552 = vld [vmem:[%s1543 + $0x20] sm:$0xf]
      %v1553 = vld [vmem:[%s1543 + $0x24] sm:$0xf]
      %v1554 = vld [vmem:[%s1543 + $0x28] sm:$0xf]
      %v1555 = vld [vmem:[%s1543 + $0x2c] sm:$0xf]
      %v1556 = vld [vmem:[%s1543 + $0x30] sm:$0xf]
      %v1557 = vld [vmem:[%s1543 + $0x34] sm:$0xf]
      %v1558 = vld [vmem:[%s1543 + $0x38] sm:$0xf]
      %v1559 = vld [vmem:[%s1543 + $0x3c] sm:$0xf]
      %v1560 = vld [vmem:[%s1543 + $0x40] sm:$0xf]
      %v1561 = vld [vmem:[%s1543 + $0x44] sm:$0xf]
      %v1562 = vld [vmem:[%s1543 + $0x48] sm:$0xf]
      %v1563 = vld [vmem:[%s1543 + $0x4c] sm:$0xf]
      %v1564 = vunpack.c.l.b16 %v1444
      %v1565 = vunpack.c.h.b16 %v1444
      %v1566 = vunpack.c.l.b16 %v1458
      %v1567 = vunpack.c.h.b16 %v1458
      %v1568 = vunpack.c.l.b16 %v1472
      %v1569 = vunpack.c.h.b16 %v1472
      %v1570 = vunpack.c.l.b16 %v1486
      %v1571 = vunpack.c.h.b16 %v1486
      %v1572 = vunpack.c.l.b16 %v1500
      %v1573 = vunpack.c.h.b16 %v1500
      %v1574 = vunpack.c.l.b16 %v1514
      %v1575 = vunpack.c.h.b16 %v1514
      %v1576 = vunpack.c.l.b16 %v1528
      %v1577 = vunpack.c.h.b16 %v1528
      %v1578 = vunpack.c.l.b16 %v1542
      %v1579 = vunpack.c.h.b16 %v1542
      %v1580 = vpack.c.b16 %v1566, %v1564
      %v1581 = vpack.c.b16 %v1567, %v1565
      %v1582 = vpack.c.b16 %v1570, %v1568
      %v1583 = vpack.c.b16 %v1571, %v1569
      %v1584 = vpack.c.b16 %v1574, %v1572
      %v1585 = vpack.c.b16 %v1575, %v1573
      %v1586 = vpack.c.b16 %v1578, %v1576
      %v1587 = vpack.c.b16 %v1579, %v1577
      %v1612 = vunpack.c.l.b16 %v1544
      %v1613 = vunpack.c.l.b16 %v1545
      %v1614 = vunpack.c.l.b16 %v1546
      %v1615 = vunpack.c.l.b16 %v1547
      %v1616 = vunpack.c.l.b16 %v1548
      %v1617 = vunpack.c.l.b16 %v1549
      %v1618 = vunpack.c.l.b16 %v1550
      %v1619 = vunpack.c.l.b16 %v1551
      %v1620 = vunpack.c.l.b16 %v1552
      %v1621 = vunpack.c.l.b16 %v1553
      %v1622 = vunpack.c.l.b16 %v1554
      %v1623 = vunpack.c.l.b16 %v1555
      %v1624 = vunpack.c.l.b16 %v1556
      %v1625 = vunpack.c.l.b16 %v1557
      %v1626 = vunpack.c.l.b16 %v1558
      %v1627 = vunpack.c.l.b16 %v1559
      %v1628 = vunpack.c.l.b16 %v1560
      %v1629 = vunpack.c.l.b16 %v1561
      %v1630 = vunpack.c.l.b16 %v1562
      %v1631 = vunpack.c.l.b16 %v1563
      %v1632 = vpack.c.b16 %v1613, %v1612
      %v1633 = vpack.c.b16 %v1615, %v1614
      %v1634 = vpack.c.b16 %v1617, %v1616
      %v1635 = vpack.c.b16 %v1619, %v1618
      %v1636 = vpack.c.b16 %v1621, %v1620
      %v1637 = vpack.c.b16 %v1623, %v1622
      %v1638 = vpack.c.b16 %v1625, %v1624
      %v1639 = vpack.c.b16 %v1627, %v1626
      %v1640 = vpack.c.b16 %v1629, %v1628
      %v1641 = vpack.c.b16 %v1631, %v1630
      %v1653 = vsel %vm701, %v1581, 0
      %v1656 = vsel %vm701, %v1583, 0
      %v1659 = vsel %vm701, %v1585, 0
      %v1662 = vsel %vm701, %v1587, 0
      %1664 = vmatprep.subr.bf16.mxu0 0
      %1665 = vmatpush1.bf16.msra.mxu0 %v1632
      %1666 = vmatprep.subr.bf16.mxu0 0
      %1667 = vmatpush1.bf16.msra.mxu0 %v1633
      %1668 = vmatprep.subr.bf16.mxu0 0
      %1669 = vmatpush1.bf16.msra.mxu0 %v1634
      %1670 = vmatprep.subr.bf16.mxu0 0
      %1671 = vmatpush1.bf16.msra.mxu0 %v1635
      %1672 = vmatprep.subr.bf16.mxu0 0
      %1673 = vmatpush1.bf16.msra.mxu0 %v1636
      %1674 = vmatprep.subr.bf16.mxu0 0
      %1675 = vmatpush1.bf16.msra.mxu0 %v1637
      %1676 = vmatprep.subr.bf16.mxu0 0
      %1677 = vmatpush1.bf16.msra.mxu0 %v1638
      %1678 = vmatprep.subr.bf16.mxu0 0
      %1679 = vmatpush1.bf16.msra.mxu0 %v1639
      %1680 = vmatprep.subr.bf16.mxu0 0
      %1681 = vmatpush1.bf16.msra.mxu0 %v1640
      %1682 = vmatprep.subr.bf16.mxu0 0
      %1683 = vmatpush1.bf16.msra.mxu0 %v1641
      %1684 = vmatprep.subr.bf16.mxu0 0
      %1685 = vmatpush1.bf16.msra.mxu0 0
      %1686 = vmatprep.subr.bf16.mxu0 0
      %1687 = vmatpush1.bf16.msra.mxu0 0
      %1688 = vmatprep.subr.bf16.mxu0 0
      %1689 = vmatpush1.bf16.msra.mxu0 0
      %1690 = vmatprep.subr.bf16.mxu0 0
      %1691 = vmatpush1.bf16.msra.mxu0 0
      %1692 = vmatprep.subr.bf16.mxu0 0
      %1693 = vmatpush1.bf16.msra.mxu0 0
      %1694 = vmatprep.subr.bf16.mxu0 0
      %1695 = vmatpush1.bf16.msra.mxu0 0
      %1696 = vmatprep.mubr.bf16.mxu0 %v1653
      %1697 = vmatmul.mubr.bf16.gmra.mrb[0].mxu0 %v1580
      %v1698 = vpop.f32.mrb[0].mxu0
      %v1699 = vadd.f32 0.0, %v1698
      %v1700 = vpop.f32.mrb[0].mxu0
      %v1701 = vpop.f32.mrb[0].mxu0
      %v1702 = vadd.f32 0.0, %v1701
      %v1703 = vpop.f32.mrb[0].mxu0
      %1704 = vmatprep.mubr.bf16.mxu0 %v1656
      %1705 = vmatmul.mubr.bf16.gmra.mrb[0].mxu0 %v1582
      %v1706 = vpop.f32.mrb[0].mxu0
      %v1707 = vadd.f32 0.0, %v1706
      %v1708 = vpop.f32.mrb[0].mxu0
      %v1709 = vpop.f32.mrb[0].mxu0
      %v1710 = vadd.f32 0.0, %v1709
      %v1711 = vpop.f32.mrb[0].mxu0
      %1712 = vmatprep.mubr.bf16.mxu0 %v1659
      %1713 = vmatmul.mubr.bf16.gmra.mrb[0].mxu0 %v1584
      %v1714 = vpop.f32.mrb[0].mxu0
      %v1715 = vadd.f32 0.0, %v1714
      %v1716 = vpop.f32.mrb[0].mxu0
      %v1717 = vpop.f32.mrb[0].mxu0
      %v1718 = vadd.f32 0.0, %v1717
      %v1719 = vpop.f32.mrb[0].mxu0
      %1720 = vmatprep.mubr.bf16.mxu0 %v1662
      %1721 = vmatmul.mubr.bf16.gmra.mrb[0].mxu0 %v1586
      %v1722 = vpop.f32.mrb[0].mxu0
      %v1723 = vadd.f32 0.0, %v1722
      %v1724 = vpop.f32.mrb[0].mxu0
      %v1725 = vpop.f32.mrb[0].mxu0
      %v1726 = vadd.f32 0.0, %v1725
      %v1727 = vpop.f32.mrb[0].mxu0
      %1728 = vdwg.mxu0
      %v1729 = vadd.f32 %v1407, %v1699
      %v1730 = vadd.f32 %v1408, %v1702
      %v1731 = vadd.f32 %v1409, %v1707
      %v1732 = vadd.f32 %v1410, %v1710
      %v1733 = vadd.f32 %v1411, %v1715
      %v1734 = vadd.f32 %v1412, %v1718
      %v1735 = vadd.f32 %v1413, %v1723
      %v1736 = vadd.f32 %v1414, %v1726
      %v1737 = vld [vmem:[%s378] sm:$0xee]
      %v1738 = vld [vmem:[%s378 + $0x10] sm:$0xee]
      %v1739 = vld [vmem:[%s378 + $0x20] sm:$0xee]
      %v1740 = vld [vmem:[%s378 + $0x30] sm:$0xee]
      %v1741 = vld [vmem:[%s378 + $0x40] sm:$0xee]
      %v1742 = vld [vmem:[%s378 + $0x50] sm:$0xee]
      %v1743 = vld [vmem:[%s378 + $0x60] sm:$0xee]
      %v1744 = vld [vmem:[%s378 + $0x70] sm:$0xee]
      %v1761 = vrot.slane %v1737, 5
      %v1762 = vrot.slane %v1761, 4
      %v1763 = vrot.slane %v1416, 5
      %v1764 = vsel %vm978, %v1762, %v1763
      %v1765 = vrot.slane %v1738, 5
      %v1766 = vrot.slane %v1765, 4
      %v1767 = vrot.slane %v1418, 5
      %v1768 = vsel %vm978, %v1766, %v1767
      %v1769 = vrot.slane %v1739, 5
      %v1770 = vrot.slane %v1769, 4
      %v1771 = vrot.slane %v1420, 5
      %v1772 = vsel %vm978, %v1770, %v1771
      %v1773 = vrot.slane %v1740, 5
      %v1774 = vrot.slane %v1773, 4
      %v1775 = vrot.slane %v1422, 5
      %v1776 = vsel %vm978, %v1774, %v1775
      %v1777 = vrot.slane %v1741, 5
      %v1778 = vrot.slane %v1777, 4
      %v1779 = vrot.slane %v1424, 5
      %v1780 = vsel %vm978, %v1778, %v1779
      %v1781 = vrot.slane %v1742, 5
      %v1782 = vrot.slane %v1781, 4
      %v1783 = vrot.slane %v1426, 5
      %v1784 = vsel %vm978, %v1782, %v1783
      %v1785 = vrot.slane %v1743, 5
      %v1786 = vrot.slane %v1785, 4
      %v1787 = vrot.slane %v1428, 5
      %v1788 = vsel %vm978, %v1786, %v1787
      %v1789 = vrot.slane %v1744, 5
      %v1790 = vrot.slane %v1789, 4
      %v1791 = vrot.slane %v1430, 5
      %v1792 = vsel %vm978, %v1790, %v1791
      %s1793 = scalar_lea.vmem %s1, 400
      %v1794 = vld [vmem:[%s1793] sm:$0xf]
      %v1795 = vld [vmem:[%s1793 + $0x4] sm:$0xf]
      %v1796 = vld [vmem:[%s1793 + $0x8] sm:$0xf]
      %v1797 = vld [vmem:[%s1793 + $0xc] sm:$0xf]
      %v1798 = vld [vmem:[%s1793 + $0x10] sm:$0xf]
      %v1799 = vld [vmem:[%s1793 + $0x14] sm:$0xf]
      %v1800 = vld [vmem:[%s1793 + $0x18] sm:$0xf]
      %v1801 = vld [vmem:[%s1793 + $0x1c] sm:$0xf]
      %v1802 = vld [vmem:[%s1793 + $0x20] sm:$0xf]
      %v1803 = vld [vmem:[%s1793 + $0x24] sm:$0xf]
      %v1804 = vld [vmem:[%s1793 + $0x28] sm:$0xf]
      %v1805 = vld [vmem:[%s1793 + $0x2c] sm:$0xf]
      %v1806 = vld [vmem:[%s1793 + $0x30] sm:$0xf]
      %v1807 = vld [vmem:[%s1793 + $0x34] sm:$0xf]
      %v1808 = vld [vmem:[%s1793 + $0x38] sm:$0xf]
      %v1809 = vld [vmem:[%s1793 + $0x3c] sm:$0xf]
      %v1810 = vld [vmem:[%s1793 + $0x40] sm:$0xf]
      %v1811 = vld [vmem:[%s1793 + $0x44] sm:$0xf]
      %v1812 = vld [vmem:[%s1793 + $0x48] sm:$0xf]
      %v1813 = vld [vmem:[%s1793 + $0x4c] sm:$0xf]
      %v1814 = vunpack.c.l.b16 %v1764
      %v1815 = vunpack.c.h.b16 %v1764
      %v1816 = vunpack.c.l.b16 %v1768
      %v1817 = vunpack.c.h.b16 %v1768
      %v1818 = vunpack.c.l.b16 %v1772
      %v1819 = vunpack.c.h.b16 %v1772
      %v1820 = vunpack.c.l.b16 %v1776
      %v1821 = vunpack.c.h.b16 %v1776
      %v1822 = vunpack.c.l.b16 %v1780
      %v1823 = vunpack.c.h.b16 %v1780
      %v1824 = vunpack.c.l.b16 %v1784
      %v1825 = vunpack.c.h.b16 %v1784
      %v1826 = vunpack.c.l.b16 %v1788
      %v1827 = vunpack.c.h.b16 %v1788
      %v1828 = vunpack.c.l.b16 %v1792
      %v1829 = vunpack.c.h.b16 %v1792
      %v1830 = vpack.c.b16 %v1816, %v1814
      %v1831 = vpack.c.b16 %v1817, %v1815
      %v1832 = vpack.c.b16 %v1820, %v1818
      %v1833 = vpack.c.b16 %v1821, %v1819
      %v1834 = vpack.c.b16 %v1824, %v1822
      %v1835 = vpack.c.b16 %v1825, %v1823
      %v1836 = vpack.c.b16 %v1828, %v1826
      %v1837 = vpack.c.b16 %v1829, %v1827
      %v1862 = vunpack.c.l.b16 %v1794
      %v1863 = vunpack.c.l.b16 %v1795
      %v1864 = vunpack.c.l.b16 %v1796
      %v1865 = vunpack.c.l.b16 %v1797
      %v1866 = vunpack.c.l.b16 %v1798
      %v1867 = vunpack.c.l.b16 %v1799
      %v1868 = vunpack.c.l.b16 %v1800
      %v1869 = vunpack.c.l.b16 %v1801
      %v1870 = vunpack.c.l.b16 %v1802
      %v1871 = vunpack.c.l.b16 %v1803
      %v1872 = vunpack.c.l.b16 %v1804
      %v1873 = vunpack.c.l.b16 %v1805
      %v1874 = vunpack.c.l.b16 %v1806
      %v1875 = vunpack.c.l.b16 %v1807
      %v1876 = vunpack.c.l.b16 %v1808
      %v1877 = vunpack.c.l.b16 %v1809
      %v1878 = vunpack.c.l.b16 %v1810
      %v1879 = vunpack.c.l.b16 %v1811
      %v1880 = vunpack.c.l.b16 %v1812
      %v1881 = vunpack.c.l.b16 %v1813
      %v1882 = vpack.c.b16 %v1863, %v1862
      %v1883 = vpack.c.b16 %v1865, %v1864
      %v1884 = vpack.c.b16 %v1867, %v1866
      %v1885 = vpack.c.b16 %v1869, %v1868
      %v1886 = vpack.c.b16 %v1871, %v1870
      %v1887 = vpack.c.b16 %v1873, %v1872
      %v1888 = vpack.c.b16 %v1875, %v1874
      %v1889 = vpack.c.b16 %v1877, %v1876
      %v1890 = vpack.c.b16 %v1879, %v1878
      %v1891 = vpack.c.b16 %v1881, %v1880
      %v1903 = vsel %vm701, %v1831, 0
      %v1906 = vsel %vm701, %v1833, 0
      %v1909 = vsel %vm701, %v1835, 0
      %v1912 = vsel %vm701, %v1837, 0
      %1914 = vmatprep.subr.bf16.mxu0 0
      %1915 = vmatpush1.bf16.msra.mxu0 %v1882
      %1916 = vmatprep.subr.bf16.mxu0 0
      %1917 = vmatpush1.bf16.msra.mxu0 %v1883
      %1918 = vmatprep.subr.bf16.mxu0 0
      %1919 = vmatpush1.bf16.msra.mxu0 %v1884
      %1920 = vmatprep.subr.bf16.mxu0 0
      %1921 = vmatpush1.bf16.msra.mxu0 %v1885
      %1922 = vmatprep.subr.bf16.mxu0 0
      %1923 = vmatpush1.bf16.msra.mxu0 %v1886
      %1924 = vmatprep.subr.bf16.mxu0 0
      %1925 = vmatpush1.bf16.msra.mxu0 %v1887
      %1926 = vmatprep.subr.bf16.mxu0 0
      %1927 = vmatpush1.bf16.msra.mxu0 %v1888
      %1928 = vmatprep.subr.bf16.mxu0 0
      %1929 = vmatpush1.bf16.msra.mxu0 %v1889
      %1930 = vmatprep.subr.bf16.mxu0 0
      %1931 = vmatpush1.bf16.msra.mxu0 %v1890
      %1932 = vmatprep.subr.bf16.mxu0 0
      %1933 = vmatpush1.bf16.msra.mxu0 %v1891
      %1934 = vmatprep.subr.bf16.mxu0 0
      %1935 = vmatpush1.bf16.msra.mxu0 0
      %1936 = vmatprep.subr.bf16.mxu0 0
      %1937 = vmatpush1.bf16.msra.mxu0 0
      %1938 = vmatprep.subr.bf16.mxu0 0
      %1939 = vmatpush1.bf16.msra.mxu0 0
      %1940 = vmatprep.subr.bf16.mxu0 0
      %1941 = vmatpush1.bf16.msra.mxu0 0
      %1942 = vmatprep.subr.bf16.mxu0 0
      %1943 = vmatpush1.bf16.msra.mxu0 0
      %1944 = vmatprep.subr.bf16.mxu0 0
      %1945 = vmatpush1.bf16.msra.mxu0 0
      %1946 = vmatprep.mubr.bf16.mxu0 %v1903
      %1947 = vmatmul.mubr.bf16.gmra.mrb[0].mxu0 %v1830
      %v1948 = vpop.f32.mrb[0].mxu0
      %v1949 = vadd.f32 0.0, %v1948
      %v1950 = vpop.f32.mrb[0].mxu0
      %v1951 = vpop.f32.mrb[0].mxu0
      %v1952 = vadd.f32 0.0, %v1951
      %v1953 = vpop.f32.mrb[0].mxu0
      %1954 = vmatprep.mubr.bf16.mxu0 %v1906
      %1955 = vmatmul.mubr.bf16.gmra.mrb[0].mxu0 %v1832
      %v1956 = vpop.f32.mrb[0].mxu0
      %v1957 = vadd.f32 0.0, %v1956
      %v1958 = vpop.f32.mrb[0].mxu0
      %v1959 = vpop.f32.mrb[0].mxu0
      %v1960 = vadd.f32 0.0, %v1959
      %v1961 = vpop.f32.mrb[0].mxu0
      %1962 = vmatprep.mubr.bf16.mxu0 %v1909
      %1963 = vmatmul.mubr.bf16.gmra.mrb[0].mxu0 %v1834
      %v1964 = vpop.f32.mrb[0].mxu0
      %v1965 = vadd.f32 0.0, %v1964
      %v1966 = vpop.f32.mrb[0].mxu0
      %v1967 = vpop.f32.mrb[0].mxu0
      %v1968 = vadd.f32 0.0, %v1967
      %v1969 = vpop.f32.mrb[0].mxu0
      %1970 = vmatprep.mubr.bf16.mxu0 %v1912
      %1971 = vmatmul.mubr.bf16.gmra.mrb[0].mxu0 %v1836
      %v1972 = vpop.f32.mrb[0].mxu0
      %v1973 = vadd.f32 0.0, %v1972
      %v1974 = vpop.f32.mrb[0].mxu0
      %v1975 = vpop.f32.mrb[0].mxu0
      %v1976 = vadd.f32 0.0, %v1975
      %v1977 = vpop.f32.mrb[0].mxu0
      %1978 = vdwg.mxu0
      %v1979 = vadd.f32 %v1729, %v1949
      %v1980 = vadd.f32 %v1730, %v1952
      %v1981 = vadd.f32 %v1731, %v1957
      %v1982 = vadd.f32 %v1732, %v1960
      %v1983 = vadd.f32 %v1733, %v1965
      %v1984 = vadd.f32 %v1734, %v1968
      %v1985 = vadd.f32 %v1735, %v1973
      %v1986 = vadd.f32 %v1736, %v1976
      %s1987 = scalar_lea.vmem [#allocation2], 32
      %v1988 = vld [vmem:[%s1987] sm:$0xff]
      %v1989 = vld [vmem:[%s1987 + $0x10] sm:$0xff]
      %v1990 = vld [vmem:[%s1987 + $0x20] sm:$0xff]
      %v1991 = vld [vmem:[%s1987 + $0x30] sm:$0xff]
      %v1992 = vld [vmem:[%s1987 + $0x40] sm:$0xff]
      %v1993 = vld [vmem:[%s1987 + $0x50] sm:$0xff]
      %v1994 = vld [vmem:[%s1987 + $0x60] sm:$0xff]
      %v1995 = vld [vmem:[%s1987 + $0x70] sm:$0xff]
      %s1996 = scalar_lea.vmem %s1, 480
      %v1997 = vld [vmem:[%s1996] sm:$0xf]
      %v1998 = vld [vmem:[%s1996 + $0x4] sm:$0xf]
      %v1999 = vld [vmem:[%s1996 + $0x8] sm:$0xf]
      %v2000 = vld [vmem:[%s1996 + $0xc] sm:$0xf]
      %v2001 = vld [vmem:[%s1996 + $0x10] sm:$0xf]
      %v2002 = vld [vmem:[%s1996 + $0x14] sm:$0xf]
      %v2003 = vld [vmem:[%s1996 + $0x18] sm:$0xf]
      %v2004 = vld [vmem:[%s1996 + $0x1c] sm:$0xf]
      %v2005 = vld [vmem:[%s1996 + $0x20] sm:$0xf]
      %v2006 = vld [vmem:[%s1996 + $0x24] sm:$0xf]
      %v2007 = vld [vmem:[%s1996 + $0x28] sm:$0xf]
      %v2008 = vld [vmem:[%s1996 + $0x2c] sm:$0xf]
      %v2009 = vld [vmem:[%s1996 + $0x30] sm:$0xf]
      %v2010 = vld [vmem:[%s1996 + $0x34] sm:$0xf]
      %v2011 = vld [vmem:[%s1996 + $0x38] sm:$0xf]
      %v2012 = vld [vmem:[%s1996 + $0x3c] sm:$0xf]
      %v2013 = vld [vmem:[%s1996 + $0x40] sm:$0xf]
      %v2014 = vld [vmem:[%s1996 + $0x44] sm:$0xf]
      %v2015 = vld [vmem:[%s1996 + $0x48] sm:$0xf]
      %v2016 = vld [vmem:[%s1996 + $0x4c] sm:$0xf]
      %v2025 = vunpack.c.l.b16 %v1988
      %v2026 = vunpack.c.h.b16 %v1988
      %v2027 = vunpack.c.l.b16 %v1989
      %v2028 = vunpack.c.h.b16 %v1989
      %v2029 = vunpack.c.l.b16 %v1990
      %v2030 = vunpack.c.h.b16 %v1990
      %v2031 = vunpack.c.l.b16 %v1991
      %v2032 = vunpack.c.h.b16 %v1991
      %v2033 = vunpack.c.l.b16 %v1992
      %v2034 = vunpack.c.h.b16 %v1992
      %v2035 = vunpack.c.l.b16 %v1993
      %v2036 = vunpack.c.h.b16 %v1993
      %v2037 = vunpack.c.l.b16 %v1994
      %v2038 = vunpack.c.h.b16 %v1994
      %v2039 = vunpack.c.l.b16 %v1995
      %v2040 = vunpack.c.h.b16 %v1995
      %v2041 = vpack.c.b16 %v2027, %v2025
      %v2042 = vpack.c.b16 %v2028, %v2026
      %v2043 = vpack.c.b16 %v2031, %v2029
      %v2044 = vpack.c.b16 %v2032, %v2030
      %v2045 = vpack.c.b16 %v2035, %v2033
      %v2046 = vpack.c.b16 %v2036, %v2034
      %v2047 = vpack.c.b16 %v2039, %v2037
      %v2048 = vpack.c.b16 %v2040, %v2038
      %v2073 = vunpack.c.l.b16 %v1997
      %v2074 = vunpack.c.l.b16 %v1998
      %v2075 = vunpack.c.l.b16 %v1999
      %v2076 = vunpack.c.l.b16 %v2000
      %v2077 = vunpack.c.l.b16 %v2001
      %v2078 = vunpack.c.l.b16 %v2002
      %v2079 = vunpack.c.l.b16 %v2003
      %v2080 = vunpack.c.l.b16 %v2004
      %v2081 = vunpack.c.l.b16 %v2005
      %v2082 = vunpack.c.l.b16 %v2006
      %v2083 = vunpack.c.l.b16 %v2007
      %v2084 = vunpack.c.l.b16 %v2008
      %v2085 = vunpack.c.l.b16 %v2009
      %v2086 = vunpack.c.l.b16 %v2010
      %v2087 = vunpack.c.l.b16 %v2011
      %v2088 = vunpack.c.l.b16 %v2012
      %v2089 = vunpack.c.l.b16 %v2013
      %v2090 = vunpack.c.l.b16 %v2014
      %v2091 = vunpack.c.l.b16 %v2015
      %v2092 = vunpack.c.l.b16 %v2016
      %v2093 = vpack.c.b16 %v2074, %v2073
      %v2094 = vpack.c.b16 %v2076, %v2075
      %v2095 = vpack.c.b16 %v2078, %v2077
      %v2096 = vpack.c.b16 %v2080, %v2079
      %v2097 = vpack.c.b16 %v2082, %v2081
      %v2098 = vpack.c.b16 %v2084, %v2083
      %v2099 = vpack.c.b16 %v2086, %v2085
      %v2100 = vpack.c.b16 %v2088, %v2087
      %v2101 = vpack.c.b16 %v2090, %v2089
      %v2102 = vpack.c.b16 %v2092, %v2091
      %v2114 = vsel %vm701, %v2042, 0
      %v2117 = vsel %vm701, %v2044, 0
      %v2120 = vsel %vm701, %v2046, 0
      %v2123 = vsel %vm701, %v2048, 0
      %2125 = vmatprep.subr.bf16.mxu0 0
      %2126 = vmatpush1.bf16.msra.mxu0 %v2093
      %2127 = vmatprep.subr.bf16.mxu0 0
      %2128 = vmatpush1.bf16.msra.mxu0 %v2094
      %2129 = vmatprep.subr.bf16.mxu0 0
      %2130 = vmatpush1.bf16.msra.mxu0 %v2095
      %2131 = vmatprep.subr.bf16.mxu0 0
      %2132 = vmatpush1.bf16.msra.mxu0 %v2096
      %2133 = vmatprep.subr.bf16.mxu0 0
      %2134 = vmatpush1.bf16.msra.mxu0 %v2097
      %2135 = vmatprep.subr.bf16.mxu0 0
      %2136 = vmatpush1.bf16.msra.mxu0 %v2098
      %2137 = vmatprep.subr.bf16.mxu0 0
      %2138 = vmatpush1.bf16.msra.mxu0 %v2099
      %2139 = vmatprep.subr.bf16.mxu0 0
      %2140 = vmatpush1.bf16.msra.mxu0 %v2100
      %2141 = vmatprep.subr.bf16.mxu0 0
      %2142 = vmatpush1.bf16.msra.mxu0 %v2101
      %2143 = vmatprep.subr.bf16.mxu0 0
      %2144 = vmatpush1.bf16.msra.mxu0 %v2102
      %2145 = vmatprep.subr.bf16.mxu0 0
      %2146 = vmatpush1.bf16.msra.mxu0 0
      %2147 = vmatprep.subr.bf16.mxu0 0
      %2148 = vmatpush1.bf16.msra.mxu0 0
      %2149 = vmatprep.subr.bf16.mxu0 0
      %2150 = vmatpush1.bf16.msra.mxu0 0
      %2151 = vmatprep.subr.bf16.mxu0 0
      %2152 = vmatpush1.bf16.msra.mxu0 0
      %2153 = vmatprep.subr.bf16.mxu0 0
      %2154 = vmatpush1.bf16.msra.mxu0 0
      %2155 = vmatprep.subr.bf16.mxu0 0
      %2156 = vmatpush1.bf16.msra.mxu0 0
      %2157 = vmatprep.mubr.bf16.mxu0 %v2114
      %2158 = vmatmul.mubr.bf16.gmra.mrb[0].mxu0 %v2041
      %v2159 = vpop.f32.mrb[0].mxu0
      %v2160 = vadd.f32 0.0, %v2159
      %v2161 = vpop.f32.mrb[0].mxu0
      %v2162 = vpop.f32.mrb[0].mxu0
      %v2163 = vadd.f32 0.0, %v2162
      %v2164 = vpop.f32.mrb[0].mxu0
      %2165 = vmatprep.mubr.bf16.mxu0 %v2117
      %2166 = vmatmul.mubr.bf16.gmra.mrb[0].mxu0 %v2043
      %v2167 = vpop.f32.mrb[0].mxu0
      %v2168 = vadd.f32 0.0, %v2167
      %v2169 = vpop.f32.mrb[0].mxu0
      %v2170 = vpop.f32.mrb[0].mxu0
      %v2171 = vadd.f32 0.0, %v2170
      %v2172 = vpop.f32.mrb[0].mxu0
      %2173 = vmatprep.mubr.bf16.mxu0 %v2120
      %2174 = vmatmul.mubr.bf16.gmra.mrb[0].mxu0 %v2045
      %v2175 = vpop.f32.mrb[0].mxu0
      %v2176 = vadd.f32 0.0, %v2175
      %v2177 = vpop.f32.mrb[0].mxu0
      %v2178 = vpop.f32.mrb[0].mxu0
      %v2179 = vadd.f32 0.0, %v2178
      %v2180 = vpop.f32.mrb[0].mxu0
      %2181 = vmatprep.mubr.bf16.mxu0 %v2123
      %2182 = vmatmul.mubr.bf16.gmra.mrb[0].mxu0 %v2047
      %v2183 = vpop.f32.mrb[0].mxu0
      %v2184 = vadd.f32 0.0, %v2183
      %v2185 = vpop.f32.mrb[0].mxu0
      %v2186 = vpop.f32.mrb[0].mxu0
      %v2187 = vadd.f32 0.0, %v2186
      %v2188 = vpop.f32.mrb[0].mxu0
      %2189 = vdwg.mxu0
      %v2190 = vadd.f32 %v1979, %v2160
      %v2191 = vadd.f32 %v1980, %v2163
      %v2192 = vadd.f32 %v1981, %v2168
      %v2193 = vadd.f32 %v1982, %v2171
      %v2194 = vadd.f32 %v1983, %v2176
      %v2195 = vadd.f32 %v1984, %v2179
      %v2196 = vadd.f32 %v1985, %v2184
      %v2197 = vadd.f32 %v1986, %v2187
      %v2198 = vld [vmem:[%s1987] sm:$0xff]
      %v2199 = vld [vmem:[%s1987 + $0x8] sm:$0x11]
      %v2200 = vld [vmem:[%s1987 + $0x10] sm:$0xff]
      %v2201 = vld [vmem:[%s1987 + $0x18] sm:$0x11]
      %v2202 = vld [vmem:[%s1987 + $0x20] sm:$0xff]
      %v2203 = vld [vmem:[%s1987 + $0x28] sm:$0x11]
      %v2204 = vld [vmem:[%s1987 + $0x30] sm:$0xff]
      %v2205 = vld [vmem:[%s1987 + $0x38] sm:$0x11]
      %v2206 = vld [vmem:[%s1987 + $0x40] sm:$0xff]
      %v2207 = vld [vmem:[%s1987 + $0x48] sm:$0x11]
      %v2208 = vld [vmem:[%s1987 + $0x50] sm:$0xff]
      %v2209 = vld [vmem:[%s1987 + $0x58] sm:$0x11]
      %v2210 = vld [vmem:[%s1987 + $0x60] sm:$0xff]
      %v2211 = vld [vmem:[%s1987 + $0x68] sm:$0x11]
      %v2212 = vld [vmem:[%s1987 + $0x70] sm:$0xff]
      %v2213 = vld [vmem:[%s1987 + $0x78] sm:$0x11]
      %v2215 = vshrl.u32 %v2198, 16
      %v2217 = vrot.slane %v2215, 4
      %v2218 = vshll.u32 %v2198, 16
      %v2220 = vrot.slane %v2218, 5
      %v2221 = vor.u32 %v2217, %v2220
      %v2222 = vrot.slane %v2221, 4
      %v2224 = vshll.u32 %v2199, 16
      %v2226 = vrot.slane %v2224, 5
      %v2227 = vsel %vm479, %v2222, %v2226
      %v2229 = vshrl.u32 %v2200, 16
      %v2231 = vrot.slane %v2229, 4
      %v2232 = vshll.u32 %v2200, 16
      %v2234 = vrot.slane %v2232, 5
      %v2235 = vor.u32 %v2231, %v2234
      %v2236 = vrot.slane %v2235, 4
      %v2238 = vshll.u32 %v2201, 16
      %v2240 = vrot.slane %v2238, 5
      %v2241 = vsel %vm479, %v2236, %v2240
      %v2243 = vshrl.u32 %v2202, 16
      %v2245 = vrot.slane %v2243, 4
      %v2246 = vshll.u32 %v2202, 16
      %v2248 = vrot.slane %v2246, 5
      %v2249 = vor.u32 %v2245, %v2248
      %v2250 = vrot.slane %v2249, 4
      %v2252 = vshll.u32 %v2203, 16
      %v2254 = vrot.slane %v2252, 5
      %v2255 = vsel %vm479, %v2250, %v2254
      %v2257 = vshrl.u32 %v2204, 16
      %v2259 = vrot.slane %v2257, 4
      %v2260 = vshll.u32 %v2204, 16
      %v2262 = vrot.slane %v2260, 5
      %v2263 = vor.u32 %v2259, %v2262
      %v2264 = vrot.slane %v2263, 4
      %v2266 = vshll.u32 %v2205, 16
      %v2268 = vrot.slane %v2266, 5
      %v2269 = vsel %vm479, %v2264, %v2268
      %v2271 = vshrl.u32 %v2206, 16
      %v2273 = vrot.slane %v2271, 4
      %v2274 = vshll.u32 %v2206, 16
      %v2276 = vrot.slane %v2274, 5
      %v2277 = vor.u32 %v2273, %v2276
      %v2278 = vrot.slane %v2277, 4
      %v2280 = vshll.u32 %v2207, 16
      %v2282 = vrot.slane %v2280, 5
      %v2283 = vsel %vm479, %v2278, %v2282
      %v2285 = vshrl.u32 %v2208, 16
      %v2287 = vrot.slane %v2285, 4
      %v2288 = vshll.u32 %v2208, 16
      %v2290 = vrot.slane %v2288, 5
      %v2291 = vor.u32 %v2287, %v2290
      %v2292 = vrot.slane %v2291, 4
      %v2294 = vshll.u32 %v2209, 16
      %v2296 = vrot.slane %v2294, 5
      %v2297 = vsel %vm479, %v2292, %v2296
      %v2299 = vshrl.u32 %v2210, 16
      %v2301 = vrot.slane %v2299, 4
      %v2302 = vshll.u32 %v2210, 16
      %v2304 = vrot.slane %v2302, 5
      %v2305 = vor.u32 %v2301, %v2304
      %v2306 = vrot.slane %v2305, 4
      %v2308 = vshll.u32 %v2211, 16
      %v2310 = vrot.slane %v2308, 5
      %v2311 = vsel %vm479, %v2306, %v2310
      %v2313 = vshrl.u32 %v2212, 16
      %v2315 = vrot.slane %v2313, 4
      %v2316 = vshll.u32 %v2212, 16
      %v2318 = vrot.slane %v2316, 5
      %v2319 = vor.u32 %v2315, %v2318
      %v2320 = vrot.slane %v2319, 4
      %v2322 = vshll.u32 %v2213, 16
      %v2324 = vrot.slane %v2322, 5
      %v2325 = vsel %vm479, %v2320, %v2324
      %s2326 = scalar_lea.vmem %s1, 560
      %v2327 = vld [vmem:[%s2326] sm:$0xf]
      %v2328 = vld [vmem:[%s2326 + $0x4] sm:$0xf]
      %v2329 = vld [vmem:[%s2326 + $0x8] sm:$0xf]
      %v2330 = vld [vmem:[%s2326 + $0xc] sm:$0xf]
      %v2331 = vld [vmem:[%s2326 + $0x10] sm:$0xf]
      %v2332 = vld [vmem:[%s2326 + $0x14] sm:$0xf]
      %v2333 = vld [vmem:[%s2326 + $0x18] sm:$0xf]
      %v2334 = vld [vmem:[%s2326 + $0x1c] sm:$0xf]
      %v2335 = vld [vmem:[%s2326 + $0x20] sm:$0xf]
      %v2336 = vld [vmem:[%s2326 + $0x24] sm:$0xf]
      %v2337 = vld [vmem:[%s2326 + $0x28] sm:$0xf]
      %v2338 = vld [vmem:[%s2326 + $0x2c] sm:$0xf]
      %v2339 = vld [vmem:[%s2326 + $0x30] sm:$0xf]
      %v2340 = vld [vmem:[%s2326 + $0x34] sm:$0xf]
      %v2341 = vld [vmem:[%s2326 + $0x38] sm:$0xf]
      %v2342 = vld [vmem:[%s2326 + $0x3c] sm:$0xf]
      %v2343 = vld [vmem:[%s2326 + $0x40] sm:$0xf]
      %v2344 = vld [vmem:[%s2326 + $0x44] sm:$0xf]
      %v2345 = vld [vmem:[%s2326 + $0x48] sm:$0xf]
      %v2346 = vld [vmem:[%s2326 + $0x4c] sm:$0xf]
      %v2347 = vunpack.c.l.b16 %v2227
      %v2348 = vunpack.c.h.b16 %v2227
      %v2349 = vunpack.c.l.b16 %v2241
      %v2350 = vunpack.c.h.b16 %v2241
      %v2351 = vunpack.c.l.b16 %v2255
      %v2352 = vunpack.c.h.b16 %v2255
      %v2353 = vunpack.c.l.b16 %v2269
      %v2354 = vunpack.c.h.b16 %v2269
      %v2355 = vunpack.c.l.b16 %v2283
      %v2356 = vunpack.c.h.b16 %v2283
      %v2357 = vunpack.c.l.b16 %v2297
      %v2358 = vunpack.c.h.b16 %v2297
      %v2359 = vunpack.c.l.b16 %v2311
      %v2360 = vunpack.c.h.b16 %v2311
      %v2361 = vunpack.c.l.b16 %v2325
      %v2362 = vunpack.c.h.b16 %v2325
      %v2363 = vpack.c.b16 %v2349, %v2347
      %v2364 = vpack.c.b16 %v2350, %v2348
      %v2365 = vpack.c.b16 %v2353, %v2351
      %v2366 = vpack.c.b16 %v2354, %v2352
      %v2367 = vpack.c.b16 %v2357, %v2355
      %v2368 = vpack.c.b16 %v2358, %v2356
      %v2369 = vpack.c.b16 %v2361, %v2359
      %v2370 = vpack.c.b16 %v2362, %v2360
      %v2395 = vunpack.c.l.b16 %v2327
      %v2396 = vunpack.c.l.b16 %v2328
      %v2397 = vunpack.c.l.b16 %v2329
      %v2398 = vunpack.c.l.b16 %v2330
      %v2399 = vunpack.c.l.b16 %v2331
      %v2400 = vunpack.c.l.b16 %v2332
      %v2401 = vunpack.c.l.b16 %v2333
      %v2402 = vunpack.c.l.b16 %v2334
      %v2403 = vunpack.c.l.b16 %v2335
      %v2404 = vunpack.c.l.b16 %v2336
      %v2405 = vunpack.c.l.b16 %v2337
      %v2406 = vunpack.c.l.b16 %v2338
      %v2407 = vunpack.c.l.b16 %v2339
      %v2408 = vunpack.c.l.b16 %v2340
      %v2409 = vunpack.c.l.b16 %v2341
      %v2410 = vunpack.c.l.b16 %v2342
      %v2411 = vunpack.c.l.b16 %v2343
      %v2412 = vunpack.c.l.b16 %v2344
      %v2413 = vunpack.c.l.b16 %v2345
      %v2414 = vunpack.c.l.b16 %v2346
      %v2415 = vpack.c.b16 %v2396, %v2395
      %v2416 = vpack.c.b16 %v2398, %v2397
      %v2417 = vpack.c.b16 %v2400, %v2399
      %v2418 = vpack.c.b16 %v2402, %v2401
      %v2419 = vpack.c.b16 %v2404, %v2403
      %v2420 = vpack.c.b16 %v2406, %v2405
      %v2421 = vpack.c.b16 %v2408, %v2407
      %v2422 = vpack.c.b16 %v2410, %v2409
      %v2423 = vpack.c.b16 %v2412, %v2411
      %v2424 = vpack.c.b16 %v2414, %v2413
      %v2436 = vsel %vm701, %v2364, 0
      %v2439 = vsel %vm701, %v2366, 0
      %v2442 = vsel %vm701, %v2368, 0
      %v2445 = vsel %vm701, %v2370, 0
      %2447 = vmatprep.subr.bf16.mxu0 0
      %2448 = vmatpush1.bf16.msra.mxu0 %v2415
      %2449 = vmatprep.subr.bf16.mxu0 0
      %2450 = vmatpush1.bf16.msra.mxu0 %v2416
      %2451 = vmatprep.subr.bf16.mxu0 0
      %2452 = vmatpush1.bf16.msra.mxu0 %v2417
      %2453 = vmatprep.subr.bf16.mxu0 0
      %2454 = vmatpush1.bf16.msra.mxu0 %v2418
      %2455 = vmatprep.subr.bf16.mxu0 0
      %2456 = vmatpush1.bf16.msra.mxu0 %v2419
      %2457 = vmatprep.subr.bf16.mxu0 0
      %2458 = vmatpush1.bf16.msra.mxu0 %v2420
      %2459 = vmatprep.subr.bf16.mxu0 0
      %2460 = vmatpush1.bf16.msra.mxu0 %v2421
      %2461 = vmatprep.subr.bf16.mxu0 0
      %2462 = vmatpush1.bf16.msra.mxu0 %v2422
      %2463 = vmatprep.subr.bf16.mxu0 0
      %2464 = vmatpush1.bf16.msra.mxu0 %v2423
      %2465 = vmatprep.subr.bf16.mxu0 0
      %2466 = vmatpush1.bf16.msra.mxu0 %v2424
      %2467 = vmatprep.subr.bf16.mxu0 0
      %2468 = vmatpush1.bf16.msra.mxu0 0
      %2469 = vmatprep.subr.bf16.mxu0 0
      %2470 = vmatpush1.bf16.msra.mxu0 0
      %2471 = vmatprep.subr.bf16.mxu0 0
      %2472 = vmatpush1.bf16.msra.mxu0 0
      %2473 = vmatprep.subr.bf16.mxu0 0
      %2474 = vmatpush1.bf16.msra.mxu0 0
      %2475 = vmatprep.subr.bf16.mxu0 0
      %2476 = vmatpush1.bf16.msra.mxu0 0
      %2477 = vmatprep.subr.bf16.mxu0 0
      %2478 = vmatpush1.bf16.msra.mxu0 0
      %2479 = vmatprep.mubr.bf16.mxu0 %v2436
      %2480 = vmatmul.mubr.bf16.gmra.mrb[0].mxu0 %v2363
      %v2481 = vpop.f32.mrb[0].mxu0
      %v2482 = vadd.f32 0.0, %v2481
      %v2483 = vpop.f32.mrb[0].mxu0
      %v2484 = vpop.f32.mrb[0].mxu0
      %v2485 = vadd.f32 0.0, %v2484
      %v2486 = vpop.f32.mrb[0].mxu0
      %2487 = vmatprep.mubr.bf16.mxu0 %v2439
      %2488 = vmatmul.mubr.bf16.gmra.mrb[0].mxu0 %v2365
      %v2489 = vpop.f32.mrb[0].mxu0
      %v2490 = vadd.f32 0.0, %v2489
      %v2491 = vpop.f32.mrb[0].mxu0
      %v2492 = vpop.f32.mrb[0].mxu0
      %v2493 = vadd.f32 0.0, %v2492
      %v2494 = vpop.f32.mrb[0].mxu0
      %2495 = vmatprep.mubr.bf16.mxu0 %v2442
      %2496 = vmatmul.mubr.bf16.gmra.mrb[0].mxu0 %v2367
      %v2497 = vpop.f32.mrb[0].mxu0
      %v2498 = vadd.f32 0.0, %v2497
      %v2499 = vpop.f32.mrb[0].mxu0
      %v2500 = vpop.f32.mrb[0].mxu0
      %v2501 = vadd.f32 0.0, %v2500
      %v2502 = vpop.f32.mrb[0].mxu0
      %2503 = vmatprep.mubr.bf16.mxu0 %v2445
      %2504 = vmatmul.mubr.bf16.gmra.mrb[0].mxu0 %v2369
      %v2505 = vpop.f32.mrb[0].mxu0
      %v2506 = vadd.f32 0.0, %v2505
      %v2507 = vpop.f32.mrb[0].mxu0
      %v2508 = vpop.f32.mrb[0].mxu0
      %v2509 = vadd.f32 0.0, %v2508
      %v2510 = vpop.f32.mrb[0].mxu0
      %2511 = vdwg.mxu0
      %v2512 = vadd.f32 %v2190, %v2482
      %v2513 = vadd.f32 %v2191, %v2485
      %v2514 = vadd.f32 %v2192, %v2490
      %v2515 = vadd.f32 %v2193, %v2493
      %v2516 = vadd.f32 %v2194, %v2498
      %v2517 = vadd.f32 %v2195, %v2501
      %v2518 = vadd.f32 %v2196, %v2506
      %v2519 = vadd.f32 %v2197, %v2509
      %v2520 = vld [vmem:[%s1987] sm:$0xee]
      %v2521 = vld [vmem:[%s1987 + $0x10] sm:$0xee]
      %v2522 = vld [vmem:[%s1987 + $0x20] sm:$0xee]
      %v2523 = vld [vmem:[%s1987 + $0x30] sm:$0xee]
      %v2524 = vld [vmem:[%s1987 + $0x40] sm:$0xee]
      %v2525 = vld [vmem:[%s1987 + $0x50] sm:$0xee]
      %v2526 = vld [vmem:[%s1987 + $0x60] sm:$0xee]
      %v2527 = vld [vmem:[%s1987 + $0x70] sm:$0xee]
      %v2544 = vrot.slane %v2520, 5
      %v2545 = vrot.slane %v2544, 4
      %v2546 = vrot.slane %v2199, 5
      %v2547 = vsel %vm978, %v2545, %v2546
      %v2548 = vrot.slane %v2521, 5
      %v2549 = vrot.slane %v2548, 4
      %v2550 = vrot.slane %v2201, 5
      %v2551 = vsel %vm978, %v2549, %v2550
      %v2552 = vrot.slane %v2522, 5
      %v2553 = vrot.slane %v2552, 4
      %v2554 = vrot.slane %v2203, 5
      %v2555 = vsel %vm978, %v2553, %v2554
      %v2556 = vrot.slane %v2523, 5
      %v2557 = vrot.slane %v2556, 4
      %v2558 = vrot.slane %v2205, 5
      %v2559 = vsel %vm978, %v2557, %v2558
      %v2560 = vrot.slane %v2524, 5
      %v2561 = vrot.slane %v2560, 4
      %v2562 = vrot.slane %v2207, 5
      %v2563 = vsel %vm978, %v2561, %v2562
      %v2564 = vrot.slane %v2525, 5
      %v2565 = vrot.slane %v2564, 4
      %v2566 = vrot.slane %v2209, 5
      %v2567 = vsel %vm978, %v2565, %v2566
      %v2568 = vrot.slane %v2526, 5
      %v2569 = vrot.slane %v2568, 4
      %v2570 = vrot.slane %v2211, 5
      %v2571 = vsel %vm978, %v2569, %v2570
      %v2572 = vrot.slane %v2527, 5
      %v2573 = vrot.slane %v2572, 4
      %v2574 = vrot.slane %v2213, 5
      %v2575 = vsel %vm978, %v2573, %v2574
      %s2576 = scalar_lea.vmem %s1, 640
      %v2577 = vld [vmem:[%s2576] sm:$0xf]
      %v2578 = vld [vmem:[%s2576 + $0x4] sm:$0xf]
      %v2579 = vld [vmem:[%s2576 + $0x8] sm:$0xf]
      %v2580 = vld [vmem:[%s2576 + $0xc] sm:$0xf]
      %v2581 = vld [vmem:[%s2576 + $0x10] sm:$0xf]
      %v2582 = vld [vmem:[%s2576 + $0x14] sm:$0xf]
      %v2583 = vld [vmem:[%s2576 + $0x18] sm:$0xf]
      %v2584 = vld [vmem:[%s2576 + $0x1c] sm:$0xf]
      %v2585 = vld [vmem:[%s2576 + $0x20] sm:$0xf]
      %v2586 = vld [vmem:[%s2576 + $0x24] sm:$0xf]
      %v2587 = vld [vmem:[%s2576 + $0x28] sm:$0xf]
      %v2588 = vld [vmem:[%s2576 + $0x2c] sm:$0xf]
      %v2589 = vld [vmem:[%s2576 + $0x30] sm:$0xf]
      %v2590 = vld [vmem:[%s2576 + $0x34] sm:$0xf]
      %v2591 = vld [vmem:[%s2576 + $0x38] sm:$0xf]
      %v2592 = vld [vmem:[%s2576 + $0x3c] sm:$0xf]
      %v2593 = vld [vmem:[%s2576 + $0x40] sm:$0xf]
      %v2594 = vld [vmem:[%s2576 + $0x44] sm:$0xf]
      %v2595 = vld [vmem:[%s2576 + $0x48] sm:$0xf]
      %v2596 = vld [vmem:[%s2576 + $0x4c] sm:$0xf]
      %v2597 = vunpack.c.l.b16 %v2547
      %v2598 = vunpack.c.h.b16 %v2547
      %v2599 = vunpack.c.l.b16 %v2551
      %v2600 = vunpack.c.h.b16 %v2551
      %v2601 = vunpack.c.l.b16 %v2555
      %v2602 = vunpack.c.h.b16 %v2555
      %v2603 = vunpack.c.l.b16 %v2559
      %v2604 = vunpack.c.h.b16 %v2559
      %v2605 = vunpack.c.l.b16 %v2563
      %v2606 = vunpack.c.h.b16 %v2563
      %v2607 = vunpack.c.l.b16 %v2567
      %v2608 = vunpack.c.h.b16 %v2567
      %v2609 = vunpack.c.l.b16 %v2571
      %v2610 = vunpack.c.h.b16 %v2571
      %v2611 = vunpack.c.l.b16 %v2575
      %v2612 = vunpack.c.h.b16 %v2575
      %v2613 = vpack.c.b16 %v2599, %v2597
      %v2614 = vpack.c.b16 %v2600, %v2598
      %v2615 = vpack.c.b16 %v2603, %v2601
      %v2616 = vpack.c.b16 %v2604, %v2602
      %v2617 = vpack.c.b16 %v2607, %v2605
      %v2618 = vpack.c.b16 %v2608, %v2606
      %v2619 = vpack.c.b16 %v2611, %v2609
      %v2620 = vpack.c.b16 %v2612, %v2610
      %v2645 = vunpack.c.l.b16 %v2577
      %v2646 = vunpack.c.l.b16 %v2578
      %v2647 = vunpack.c.l.b16 %v2579
      %v2648 = vunpack.c.l.b16 %v2580
      %v2649 = vunpack.c.l.b16 %v2581
      %v2650 = vunpack.c.l.b16 %v2582
      %v2651 = vunpack.c.l.b16 %v2583
      %v2652 = vunpack.c.l.b16 %v2584
      %v2653 = vunpack.c.l.b16 %v2585
      %v2654 = vunpack.c.l.b16 %v2586
      %v2655 = vunpack.c.l.b16 %v2587
      %v2656 = vunpack.c.l.b16 %v2588
      %v2657 = vunpack.c.l.b16 %v2589
      %v2658 = vunpack.c.l.b16 %v2590
      %v2659 = vunpack.c.l.b16 %v2591
      %v2660 = vunpack.c.l.b16 %v2592
      %v2661 = vunpack.c.l.b16 %v2593
      %v2662 = vunpack.c.l.b16 %v2594
      %v2663 = vunpack.c.l.b16 %v2595
      %v2664 = vunpack.c.l.b16 %v2596
      %v2665 = vpack.c.b16 %v2646, %v2645
      %v2666 = vpack.c.b16 %v2648, %v2647
      %v2667 = vpack.c.b16 %v2650, %v2649
      %v2668 = vpack.c.b16 %v2652, %v2651
      %v2669 = vpack.c.b16 %v2654, %v2653
      %v2670 = vpack.c.b16 %v2656, %v2655
      %v2671 = vpack.c.b16 %v2658, %v2657
      %v2672 = vpack.c.b16 %v2660, %v2659
      %v2673 = vpack.c.b16 %v2662, %v2661
      %v2674 = vpack.c.b16 %v2664, %v2663
      %v2686 = vsel %vm701, %v2614, 0
      %v2689 = vsel %vm701, %v2616, 0
      %v2692 = vsel %vm701, %v2618, 0
      %v2695 = vsel %vm701, %v2620, 0
      %2697 = vmatprep.subr.bf16.mxu0 0
      %2698 = vmatpush1.bf16.msra.mxu0 %v2665
      %2699 = vmatprep.subr.bf16.mxu0 0
      %2700 = vmatpush1.bf16.msra.mxu0 %v2666
      %2701 = vmatprep.subr.bf16.mxu0 0
      %2702 = vmatpush1.bf16.msra.mxu0 %v2667
      %2703 = vmatprep.subr.bf16.mxu0 0
      %2704 = vmatpush1.bf16.msra.mxu0 %v2668
      %2705 = vmatprep.subr.bf16.mxu0 0
      %2706 = vmatpush1.bf16.msra.mxu0 %v2669
      %2707 = vmatprep.subr.bf16.mxu0 0
      %2708 = vmatpush1.bf16.msra.mxu0 %v2670
      %2709 = vmatprep.subr.bf16.mxu0 0
      %2710 = vmatpush1.bf16.msra.mxu0 %v2671
      %2711 = vmatprep.subr.bf16.mxu0 0
      %2712 = vmatpush1.bf16.msra.mxu0 %v2672
      %2713 = vmatprep.subr.bf16.mxu0 0
      %2714 = vmatpush1.bf16.msra.mxu0 %v2673
      %2715 = vmatprep.subr.bf16.mxu0 0
      %2716 = vmatpush1.bf16.msra.mxu0 %v2674
      %2717 = vmatprep.subr.bf16.mxu0 0
      %2718 = vmatpush1.bf16.msra.mxu0 0
      %2719 = vmatprep.subr.bf16.mxu0 0
      %2720 = vmatpush1.bf16.msra.mxu0 0
      %2721 = vmatprep.subr.bf16.mxu0 0
      %2722 = vmatpush1.bf16.msra.mxu0 0
      %2723 = vmatprep.subr.bf16.mxu0 0
      %2724 = vmatpush1.bf16.msra.mxu0 0
      %2725 = vmatprep.subr.bf16.mxu0 0
      %2726 = vmatpush1.bf16.msra.mxu0 0
      %2727 = vmatprep.subr.bf16.mxu0 0
      %2728 = vmatpush1.bf16.msra.mxu0 0
      %2729 = vmatprep.mubr.bf16.mxu0 %v2686
      %2730 = vmatmul.mubr.bf16.gmra.mrb[0].mxu0 %v2613
      %v2731 = vpop.f32.mrb[0].mxu0
      %v2732 = vadd.f32 0.0, %v2731
      %v2733 = vpop.f32.mrb[0].mxu0
      %v2734 = vpop.f32.mrb[0].mxu0
      %v2735 = vadd.f32 0.0, %v2734
      %v2736 = vpop.f32.mrb[0].mxu0
      %2737 = vmatprep.mubr.bf16.mxu0 %v2689
      %2738 = vmatmul.mubr.bf16.gmra.mrb[0].mxu0 %v2615
      %v2739 = vpop.f32.mrb[0].mxu0
      %v2740 = vadd.f32 0.0, %v2739
      %v2741 = vpop.f32.mrb[0].mxu0
      %v2742 = vpop.f32.mrb[0].mxu0
      %v2743 = vadd.f32 0.0, %v2742
      %v2744 = vpop.f32.mrb[0].mxu0
      %2745 = vmatprep.mubr.bf16.mxu0 %v2692
      %2746 = vmatmul.mubr.bf16.gmra.mrb[0].mxu0 %v2617
      %v2747 = vpop.f32.mrb[0].mxu0
      %v2748 = vadd.f32 0.0, %v2747
      %v2749 = vpop.f32.mrb[0].mxu0
      %v2750 = vpop.f32.mrb[0].mxu0
      %v2751 = vadd.f32 0.0, %v2750
      %v2752 = vpop.f32.mrb[0].mxu0
      %2753 = vmatprep.mubr.bf16.mxu0 %v2695
      %2754 = vmatmul.mubr.bf16.gmra.mrb[0].mxu0 %v2619
      %v2755 = vpop.f32.mrb[0].mxu0
      %v2756 = vadd.f32 0.0, %v2755
      %v2757 = vpop.f32.mrb[0].mxu0
      %v2758 = vpop.f32.mrb[0].mxu0
      %v2759 = vadd.f32 0.0, %v2758
      %v2760 = vpop.f32.mrb[0].mxu0
      %2761 = vdwg.mxu0
      %v2762 = vadd.f32 %v2512, %v2732
      %v2763 = vadd.f32 %v2513, %v2735
      %v2764 = vadd.f32 %v2514, %v2740
      %v2765 = vadd.f32 %v2515, %v2743
      %v2766 = vadd.f32 %v2516, %v2748
      %v2767 = vadd.f32 %v2517, %v2751
      %v2768 = vadd.f32 %v2518, %v2756
      %v2769 = vadd.f32 %v2519, %v2759
      %v2770 = vadd.f32 %v2762, %v2763
      %v2771 = vadd.f32 %v2770, %v2764
      %v2772 = vadd.f32 %v2771, %v2765
      %v2773 = vadd.f32 %v2772, %v2766
      %v2774 = vadd.f32 %v2773, %v2767
      %v2775 = vadd.f32 %v2774, %v2768
      %v2776 = vadd.f32 %v2775, %v2769
      %v2777 = vrot.slane %v2776, 4
      %v2778 = vadd.f32 %v2776, %v2777
      %v2779 = vrot.slane %v2778, 2
      %v2780 = vadd.f32 %v2778, %v2779
      %v2781 = vrot.slane %v2780, 1
      %v2782 = vadd.f32 %v2780, %v2781
      %2784 = vrot.lane.b32.xlu0 %v2782, 112
      %v2785 = vpop.permute.xlu0 %2784
      %v2787 = vadd.f32 %v2782, %v2785
      %2788 = vrot.lane.b32.xlu0 %v2782, 96
      %v2789 = vpop.permute.xlu0 %2788
      %v2791 = vadd.f32 %v2787, %v2789
      %2792 = vrot.lane.b32.xlu0 %v2782, 80
      %v2793 = vpop.permute.xlu0 %2792
      %v2795 = vadd.f32 %v2791, %v2793
      %2796 = vrot.lane.b32.xlu0 %v2782, 64
      %v2797 = vpop.permute.xlu0 %2796
      %v2799 = vadd.f32 %v2795, %v2797
      %2800 = vrot.lane.b32.xlu0 %v2782, 48
      %v2801 = vpop.permute.xlu0 %2800
      %v2803 = vadd.f32 %v2799, %v2801
      %2804 = vrot.lane.b32.xlu0 %v2782, 32
      %v2805 = vpop.permute.xlu0 %2804
      %v2807 = vadd.f32 %v2803, %v2805
      %2808 = vrot.lane.b32.xlu0 %v2782, 16
      %v2809 = vpop.permute.xlu0 %2808
      %v2811 = vadd.f32 %v2807, %v2809
      %v2812 = vrcp.pop 512.0
      %v2813 = vmul.f32 %v2811, %v2812
      %2815 = vrot.lane.b32.xlu0 %v2813, 16
      %v2816 = vpop.permute.xlu0 %2815
      %2818 = vrot.lane.b32.xlu0 %v2813, 32
      %v2819 = vpop.permute.xlu0 %2818
      %2821 = vrot.lane.b32.xlu0 %v2813, 48
      %v2822 = vpop.permute.xlu0 %2821
      %2824 = vrot.lane.b32.xlu0 %v2813, 64
      %v2825 = vpop.permute.xlu0 %2824
      %2827 = vrot.lane.b32.xlu0 %v2813, 80
      %v2828 = vpop.permute.xlu0 %2827
      %2830 = vrot.lane.b32.xlu0 %v2813, 96
      %v2831 = vpop.permute.xlu0 %2830
      %2833 = vrot.lane.b32.xlu0 %v2813, 112
      %v2834 = vpop.permute.xlu0 %2833
      %vm2836 = vcmask 130048
      %v2837 = vsel %vm2836, %v2813, %v2816
      %v2838 = vsel %vm701, %v2837, %v2819
      %vm2839 = vcmask 392192
      %v2840 = vsel %vm2839, %v2838, %v2822
      %vm2841 = vcmask 523264
      %v2842 = vsel %vm2841, %v2840, %v2825
      %vm2843 = vcmask 654336
      %v2844 = vsel %vm2843, %v2842, %v2828
      %vm2845 = vcmask 785408
      %v2846 = vsel %vm2845, %v2844, %v2831
      %vm2847 = vcmask 916480
      %v2848 = vsel %vm2847, %v2846, %v2834
      %v2849 = vlaneseq
      %v2850 = vshrl.u32 %v2849, 7
      %v2851 = vsub.s32 0, %v2850
      %v2852 = vrot.slane %v2848, %v2851
      %v2853 = vsub.f32 %v2762, %v2852
      %v2854 = vsub.f32 %v2763, %v2852
      %v2855 = vsub.f32 %v2764, %v2852
      %v2856 = vsub.f32 %v2765, %v2852
      %v2857 = vsub.f32 %v2766, %v2852
      %v2858 = vsub.f32 %v2767, %v2852
      %v2859 = vsub.f32 %v2768, %v2852
      %v2860 = vsub.f32 %v2769, %v2852
      %v2861 = vmul.f32 %v2853, %v2853
      %v2862 = vmul.f32 %v2854, %v2854
      %v2863 = vmul.f32 %v2855, %v2855
      %v2864 = vmul.f32 %v2856, %v2856
      %v2865 = vmul.f32 %v2857, %v2857
      %v2866 = vmul.f32 %v2858, %v2858
      %v2867 = vmul.f32 %v2859, %v2859
      %v2868 = vmul.f32 %v2860, %v2860
      %v2869 = vadd.f32 %v2861, %v2862
      %v2870 = vadd.f32 %v2869, %v2863
      %v2871 = vadd.f32 %v2870, %v2864
      %v2872 = vadd.f32 %v2871, %v2865
      %v2873 = vadd.f32 %v2872, %v2866
      %v2874 = vadd.f32 %v2873, %v2867
      %v2875 = vadd.f32 %v2874, %v2868
      %v2876 = vrot.slane %v2875, 4
      %v2877 = vadd.f32 %v2875, %v2876
      %v2878 = vrot.slane %v2877, 2
      %v2879 = vadd.f32 %v2877, %v2878
      %v2880 = vrot.slane %v2879, 1
      %v2881 = vadd.f32 %v2879, %v2880
      %2883 = vrot.lane.b32.xlu0 %v2881, 112
      %v2884 = vpop.permute.xlu0 %2883
      %v2886 = vadd.f32 %v2881, %v2884
      %2887 = vrot.lane.b32.xlu0 %v2881, 96
      %v2888 = vpop.permute.xlu0 %2887
      %v2890 = vadd.f32 %v2886, %v2888
      %2891 = vrot.lane.b32.xlu0 %v2881, 80
      %v2892 = vpop.permute.xlu0 %2891
      %v2894 = vadd.f32 %v2890, %v2892
      %2895 = vrot.lane.b32.xlu0 %v2881, 64
      %v2896 = vpop.permute.xlu0 %2895
      %v2898 = vadd.f32 %v2894, %v2896
      %2899 = vrot.lane.b32.xlu0 %v2881, 48
      %v2900 = vpop.permute.xlu0 %2899
      %v2902 = vadd.f32 %v2898, %v2900
      %2903 = vrot.lane.b32.xlu0 %v2881, 32
      %v2904 = vpop.permute.xlu0 %2903
      %v2906 = vadd.f32 %v2902, %v2904
      %2907 = vrot.lane.b32.xlu0 %v2881, 16
      %v2908 = vpop.permute.xlu0 %2907
      %v2910 = vadd.f32 %v2906, %v2908
      %v2911 = vmul.f32 %v2910, %v2812
      %v2912 = vld [vmem:[%s2] sm:$0x1]
      %v2913 = vadd.f32 %v2911, 1e-05
      %v2914 = vrsqrt.pop %v2913
      %v2915 = vmul.f32 %v2912, %v2914
      %v2917 = vlaneseq
      %v2918 = vshrl.u32 %v2917, 7
      %v2919 = vsub.s32 0, %v2918
      %v2920 = vrot.slane %v2915, %v2919
      %2921 = vrot.lane.b32.xlu0 %v2920, 16
      %v2922 = vpop.permute.xlu0 %2921
      %2924 = vrot.lane.b32.xlu0 %v2920, 32
      %v2925 = vpop.permute.xlu0 %2924
      %2927 = vrot.lane.b32.xlu0 %v2920, 48
      %v2928 = vpop.permute.xlu0 %2927
      %2930 = vrot.lane.b32.xlu0 %v2920, 64
      %v2931 = vpop.permute.xlu0 %2930
      %2933 = vrot.lane.b32.xlu0 %v2920, 80
      %v2934 = vpop.permute.xlu0 %2933
      %2936 = vrot.lane.b32.xlu0 %v2920, 96
      %v2937 = vpop.permute.xlu0 %2936
      %2939 = vrot.lane.b32.xlu0 %v2920, 112
      %v2940 = vpop.permute.xlu0 %2939
      %v2942 = vsel %vm2836, %v2915, %v2922
      %v2943 = vsel %vm701, %v2942, %v2925
      %v2944 = vsel %vm2839, %v2943, %v2928
      %v2945 = vsel %vm2841, %v2944, %v2931
      %v2946 = vsel %vm2843, %v2945, %v2934
      %v2947 = vsel %vm2845, %v2946, %v2937
      %v2948 = vsel %vm2847, %v2947, %v2940
      %v2949 = vlaneseq
      %v2950 = vshrl.u32 %v2949, 7
      %v2951 = vsub.s32 0, %v2950
      %v2952 = vrot.slane %v2948, %v2951
      %v2953 = vmul.f32 %v2853, %v2952
      %v2954 = vmul.f32 %v2854, %v2952
      %v2955 = vmul.f32 %v2855, %v2952
      %v2956 = vmul.f32 %v2856, %v2952
      %v2957 = vmul.f32 %v2857, %v2952
      %v2958 = vmul.f32 %v2858, %v2952
      %v2959 = vmul.f32 %v2859, %v2952
      %v2960 = vmul.f32 %v2860, %v2952
      %v2961 = vld [vmem:[%s3] sm:$0x1]
      %v2963 = vlaneseq
      %v2964 = vshrl.u32 %v2963, 7
      %v2965 = vsub.s32 0, %v2964
      %v2966 = vrot.slane %v2961, %v2965
      %2967 = vrot.lane.b32.xlu0 %v2966, 16
      %v2968 = vpop.permute.xlu0 %2967
      %2970 = vrot.lane.b32.xlu0 %v2966, 32
      %v2971 = vpop.permute.xlu0 %2970
      %2973 = vrot.lane.b32.xlu0 %v2966, 48
      %v2974 = vpop.permute.xlu0 %2973
      %2976 = vrot.lane.b32.xlu0 %v2966, 64
      %v2977 = vpop.permute.xlu0 %2976
      %2979 = vrot.lane.b32.xlu0 %v2966, 80
      %v2980 = vpop.permute.xlu0 %2979
      %2982 = vrot.lane.b32.xlu0 %v2966, 96
      %v2983 = vpop.permute.xlu0 %2982
      %2985 = vrot.lane.b32.xlu0 %v2966, 112
      %v2986 = vpop.permute.xlu0 %2985
      %v2988 = vsel %vm2836, %v2961, %v2968
      %v2989 = vsel %vm701, %v2988, %v2971
      %v2990 = vsel %vm2839, %v2989, %v2974
      %v2991 = vsel %vm2841, %v2990, %v2977
      %v2992 = vsel %vm2843, %v2991, %v2980
      %v2993 = vsel %vm2845, %v2992, %v2983
      %v2994 = vsel %vm2847, %v2993, %v2986
      %v2995 = vlaneseq
      %v2996 = vshrl.u32 %v2995, 7
      %v2997 = vsub.s32 0, %v2996
      %v2998 = vrot.slane %v2994, %v2997
      %v2999 = vadd.f32 %v2953, %v2998
      %v3000 = vadd.f32 %v2954, %v2998
      %v3001 = vadd.f32 %v2955, %v2998
      %v3002 = vadd.f32 %v2956, %v2998
      %v3003 = vadd.f32 %v2957, %v2998
      %v3004 = vadd.f32 %v2958, %v2998
      %v3005 = vadd.f32 %v2959, %v2998
      %v3006 = vadd.f32 %v2960, %v2998
      %v3007 = vmax.f32 %v2999, 0.0
      %v3008 = vmax.f32 %v3000, 0.0
      %v3009 = vmax.f32 %v3001, 0.0
      %v3010 = vmax.f32 %v3002, 0.0
      %v3011 = vmax.f32 %v3003, 0.0
      %v3012 = vmax.f32 %v3004, 0.0
      %v3013 = vmax.f32 %v3005, 0.0
      %v3014 = vmax.f32 %v3006, 0.0
      %3015 = vst [vmem:[%s197] sm:$0xff] %v3007
      %3016 = vst [vmem:[%s197 + $0x8] sm:$0xff] %v3008
      %3017 = vst [vmem:[%s197 + $0x10] sm:$0xff] %v3009
      %3018 = vst [vmem:[%s197 + $0x18] sm:$0xff] %v3010
      %3019 = vst [vmem:[%s197 + $0x20] sm:$0xff] %v3011
      %3020 = vst [vmem:[%s197 + $0x28] sm:$0xff] %v3012
      %3021 = vst [vmem:[%s197 + $0x30] sm:$0xff] %v3013
      %3022 = vst [vmem:[%s197 + $0x38] sm:$0xff] %v3014
      %p3023 = scmp.lt.s32.totalorder %s15, 1
      %s3024 = scalar_select %p3023, %s15, 1
      %s3025 = smul.addr %s3024, 8
      %s3026 = smul.addr %s3025, 8
      %s3027 = scalar_lea.vmem %s4, %s3026
      // Predicated region
      $region37: #{encoder_cnn_block_apply.3} parent=35 // pred_check
        %p3028 = pneg %p122
      $region38: #{encoder_cnn_block_apply.3} parent=35 // pred_check_branch
        %3030 = sbr.rel (%p3028) target = $region40
      $region39: #{encoder_cnn_block_apply.3} parent=35 // pred_region
        _
      $region40: #{encoder_cnn_block_apply.3} parent=35 // pred_fallthru
        _
    $region36: #{encoder_cnn_block_apply.3} parent=5 // pred_fallthru
      _
    %p3031 = scmp.le.s32.totalorder 2, %s10
    // Predicated region
    $region41: #{encoder_cnn_block_apply.3} parent=5 // pred_check
      %p3032 = pneg %p3031
    $region42: #{encoder_cnn_block_apply.3} parent=5 // pred_check_branch
      %3034 = sbr.rel (%p3032) target = $region44
    $region43: #{encoder_cnn_block_apply.3} parent=5 // pred_region
      %s3035 = ssub.s32 %s10, 2
      // Predicated region
      $region45: #{encoder_cnn_block_apply.3} parent=43 // pred_check
        %p3036 = pneg %p128
      $region46: #{encoder_cnn_block_apply.3} parent=43 // pred_check_branch
        %3038 = sbr.rel (%p3036) target = $region48
      $region47: #{encoder_cnn_block_apply.3} parent=43 // pred_region
        %p3039 = scmp.lt.s32.totalorder %s16, 1
        %s3040 = scalar_select %p3039, %s16, 1
        %s3041 = smul.addr %s3040, 8
        %s3042 = smul.addr %s3041, 8
        %s3043 = scalar_lea.vmem %s4, %s3042
      $region48: #{encoder_cnn_block_apply.3} parent=43 // pred_fallthru
        _
    $region44: #{encoder_cnn_block_apply.3} parent=5 // pred_fallthru
      _
  $region6: #{encoder_cnn_block_apply.3} parent=0 // loop_footer
    %s14 = sadd.s32 1, %s10
  $region7: #{encoder_cnn_block_apply.3} parent=0 // loop_footer_branch
    %9 = sbr.rel target = $region3
  $region8: #{encoder_cnn_block_apply.3} parent=0 // loop_exit
    _

</llo_original>
